<compile_context>
chip_gen: v6e
topology: v6e:2x2x1
jax: 0.10.0
libtpu: 0.0.40
codegen_flags: <defaults>
</compile_context>

<pallas_src>
import math
from functools import partial

import jax
import jax.numpy as jnp
from jax.experimental import pallas as pl
from jax.experimental.pallas import tpu as pltpu


_VMEM_LIMIT = 48 * 1024 * 1024   # below v7x's 64 MiB/TC, above default scoped limits
_ROW_TILE_CAP = 512              # HBM-bound row kernels: 512 rows ~ 85% of roofline
_Q_TILE_CAP = 256                # attention query tile
_KV_TILE_CAP = 256               # attention key/value tile


def _row_tile(n, cap=_ROW_TILE_CAP):
    if n <= cap:
        return n
    for t in (cap, 256, 128):
        if n % t == 0:
            return t
    return cap  # ragged tail handled by Pallas partial blocks (rows independent)


def _seq_tile(length, cap):
    """Returns (tile, padded_length). Pads instead of requiring divisibility."""
    if length <= cap:
        return length, length
    return cap, ((length + cap - 1) // cap) * cap


# ----------------------------------------------------------------------------
# Fused multi-output projection:  y_i = x @ W_i + b_i   (bf16 MXU, f32 accum)
# Used for the fused QKV projection, the cross-attn Q projection and the
# cross-attn KV projection.
# ----------------------------------------------------------------------------
def _proj_kernel(x_ref, *refs, n_out):
    x = x_ref[...].astype(jnp.bfloat16)
    for i in range(n_out):
        w = refs[2 * i][...]                # bf16 (Din, Dout_i)
        b = refs[2 * i + 1][...]            # f32  (1, Dout_i)
        o_ref = refs[2 * n_out + i]
        y = jnp.dot(x, w, preferred_element_type=jnp.float32) + b
        o_ref[...] = y.astype(o_ref.dtype)


def fused_proj(x2d, weights, biases, out_dtype=jnp.bfloat16):
    """x2d: [N, Din] f32.  Returns list of [N, Dout_i] arrays (bf16 by default)."""
    N, Din = x2d.shape
    n_out = len(weights)
    tn = _row_tile(N)

    in_specs = [pl.BlockSpec((tn, Din), lambda i: (i, 0))]
    out_specs, out_shapes, args = [], [], [x2d]
    for w, b in zip(weights, biases):
        Dout = w.shape[1]
        in_specs.append(pl.BlockSpec((Din, Dout), lambda i: (0, 0)))
        in_specs.append(pl.BlockSpec((1, Dout), lambda i: (0, 0)))
        args.append(w.astype(jnp.bfloat16))
        args.append(b.reshape(1, Dout).astype(jnp.float32))
        out_specs.append(pl.BlockSpec((tn, Dout), lambda i: (i, 0)))
        out_shapes.append(jax.ShapeDtypeStruct((N, Dout), out_dtype))

    outs = pl.pallas_call(
        partial(_proj_kernel, n_out=n_out),
        out_shape=tuple(out_shapes),
        grid_spec=pltpu.PrefetchScalarGridSpec(
            num_scalar_prefetch=0,
            grid=(pl.cdiv(N, tn),),
            in_specs=in_specs,
            out_specs=tuple(out_specs)),
        compiler_params=pltpu.CompilerParams(
            dimension_semantics=("parallel",),
            vmem_limit_bytes=_VMEM_LIMIT),
    )(*args)
    return list(outs)


# ----------------------------------------------------------------------------
# Flash-style scaled dot-product attention, lane-dense [B, L, H*d] layouts.
# grid = (B, q_tiles, kv_tiles); online softmax with per-head VMEM scratch.
# ----------------------------------------------------------------------------
def _attn_kernel(q_ref, k_ref, v_ref, valid_ref, o_ref, m_sc, l_sc, acc_sc,
                 *, scale, causal, n_head, d_k, d_v):
    qi = pl.program_id(1)
    ki = pl.program_id(2)
    nk = pl.num_programs(2)

    @pl.when(ki == 0)
    def _():
        m_sc[...] = jnp.full_like(m_sc, -jnp.inf)
        l_sc[...] = jnp.zeros_like(l_sc)
        acc_sc[...] = jnp.zeros_like(acc_sc)

    tq = q_ref.shape[1]
    tk = k_ref.shape[1]

    # One combined key-padding AND causal mask per kv tile, shared by all heads.
    keep = valid_ref[0] > 0.0                                       # (1, tk)
    if causal:
        q_idx = jax.lax.broadcasted_iota(jnp.int32, (tq, tk), 0) + qi * tq
        k_idx = jax.lax.broadcasted_iota(jnp.int32, (tq, tk), 1) + ki * tk
        keep = jnp.logical_and(keep, k_idx <= q_idx)                # (tq, tk)
    neg = jnp.float32(-1000000000.0)

    for h in range(n_head):
        qh = q_ref[0, :, h * d_k:(h + 1) * d_k]                     # (tq, d_k) bf16
        kh = k_ref[0, :, h * d_k:(h + 1) * d_k]                     # (tk, d_k) bf16
        vh = v_ref[0, :, h * d_v:(h + 1) * d_v]                     # (tk, d_v) bf16

        # S = Q K^T / sqrt(d_k)  (contract last dims; no explicit transpose)
        s = jax.lax.dot_general(
            qh, kh, (((1,), (1,)), ((), ())),
            preferred_element_type=jnp.float32) * scale             # (tq, tk) f32
        s = jnp.where(keep, s, neg)

        # online softmax update (f32)
        m_prev = m_sc[h]                                            # (tq, 1)
        m_new = jnp.maximum(m_prev, jnp.max(s, axis=-1, keepdims=True))
        alpha = jnp.exp(m_prev - m_new)
        p = jnp.exp(s - m_new)
        l_sc[h] = alpha * l_sc[h] + jnp.sum(p, axis=-1, keepdims=True)
        acc_sc[h] = alpha * acc_sc[h] + jnp.dot(
            p.astype(jnp.bfloat16), vh, preferred_element_type=jnp.float32)
        m_sc[h] = m_new

    @pl.when(ki == nk - 1)
    def _():
        for h in range(n_head):
            inv_l = pl.reciprocal(l_sc[h], approx=True)             # (tq, 1)
            o_ref[0, :, h * d_v:(h + 1) * d_v] = (
                acc_sc[h] * inv_l).astype(o_ref.dtype)


def flash_attention(q, k, v, key_valid, *, n_head, d_k, d_v, causal):
    """q: [B,Lq,H*d_k] bf16, k: [B,Lk,H*d_k] bf16, v: [B,Lk,H*d_v] bf16,
    key_valid: [B,Lk] (1=keep, 0=pad).  Returns [B,Lq,H*d_v] bf16."""
    B, Lq, Dq = q.shape
    Lk = k.shape[1]
    Dv = v.shape[2]

    tq, Lqp = _seq_tile(Lq, _Q_TILE_CAP)
    tk, Lkp = _seq_tile(Lk, _KV_TILE_CAP)
    if Lqp != Lq:
        q = jnp.pad(q, ((0, 0), (0, Lqp - Lq), (0, 0)))
    if Lkp != Lk:
        k = jnp.pad(k, ((0, 0), (0, Lkp - Lk), (0, 0)))
        v = jnp.pad(v, ((0, 0), (0, Lkp - Lk), (0, 0)))
        key_valid = jnp.pad(key_valid, ((0, 0), (0, Lkp - Lk)))
    valid = key_valid.astype(jnp.float32).reshape(B, 1, Lkp)

    kernel = partial(_attn_kernel, scale=1.0 / math.sqrt(d_k),
                     causal=bool(causal), n_head=n_head, d_k=d_k, d_v=d_v)

    out = pl.pallas_call(
        kernel,
        out_shape=jax.ShapeDtypeStruct((B, Lqp, Dv), jnp.bfloat16),
        grid_spec=pltpu.PrefetchScalarGridSpec(
            num_scalar_prefetch=0,
            grid=(B, Lqp // tq, Lkp // tk),
            in_specs=[
                pl.BlockSpec((1, tq, Dq), lambda b, qi, ki: (b, qi, 0)),
                pl.BlockSpec((1, tk, Dq), lambda b, qi, ki: (b, ki, 0)),
                pl.BlockSpec((1, tk, Dv), lambda b, qi, ki: (b, ki, 0)),
                pl.BlockSpec((1, 1, tk), lambda b, qi, ki: (b, 0, ki)),
            ],
            out_specs=pl.BlockSpec((1, tq, Dv), lambda b, qi, ki: (b, qi, 0)),
            scratch_shapes=[
                pltpu.VMEM((n_head, tq, 1), jnp.float32),    # running max
                pltpu.VMEM((n_head, tq, 1), jnp.float32),    # running denom
                pltpu.VMEM((n_head, tq, d_v), jnp.float32),  # running output acc
            ]),
        compiler_params=pltpu.CompilerParams(
            dimension_semantics=("parallel", "parallel", "arbitrary"),
            vmem_limit_bytes=_VMEM_LIMIT),
    )(q, k, v, valid)

    if Lqp != Lq:
        out = out[:, :Lq, :]
    return out


# ----------------------------------------------------------------------------
# Fused output projection + residual add + LayerNorm
# ----------------------------------------------------------------------------
def _out_proj_add_ln_kernel(a_ref, w_ref, b_ref, r_ref, g_ref, bt_ref, o_ref, *, eps):
    y = jnp.dot(a_ref[...], w_ref[...], preferred_element_type=jnp.float32)
    y = y + b_ref[...] + r_ref[...].astype(jnp.float32)
    mu = jnp.mean(y, axis=-1, keepdims=True)
    yc = y - mu
    var = jnp.mean(yc * yc, axis=-1, keepdims=True)
    o_ref[...] = (yc * jax.lax.rsqrt(var + eps) * g_ref[...]
                  + bt_ref[...]).astype(o_ref.dtype)


def out_proj_add_ln(attn2d, w_o, b_o, residual2d, gamma, beta, eps=1e-5):
    """attn2d: [N, H*d_v] bf16, residual2d: [N, D] f32 -> [N, D] f32."""
    N, Dvt = attn2d.shape
    D = residual2d.shape[-1]
    tn = _row_tile(N)
    return pl.pallas_call(
        partial(_out_proj_add_ln_kernel, eps=float(eps)),
        out_shape=jax.ShapeDtypeStruct((N, D), residual2d.dtype),
        grid_spec=pltpu.PrefetchScalarGridSpec(
            num_scalar_prefetch=0,
            grid=(pl.cdiv(N, tn),),
            in_specs=[
                pl.BlockSpec((tn, Dvt), lambda i: (i, 0)),
                pl.BlockSpec((Dvt, D), lambda i: (0, 0)),
                pl.BlockSpec((1, D), lambda i: (0, 0)),
                pl.BlockSpec((tn, D), lambda i: (i, 0)),
                pl.BlockSpec((1, D), lambda i: (0, 0)),
                pl.BlockSpec((1, D), lambda i: (0, 0)),
            ],
            out_specs=pl.BlockSpec((tn, D), lambda i: (i, 0))),
        compiler_params=pltpu.CompilerParams(
            dimension_semantics=("parallel",),
            vmem_limit_bytes=_VMEM_LIMIT),
    )(attn2d, w_o.astype(jnp.bfloat16), b_o.reshape(1, D).astype(jnp.float32),
      residual2d, gamma.reshape(1, D), beta.reshape(1, D))


# ----------------------------------------------------------------------------
# Fused FFN (fc1 -> relu -> fc2) + residual add + LayerNorm
# ----------------------------------------------------------------------------
def _ffn_add_ln_kernel(x_ref, w1_ref, b1_ref, w2_ref, b2_ref, g_ref, bt_ref,
                       o_ref, *, eps):
    x32 = x_ref[...].astype(jnp.float32)
    h = jnp.dot(x32.astype(jnp.bfloat16), w1_ref[...],
                preferred_element_type=jnp.float32) + b1_ref[...]
    h = jnp.maximum(h, 0.0)
    y = jnp.dot(h.astype(jnp.bfloat16), w2_ref[...],
                preferred_element_type=jnp.float32) + b2_ref[...]
    y = y + x32
    mu = jnp.mean(y, axis=-1, keepdims=True)
    yc = y - mu
    var = jnp.mean(yc * yc, axis=-1, keepdims=True)
    o_ref[...] = (yc * jax.lax.rsqrt(var + eps) * g_ref[...]
                  + bt_ref[...]).astype(o_ref.dtype)


def ffn_add_ln(x2d, prm, gamma, beta, eps=1e-5):
    N, D = x2d.shape
    Dh = prm["w1"].shape[1]
    tn = _row_tile(N)
    return pl.pallas_call(
        partial(_ffn_add_ln_kernel, eps=float(eps)),
        out_shape=jax.ShapeDtypeStruct((N, D), x2d.dtype),
        grid_spec=pltpu.PrefetchScalarGridSpec(
            num_scalar_prefetch=0,
            grid=(pl.cdiv(N, tn),),
            in_specs=[
                pl.BlockSpec((tn, D), lambda i: (i, 0)),
                pl.BlockSpec((D, Dh), lambda i: (0, 0)),
                pl.BlockSpec((1, Dh), lambda i: (0, 0)),
                pl.BlockSpec((Dh, D), lambda i: (0, 0)),
                pl.BlockSpec((1, D), lambda i: (0, 0)),
                pl.BlockSpec((1, D), lambda i: (0, 0)),
                pl.BlockSpec((1, D), lambda i: (0, 0)),
            ],
            out_specs=pl.BlockSpec((tn, D), lambda i: (i, 0))),
        compiler_params=pltpu.CompilerParams(
            dimension_semantics=("parallel",),
            vmem_limit_bytes=_VMEM_LIMIT),
    )(x2d, prm["w1"].astype(jnp.bfloat16), prm["b1"].reshape(1, Dh),
      prm["w2"].astype(jnp.bfloat16), prm["b2"].reshape(1, D),
      gamma.reshape(1, D), beta.reshape(1, D))


# ----------------------------------------------------------------------------
# Full DecoderLayer forward (eval mode)
# ----------------------------------------------------------------------------
def decoder_layer(x, enc_output, tgt_key_valid, src_key_valid, params, *,
                  n_head, d_k, d_v):
    B, Lt, D = x.shape
    Ls = enc_output.shape[1]
    x2d = x.reshape(B * Lt, D)
    enc2d = enc_output.reshape(B * Ls, D)

    # ---- 1) masked (causal) self-attention + add & LayerNorm1 ----------------
    mm = params["mmha"]
    q1, k1, v1 = fused_proj(x2d, (mm["w_q"], mm["w_k"], mm["w_v"]),
                            (mm["b_q"], mm["b_k"], mm["b_v"]))
    if tgt_key_valid is None:
        # torch: when pad_mask is None neither pad nor causal mask is applied
        valid1, causal1 = jnp.ones((B, Lt), jnp.float32), False
    else:
        valid1, causal1 = tgt_key_valid.astype(jnp.float32), True
    a1 = flash_attention(q1.reshape(B, Lt, n_head * d_k),
                         k1.reshape(B, Lt, n_head * d_k),
                         v1.reshape(B, Lt, n_head * d_v),
                         valid1, n_head=n_head, d_k=d_k, d_v=d_v, causal=causal1)
    x1_2d = out_proj_add_ln(a1.reshape(B * Lt, n_head * d_v),
                            mm["w_o"], mm["b_o"], x2d,
                            params["ln1_g"], params["ln1_b"])

    # ---- 2) cross attention over encoder output + add & LayerNorm2 -----------
    mh = params["mha"]
    (q2,) = fused_proj(x1_2d, (mh["w_q"],), (mh["b_q"],))
    k2, v2 = fused_proj(enc2d, (mh["w_k"], mh["w_v"]), (mh["b_k"], mh["b_v"]))
    if src_key_valid is None:
        valid2 = jnp.ones((B, Ls), jnp.float32)
    else:
        valid2 = src_key_valid.astype(jnp.float32)
    a2 = flash_attention(q2.reshape(B, Lt, n_head * d_k),
                         k2.reshape(B, Ls, n_head * d_k),
                         v2.reshape(B, Ls, n_head * d_v),
                         valid2, n_head=n_head, d_k=d_k, d_v=d_v, causal=False)
    x2_2d = out_proj_add_ln(a2.reshape(B * Lt, n_head * d_v),
                            mh["w_o"], mh["b_o"], x1_2d,
                            params["ln2_g"], params["ln2_b"])

    # ---- 3) position-wise FFN + add & LayerNorm3 ------------------------------
    x3_2d = ffn_add_ln(x2_2d, params["ffn"], params["ln3_g"], params["ln3_b"])
    return x3_2d.reshape(B, Lt, D)


# ----------------------------------------------------------------------------
# Pure-JAX reference (mirrors the PyTorch module in eval mode, f32)
# ----------------------------------------------------------------------------
def _ref_mha(xq, xkv, key_valid, prm, n_head, d_k, d_v, causal):
    B, Lq, D = xq.shape
    Lk = xkv.shape[1]
    q = (xq @ prm["w_q"] + prm["b_q"]).reshape(B, Lq, n_head, d_k).transpose(0, 2, 1, 3)
    k = (xkv @ prm["w_k"] + prm["b_k"]).reshape(B, Lk, n_head, d_k).transpose(0, 2, 1, 3)
    v = (xkv @ prm["w_v"] + prm["b_v"]).reshape(B, Lk, n_head, d_v).transpose(0, 2, 1, 3)
    s = jnp.einsum("bhqd,bhkd->bhqk", q, k) / math.sqrt(d_k)
    if key_valid is not None:
        if causal:
            cm = jnp.tril(jnp.ones((Lq, Lk), dtype=bool))
            s = jnp.where(cm[None, None], s, -1000000000.0)
        s = jnp.where(key_valid[:, None, None, :] > 0, s, -1000000000.0)
    a = jax.nn.softmax(s, axis=-1)
    o = jnp.einsum("bhqk,bhkd->bhqd", a, v)
    o = o.transpose(0, 2, 1, 3).reshape(B, Lq, n_head * d_v)
    return o @ prm["w_o"] + prm["b_o"]


def _ref_ln(y, g, b, eps=1e-5):
    mu = y.mean(-1, keepdims=True)
    var = ((y - mu) ** 2).mean(-1, keepdims=True)
    return (y - mu) / jnp.sqrt(var + eps) * g + b


def _ref_decoder(x, enc, tgt_valid, src_valid, params, n_head, d_k, d_v):
    a1 = _ref_mha(x, x, tgt_valid, params["mmha"], n_head, d_k, d_v, True)
    x1 = _ref_ln(a1 + x, params["ln1_g"], params["ln1_b"])
    a2 = _ref_mha(x1, enc, src_valid, params["mha"], n_head, d_k, d_v, False)
    x2 = _ref_ln(a2 + x1, params["ln2_g"], params["ln2_b"])
    ffn = params["ffn"]
    h = jnp.maximum(x2 @ ffn["w1"] + ffn["b1"], 0.0)
    f = h @ ffn["w2"] + ffn["b2"]
    return _ref_ln(f + x2, params["ln3_g"], params["ln3_b"])


# ----------------------------------------------------------------------------
if __name__ == "__main__":
    B, L_tgt, L_src = 2, 8, 16
    dim_model, n_head, d_k, d_v, dim_hidden = 32, 2, 16, 16, 64

    keys = iter(jax.random.split(jax.random.PRNGKey(0), 32))

    def nrm(shape, scale=0.1):
        return jax.random.normal(next(keys), shape, dtype=jnp.float32) * scale

    def mha_params():
        return dict(
            w_q=nrm((dim_model, n_head * d_k)), b_q=nrm((n_head * d_k,)),
            w_k=nrm((dim_model, n_head * d_k)), b_k=nrm((n_head * d_k,)),
            w_v=nrm((dim_model, n_head * d_v)), b_v=nrm((n_head * d_v,)),
            w_o=nrm((n_head * d_v, dim_model)), b_o=nrm((dim_model,)))

    params = dict(
        mmha=mha_params(),
        mha=mha_params(),
        ffn=dict(w1=nrm((dim_model, dim_hidden)), b1=nrm((dim_hidden,)),
                 w2=nrm((dim_hidden, dim_model)), b2=nrm((dim_model,))),
        ln1_g=jnp.ones((dim_model,), jnp.float32), ln1_b=jnp.zeros((dim_model,), jnp.float32),
        ln2_g=jnp.ones((dim_model,), jnp.float32), ln2_b=jnp.zeros((dim_model,), jnp.float32),
        ln3_g=jnp.ones((dim_model,), jnp.float32), ln3_b=jnp.zeros((dim_model,), jnp.float32),
    )

    x = jax.random.normal(next(keys), (B, L_tgt, dim_model), dtype=jnp.float32)
    enc = jax.random.normal(next(keys), (B, L_src, dim_model), dtype=jnp.float32)

    # key-padding validity vectors (1 = keep, 0 = pad); batch elements differ
    tgt_key_valid = (jnp.arange(L_tgt)[None, :]
                     < jnp.array([[L_tgt], [L_tgt - 3]])).astype(jnp.float32)
    src_key_valid = (jnp.arange(L_src)[None, :]
                     < jnp.array([[L_src - 4], [L_src]])).astype(jnp.float32)

    run = jax.jit(partial(decoder_layer, n_head=n_head, d_k=d_k, d_v=d_v))
    out = run(x, enc, tgt_key_valid, src_key_valid, params)
    out = jax.block_until_ready(out)

    ref = _ref_decoder(x, enc, tgt_key_valid, src_key_valid, params,
                       n_head, d_k, d_v)
    assert out.shape == (B, L_tgt, dim_model)
    assert not bool(jnp.any(jnp.isnan(out)))
    # bf16 MXU operands (vs. the f32 torch-equivalent reference) -> loose tolerance
    err = float(jnp.max(jnp.abs(out - ref)))
    assert err < 1e-1, f"max abs err {err}"

    print("KERNEL_OK")
</pallas_src>

<mosaic_0001>
module attributes {stable_mosaic.version = 11 : i64} {
  func.func @_out_proj_add_ln_kernel(%arg0: i32, %arg1: memref<16x32xbf16, #tpu.memory_space<vmem>>, %arg2: memref<32x32xbf16, #tpu.memory_space<vmem>>, %arg3: memref<1x32xf32, #tpu.memory_space<vmem>>, %arg4: memref<16x32xf32, #tpu.memory_space<vmem>>, %arg5: memref<1x32xf32, #tpu.memory_space<vmem>>, %arg6: memref<1x32xf32, #tpu.memory_space<vmem>>, %arg7: memref<16x32xf32, #tpu.memory_space<vmem>>) attributes {dimension_semantics = [#tpu.dimension_semantics<parallel>], iteration_bounds = array<i64: 1>, scalar_prefetch = 0 : i64, scratch_operands = 0 : i64, tpu.core_type = #tpu.core_type<tc>, window_params = [{transform_indices = @transform_0, window_bounds = array<i64: 16, 32>}, {pipeline_mode = #tpu.pipeline_mode<synchronous>, transform_indices = @transform_1, window_bounds = array<i64: 32, 32>}, {pipeline_mode = #tpu.pipeline_mode<synchronous>, transform_indices = @transform_2, window_bounds = array<i64: 1, 32>}, {transform_indices = @transform_3, window_bounds = array<i64: 16, 32>}, {pipeline_mode = #tpu.pipeline_mode<synchronous>, transform_indices = @transform_4, window_bounds = array<i64: 1, 32>}, {pipeline_mode = #tpu.pipeline_mode<synchronous>, transform_indices = @transform_5, window_bounds = array<i64: 1, 32>}, {transform_indices = @transform_6, window_bounds = array<i64: 16, 32>}]} {
    %c0 = arith.constant 0 : index
    %c0_0 = arith.constant 0 : index
    %0 = vector.load %arg1[%c0, %c0_0] : memref<16x32xbf16, #tpu.memory_space<vmem>>, vector<16x32xbf16>
    %c0_1 = arith.constant 0 : index
    %c0_2 = arith.constant 0 : index
    %1 = vector.load %arg2[%c0_1, %c0_2] : memref<32x32xbf16, #tpu.memory_space<vmem>>, vector<32x32xbf16>
    %cst = arith.constant dense<0.000000e+00> : vector<16x32xf32>
    %2 = tpu.matmul %0, %1, %cst {dimension_numbers = #tpu.dot_dimension_numbers<[1], [0], [0], [1], [0, 0, 1, 1], [], []>} : vector<16x32xbf16>, vector<32x32xbf16>, vector<16x32xf32> -> vector<16x32xf32>
    %c0_3 = arith.constant 0 : index
    %c0_4 = arith.constant 0 : index
    %3 = vector.load %arg3[%c0_3, %c0_4] : memref<1x32xf32, #tpu.memory_space<vmem>>, vector<1x32xf32>
    %4 = vector.broadcast %3 : vector<1x32xf32> to vector<16x32xf32>
    %5 = arith.addf %2, %4 : vector<16x32xf32>
    %c0_5 = arith.constant 0 : index
    %c0_6 = arith.constant 0 : index
    %6 = vector.load %arg4[%c0_5, %c0_6] : memref<16x32xf32, #tpu.memory_space<vmem>>, vector<16x32xf32>
    %7 = arith.addf %5, %6 : vector<16x32xf32>
    %cst_7 = arith.constant dense<0.000000e+00> : vector<16xf32>
    %8 = vector.multi_reduction <add>, %7, %cst_7 [1] : vector<16x32xf32> to vector<16xf32>
    %9 = vector.shape_cast %8 : vector<16xf32> to vector<16x1xf32>
    %cst_8 = arith.constant 3.200000e+01 : f32
    %10 = vector.broadcast %cst_8 : f32 to vector<16x1xf32>
    %11 = arith.divf %9, %10 : vector<16x1xf32>
    %12 = vector.broadcast %11 : vector<16x1xf32> to vector<16x32xf32>
    %13 = arith.subf %7, %12 : vector<16x32xf32>
    %14 = arith.mulf %13, %13 : vector<16x32xf32>
    %cst_9 = arith.constant dense<0.000000e+00> : vector<16xf32>
    %15 = vector.multi_reduction <add>, %14, %cst_9 [1] : vector<16x32xf32> to vector<16xf32>
    %16 = vector.shape_cast %15 : vector<16xf32> to vector<16x1xf32>
    %cst_10 = arith.constant 3.200000e+01 : f32
    %17 = vector.broadcast %cst_10 : f32 to vector<16x1xf32>
    %18 = arith.divf %16, %17 : vector<16x1xf32>
    %cst_11 = arith.constant 9.99999974E-6 : f32
    %19 = vector.broadcast %cst_11 : f32 to vector<16x1xf32>
    %20 = arith.addf %18, %19 : vector<16x1xf32>
    %21 = math.rsqrt %20 : vector<16x1xf32>
    %22 = vector.broadcast %21 : vector<16x1xf32> to vector<16x32xf32>
    %23 = arith.mulf %13, %22 : vector<16x32xf32>
    %c0_12 = arith.constant 0 : index
    %c0_13 = arith.constant 0 : index
    %24 = vector.load %arg5[%c0_12, %c0_13] : memref<1x32xf32, #tpu.memory_space<vmem>>, vector<1x32xf32>
    %25 = vector.broadcast %24 : vector<1x32xf32> to vector<16x32xf32>
    %26 = arith.mulf %23, %25 : vector<16x32xf32>
    %c0_14 = arith.constant 0 : index
    %c0_15 = arith.constant 0 : index
    %27 = vector.load %arg6[%c0_14, %c0_15] : memref<1x32xf32, #tpu.memory_space<vmem>>, vector<1x32xf32>
    %28 = vector.broadcast %27 : vector<1x32xf32> to vector<16x32xf32>
    %29 = arith.addf %26, %28 : vector<16x32xf32>
    %c0_16 = arith.constant 0 : index
    %c0_17 = arith.constant 0 : index
    %30 = vector.load %arg7[%c0_16, %c0_17] : memref<16x32xf32, #tpu.memory_space<vmem>>, vector<16x32xf32>
    tpu.vector_store %arg7[%c0_16, %c0_17], %29 {strides = array<i32>} : memref<16x32xf32, #tpu.memory_space<vmem>>, vector<16x32xf32>,
    return
  }
  func.func @transform_0(%arg0: i32) -> (i32, i32) {
    %c0_i32 = arith.constant 0 : i32
    %c0_i32_0 = arith.constant 0 : i32
    return %arg0, %c0_i32 : i32, i32
  }
  func.func @transform_1(%arg0: i32) -> (i32, i32) {
    %c0_i32 = arith.constant 0 : i32
    %c0_i32_0 = arith.constant 0 : i32
    %c0_i32_1 = arith.constant 0 : i32
    return %c0_i32, %c0_i32_0 : i32, i32
  }
  func.func @transform_2(%arg0: i32) -> (i32, i32) {
    %c0_i32 = arith.constant 0 : i32
    %c0_i32_0 = arith.constant 0 : i32
    %c0_i32_1 = arith.constant 0 : i32
    return %c0_i32, %c0_i32_0 : i32, i32
  }
  func.func @transform_3(%arg0: i32) -> (i32, i32) {
    %c0_i32 = arith.constant 0 : i32
    %c0_i32_0 = arith.constant 0 : i32
    return %arg0, %c0_i32 : i32, i32
  }
  func.func @transform_4(%arg0: i32) -> (i32, i32) {
    %c0_i32 = arith.constant 0 : i32
    %c0_i32_0 = arith.constant 0 : i32
    %c0_i32_1 = arith.constant 0 : i32
    return %c0_i32, %c0_i32_0 : i32, i32
  }
  func.func @transform_5(%arg0: i32) -> (i32, i32) {
    %c0_i32 = arith.constant 0 : i32
    %c0_i32_0 = arith.constant 0 : i32
    %c0_i32_1 = arith.constant 0 : i32
    return %c0_i32, %c0_i32_0 : i32, i32
  }
  func.func @transform_6(%arg0: i32) -> (i32, i32) {
    %c0_i32 = arith.constant 0 : i32
    %c0_i32_0 = arith.constant 0 : i32
    return %arg0, %c0_i32 : i32, i32
  }
}

module attributes {stable_mosaic.version = 11 : i64} {
  func.func @_attn_kernel(%arg0: i32, %arg1: i32, %arg2: i32, %arg3: memref<1x8x32xbf16, #tpu.memory_space<vmem>>, %arg4: memref<1x8x32xbf16, #tpu.memory_space<vmem>>, %arg5: memref<1x8x32xbf16, #tpu.memory_space<vmem>>, %arg6: memref<1x1x8xf32, #tpu.memory_space<vmem>>, %arg7: memref<1x8x32xbf16, #tpu.memory_space<vmem>>, %arg8: memref<2x8x1xf32, #tpu.memory_space<vmem>>, %arg9: memref<2x8x1xf32, #tpu.memory_space<vmem>>, %arg10: memref<2x8x16xf32, #tpu.memory_space<vmem>>) attributes {dimension_semantics = [#tpu.dimension_semantics<parallel>, #tpu.dimension_semantics<parallel>, #tpu.dimension_semantics<arbitrary>], iteration_bounds = array<i64: 2, 1, 1>, scalar_prefetch = 0 : i64, scratch_operands = 3 : i64, tpu.core_type = #tpu.core_type<tc>, window_params = [{transform_indices = @transform_0, window_bounds = array<i64: 1, 8, 32>}, {transform_indices = @transform_1, window_bounds = array<i64: 1, 8, 32>}, {transform_indices = @transform_2, window_bounds = array<i64: 1, 8, 32>}, {transform_indices = @transform_3, window_bounds = array<i64: 1, 1, 8>}, {transform_indices = @transform_4, window_bounds = array<i64: 1, 8, 32>}]} {
    %c0_i32 = arith.constant 0 : i32
    %0 = arith.cmpi eq, %arg2, %c0_i32 : i32
    %1 = arith.extui %0 : i1 to i32
    %c0_i32_0 = arith.constant 0 : i32
    %2 = arith.cmpi ne, %1, %c0_i32_0 : i32
    scf.if %2 {
      %cst_70 = arith.constant 0xFF800000 : f32
      %107 = vector.broadcast %cst_70 : f32 to vector<2x8x1xf32>
      %c0_71 = arith.constant 0 : index
      %c0_72 = arith.constant 0 : index
      %c0_73 = arith.constant 0 : index
      %108 = vector.load %arg8[%c0_71, %c0_72, %c0_73] : memref<2x8x1xf32, #tpu.memory_space<vmem>>, vector<2x8x1xf32>
      tpu.vector_store %arg8[%c0_71, %c0_72, %c0_73], %107 {strides = array<i32>} : memref<2x8x1xf32, #tpu.memory_space<vmem>>, vector<2x8x1xf32>,
      %cst_74 = arith.constant 0.000000e+00 : f32
      %109 = vector.broadcast %cst_74 : f32 to vector<2x8x1xf32>
      %c0_75 = arith.constant 0 : index
      %c0_76 = arith.constant 0 : index
      %c0_77 = arith.constant 0 : index
      %110 = vector.load %arg9[%c0_75, %c0_76, %c0_77] : memref<2x8x1xf32, #tpu.memory_space<vmem>>, vector<2x8x1xf32>
      tpu.vector_store %arg9[%c0_75, %c0_76, %c0_77], %109 {strides = array<i32>} : memref<2x8x1xf32, #tpu.memory_space<vmem>>, vector<2x8x1xf32>,
      %cst_78 = arith.constant 0.000000e+00 : f32
      %111 = vector.broadcast %cst_78 : f32 to vector<2x8x16xf32>
      %c0_79 = arith.constant 0 : index
      %c0_80 = arith.constant 0 : index
      %c0_81 = arith.constant 0 : index
      %112 = vector.load %arg10[%c0_79, %c0_80, %c0_81] : memref<2x8x16xf32, #tpu.memory_space<vmem>>, vector<2x8x16xf32>
      tpu.vector_store %arg10[%c0_79, %c0_80, %c0_81], %111 {strides = array<i32>} : memref<2x8x16xf32, #tpu.memory_space<vmem>>, vector<2x8x16xf32>,
    } else {
    }
    %c0 = arith.constant 0 : index
    %c0_1 = arith.constant 0 : index
    %c0_2 = arith.constant 0 : index
    %3 = vector.load %arg6[%c0, %c0_1, %c0_2] : memref<1x1x8xf32, #tpu.memory_space<vmem>>, vector<1x1x8xf32>
    %4 = vector.shape_cast %3 : vector<1x1x8xf32> to vector<1x8xf32>
    %cst = arith.constant 0.000000e+00 : f32
    %5 = vector.broadcast %cst : f32 to vector<1x8xf32>
    %6 = arith.cmpf ogt, %4, %5 : vector<1x8xf32>
    %7 = tpu.iota {dimensions = array<i32: 0>} : vector<8x8xi32>
    %c8_i32 = arith.constant 8 : i32
    %8 = arith.muli %arg1, %c8_i32 : i32
    %9 = vector.broadcast %8 : i32 to vector<8x8xi32>
    %10 = arith.addi %7, %9 : vector<8x8xi32>
    %11 = tpu.iota {dimensions = array<i32: 1>} : vector<8x8xi32>
    %c8_i32_3 = arith.constant 8 : i32
    %12 = arith.muli %arg2, %c8_i32_3 : i32
    %13 = vector.broadcast %12 : i32 to vector<8x8xi32>
    %14 = arith.addi %11, %13 : vector<8x8xi32>
    %15 = arith.cmpi sle, %14, %10 : vector<8x8xi32>
    %16 = vector.broadcast %6 : vector<1x8xi1> to vector<8x8xi1>
    %17 = arith.andi %16, %15 : vector<8x8xi1>
    %c0_4 = arith.constant 0 : index
    %c0_5 = arith.constant 0 : index
    %c0_6 = arith.constant 0 : index
    %18 = vector.load %arg3[%c0_4, %c0_5, %c0_6] : memref<1x8x32xbf16, #tpu.memory_space<vmem>>, vector<1x8x16xbf16>
    %19 = vector.shape_cast %18 : vector<1x8x16xbf16> to vector<8x16xbf16>
    %c0_7 = arith.constant 0 : index
    %c0_8 = arith.constant 0 : index
    %c0_9 = arith.constant 0 : index
    %20 = vector.load %arg4[%c0_7, %c0_8, %c0_9] : memref<1x8x32xbf16, #tpu.memory_space<vmem>>, vector<1x8x16xbf16>
    %21 = vector.shape_cast %20 : vector<1x8x16xbf16> to vector<8x16xbf16>
    %c0_10 = arith.constant 0 : index
    %c0_11 = arith.constant 0 : index
    %c0_12 = arith.constant 0 : index
    %22 = vector.load %arg5[%c0_10, %c0_11, %c0_12] : memref<1x8x32xbf16, #tpu.memory_space<vmem>>, vector<1x8x16xbf16>
    %23 = vector.shape_cast %22 : vector<1x8x16xbf16> to vector<8x16xbf16>
    %cst_13 = arith.constant dense<0.000000e+00> : vector<8x8xf32>
    %24 = tpu.matmul %19, %21, %cst_13 {dimension_numbers = #tpu.dot_dimension_numbers<[1], [1], [0], [0], [0, 0, 1, 0], [], []>} : vector<8x16xbf16>, vector<8x16xbf16>, vector<8x8xf32> -> vector<8x8xf32>
    %cst_14 = arith.constant 2.500000e-01 : f32
    %25 = vector.broadcast %cst_14 : f32 to vector<8x8xf32>
    %26 = arith.mulf %24, %25 : vector<8x8xf32>
    %cst_15 = arith.constant -1.000000e+09 : f32
    %27 = vector.broadcast %cst_15 : f32 to vector<8x8xf32>
    %28 = arith.select %17, %26, %27 : vector<8x8xi1>, vector<8x8xf32>
    %c0_16 = arith.constant 0 : index
    %c0_17 = arith.constant 0 : index
    %c0_18 = arith.constant 0 : index
    %29 = vector.load %arg8[%c0_16, %c0_17, %c0_18] : memref<2x8x1xf32, #tpu.memory_space<vmem>>, vector<1x8x1xf32>
    %30 = vector.shape_cast %29 : vector<1x8x1xf32> to vector<8x1xf32>
    %cst_19 = arith.constant dense<0xFF800000> : vector<8xf32>
    %31 = vector.multi_reduction <maximumf>, %28, %cst_19 [1] : vector<8x8xf32> to vector<8xf32>
    %32 = vector.shape_cast %31 : vector<8xf32> to vector<8x1xf32>
    %33 = arith.maximumf %30, %32 : vector<8x1xf32>
    %34 = arith.subf %30, %33 : vector<8x1xf32>
    %35 = math.exp %34 : vector<8x1xf32>
    %36 = vector.broadcast %33 : vector<8x1xf32> to vector<8x8xf32>
    %37 = arith.subf %28, %36 : vector<8x8xf32>
    %38 = math.exp %37 : vector<8x8xf32>
    %c0_20 = arith.constant 0 : index
    %c0_21 = arith.constant 0 : index
    %c0_22 = arith.constant 0 : index
    %39 = vector.load %arg9[%c0_20, %c0_21, %c0_22] : memref<2x8x1xf32, #tpu.memory_space<vmem>>, vector<1x8x1xf32>
    %40 = vector.shape_cast %39 : vector<1x8x1xf32> to vector<8x1xf32>
    %41 = arith.mulf %35, %40 : vector<8x1xf32>
    %cst_23 = arith.constant dense<0.000000e+00> : vector<8xf32>
    %42 = vector.multi_reduction <add>, %38, %cst_23 [1] : vector<8x8xf32> to vector<8xf32>
    %43 = vector.shape_cast %42 : vector<8xf32> to vector<8x1xf32>
    %44 = arith.addf %41, %43 : vector<8x1xf32>
    %c0_24 = arith.constant 0 : index
    %c0_25 = arith.constant 0 : index
    %c0_26 = arith.constant 0 : index
    %45 = vector.load %arg9[%c0_24, %c0_25, %c0_26] : memref<2x8x1xf32, #tpu.memory_space<vmem>>, vector<1x8x1xf32>
    %46 = vector.shape_cast %45 : vector<1x8x1xf32> to vector<8x1xf32>
    %47 = vector.shape_cast %44 : vector<8x1xf32> to vector<1x8x1xf32>
    tpu.vector_store %arg9[%c0_24, %c0_25, %c0_26], %47 {strides = array<i32>} : memref<2x8x1xf32, #tpu.memory_space<vmem>>, vector<1x8x1xf32>,
    %c0_27 = arith.constant 0 : index
    %c0_28 = arith.constant 0 : index
    %c0_29 = arith.constant 0 : index
    %48 = vector.load %arg10[%c0_27, %c0_28, %c0_29] : memref<2x8x16xf32, #tpu.memory_space<vmem>>, vector<1x8x16xf32>
    %49 = vector.shape_cast %48 : vector<1x8x16xf32> to vector<8x16xf32>
    %50 = vector.broadcast %35 : vector<8x1xf32> to vector<8x16xf32>
    %51 = arith.mulf %50, %49 : vector<8x16xf32>
    %52 = arith.truncf %38 : vector<8x8xf32> to vector<8x8xbf16>
    %cst_30 = arith.constant dense<0.000000e+00> : vector<8x16xf32>
    %53 = tpu.matmul %52, %23, %cst_30 {dimension_numbers = #tpu.dot_dimension_numbers<[1], [0], [0], [1], [0, 0, 1, 1], [], []>} : vector<8x8xbf16>, vector<8x16xbf16>, vector<8x16xf32> -> vector<8x16xf32>
    %54 = arith.addf %51, %53 : vector<8x16xf32>
    %c0_31 = arith.constant 0 : index
    %c0_32 = arith.constant 0 : index
    %c0_33 = arith.constant 0 : index
    %55 = vector.load %arg10[%c0_31, %c0_32, %c0_33] : memref<2x8x16xf32, #tpu.memory_space<vmem>>, vector<1x8x16xf32>
    %56 = vector.shape_cast %55 : vector<1x8x16xf32> to vector<8x16xf32>
    %57 = vector.shape_cast %54 : vector<8x16xf32> to vector<1x8x16xf32>
    tpu.vector_store %arg10[%c0_31, %c0_32, %c0_33], %57 {strides = array<i32>} : memref<2x8x16xf32, #tpu.memory_space<vmem>>, vector<1x8x16xf32>,
    %c0_34 = arith.constant 0 : index
    %c0_35 = arith.constant 0 : index
    %c0_36 = arith.constant 0 : index
    %58 = vector.load %arg8[%c0_34, %c0_35, %c0_36] : memref<2x8x1xf32, #tpu.memory_space<vmem>>, vector<1x8x1xf32>
    %59 = vector.shape_cast %58 : vector<1x8x1xf32> to vector<8x1xf32>
    %60 = vector.shape_cast %33 : vector<8x1xf32> to vector<1x8x1xf32>
    tpu.vector_store %arg8[%c0_34, %c0_35, %c0_36], %60 {strides = array<i32>} : memref<2x8x1xf32, #tpu.memory_space<vmem>>, vector<1x8x1xf32>,
    %c0_37 = arith.constant 0 : index
    %c0_38 = arith.constant 0 : index
    %c16 = arith.constant 16 : index
    %61 = vector.load %arg3[%c0_37, %c0_38, %c16] : memref<1x8x32xbf16, #tpu.memory_space<vmem>>, vector<1x8x16xbf16>
    %62 = vector.shape_cast %61 : vector<1x8x16xbf16> to vector<8x16xbf16>
    %c0_39 = arith.constant 0 : index
    %c0_40 = arith.constant 0 : index
    %c16_41 = arith.constant 16 : index
    %63 = vector.load %arg4[%c0_39, %c0_40, %c16_41] : memref<1x8x32xbf16, #tpu.memory_space<vmem>>, vector<1x8x16xbf16>
    %64 = vector.shape_cast %63 : vector<1x8x16xbf16> to vector<8x16xbf16>
    %c0_42 = arith.constant 0 : index
    %c0_43 = arith.constant 0 : index
    %c16_44 = arith.constant 16 : index
    %65 = vector.load %arg5[%c0_42, %c0_43, %c16_44] : memref<1x8x32xbf16, #tpu.memory_space<vmem>>, vector<1x8x16xbf16>
    %66 = vector.shape_cast %65 : vector<1x8x16xbf16> to vector<8x16xbf16>
    %cst_45 = arith.constant dense<0.000000e+00> : vector<8x8xf32>
    %67 = tpu.matmul %62, %64, %cst_45 {dimension_numbers = #tpu.dot_dimension_numbers<[1], [1], [0], [0], [0, 0, 1, 0], [], []>} : vector<8x16xbf16>, vector<8x16xbf16>, vector<8x8xf32> -> vector<8x8xf32>
    %cst_46 = arith.constant 2.500000e-01 : f32
    %68 = vector.broadcast %cst_46 : f32 to vector<8x8xf32>
    %69 = arith.mulf %67, %68 : vector<8x8xf32>
    %cst_47 = arith.constant -1.000000e+09 : f32
    %70 = vector.broadcast %cst_47 : f32 to vector<8x8xf32>
    %71 = arith.select %17, %69, %70 : vector<8x8xi1>, vector<8x8xf32>
    %c1 = arith.constant 1 : index
    %c0_48 = arith.constant 0 : index
    %c0_49 = arith.constant 0 : index
    %72 = vector.load %arg8[%c1, %c0_48, %c0_49] : memref<2x8x1xf32, #tpu.memory_space<vmem>>, vector<1x8x1xf32>
    %73 = vector.shape_cast %72 : vector<1x8x1xf32> to vector<8x1xf32>
    %cst_50 = arith.constant dense<0xFF800000> : vector<8xf32>
    %74 = vector.multi_reduction <maximumf>, %71, %cst_50 [1] : vector<8x8xf32> to vector<8xf32>
    %75 = vector.shape_cast %74 : vector<8xf32> to vector<8x1xf32>
    %76 = arith.maximumf %73, %75 : vector<8x1xf32>
    %77 = arith.subf %73, %76 : vector<8x1xf32>
    %78 = math.exp %77 : vector<8x1xf32>
    %79 = vector.broadcast %76 : vector<8x1xf32> to vector<8x8xf32>
    %80 = arith.subf %71, %79 : vector<8x8xf32>
    %81 = math.exp %80 : vector<8x8xf32>
    %c1_51 = arith.constant 1 : index
    %c0_52 = arith.constant 0 : index
    %c0_53 = arith.constant 0 : index
    %82 = vector.load %arg9[%c1_51, %c0_52, %c0_53] : memref<2x8x1xf32, #tpu.memory_space<vmem>>, vector<1x8x1xf32>
    %83 = vector.shape_cast %82 : vector<1x8x1xf32> to vector<8x1xf32>
    %84 = arith.mulf %78, %83 : vector<8x1xf32>
    %cst_54 = arith.constant dense<0.000000e+00> : vector<8xf32>
    %85 = vector.multi_reduction <add>, %81, %cst_54 [1] : vector<8x8xf32> to vector<8xf32>
    %86 = vector.shape_cast %85 : vector<8xf32> to vector<8x1xf32>
    %87 = arith.addf %84, %86 : vector<8x1xf32>
    %c1_55 = arith.constant 1 : index
    %c0_56 = arith.constant 0 : index
    %c0_57 = arith.constant 0 : index
    %88 = vector.load %arg9[%c1_55, %c0_56, %c0_57] : memref<2x8x1xf32, #tpu.memory_space<vmem>>, vector<1x8x1xf32>
    %89 = vector.shape_cast %88 : vector<1x8x1xf32> to vector<8x1xf32>
    %90 = vector.shape_cast %87 : vector<8x1xf32> to vector<1x8x1xf32>
    tpu.vector_store %arg9[%c1_55, %c0_56, %c0_57], %90 {strides = array<i32>} : memref<2x8x1xf32, #tpu.memory_space<vmem>>, vector<1x8x1xf32>,
    %c1_58 = arith.constant 1 : index
    %c0_59 = arith.constant 0 : index
    %c0_60 = arith.constant 0 : index
    %91 = vector.load %arg10[%c1_58, %c0_59, %c0_60] : memref<2x8x16xf32, #tpu.memory_space<vmem>>, vector<1x8x16xf32>
    %92 = vector.shape_cast %91 : vector<1x8x16xf32> to vector<8x16xf32>
    %93 = vector.broadcast %78 : vector<8x1xf32> to vector<8x16xf32>
    %94 = arith.mulf %93, %92 : vector<8x16xf32>
    %95 = arith.truncf %81 : vector<8x8xf32> to vector<8x8xbf16>
    %cst_61 = arith.constant dense<0.000000e+00> : vector<8x16xf32>
    %96 = tpu.matmul %95, %66, %cst_61 {dimension_numbers = #tpu.dot_dimension_numbers<[1], [0], [0], [1], [0, 0, 1, 1], [], []>} : vector<8x8xbf16>, vector<8x16xbf16>, vector<8x16xf32> -> vector<8x16xf32>
    %97 = arith.addf %94, %96 : vector<8x16xf32>
    %c1_62 = arith.constant 1 : index
    %c0_63 = arith.constant 0 : index
    %c0_64 = arith.constant 0 : index
    %98 = vector.load %arg10[%c1_62, %c0_63, %c0_64] : memref<2x8x16xf32, #tpu.memory_space<vmem>>, vector<1x8x16xf32>
    %99 = vector.shape_cast %98 : vector<1x8x16xf32> to vector<8x16xf32>
    %100 = vector.shape_cast %97 : vector<8x16xf32> to vector<1x8x16xf32>
    tpu.vector_store %arg10[%c1_62, %c0_63, %c0_64], %100 {strides = array<i32>} : memref<2x8x16xf32, #tpu.memory_space<vmem>>, vector<1x8x16xf32>,
    %c1_65 = arith.constant 1 : index
    %c0_66 = arith.constant 0 : index
    %c0_67 = arith.constant 0 : index
    %101 = vector.load %arg8[%c1_65, %c0_66, %c0_67] : memref<2x8x1xf32, #tpu.memory_space<vmem>>, vector<1x8x1xf32>
    %102 = vector.shape_cast %101 : vector<1x8x1xf32> to vector<8x1xf32>
    %103 = vector.shape_cast %76 : vector<8x1xf32> to vector<1x8x1xf32>
    tpu.vector_store %arg8[%c1_65, %c0_66, %c0_67], %103 {strides = array<i32>} : memref<2x8x1xf32, #tpu.memory_space<vmem>>, vector<1x8x1xf32>,
    %c0_i32_68 = arith.constant 0 : i32
    %104 = arith.cmpi eq, %arg2, %c0_i32_68 : i32
    %105 = arith.extui %104 : i1 to i32
    %c0_i32_69 = arith.constant 0 : i32
    %106 = arith.cmpi ne, %105, %c0_i32_69 : i32
    scf.if %106 {
      %c0_70 = arith.constant 0 : index
      %c0_71 = arith.constant 0 : index
      %c0_72 = arith.constant 0 : index
      %107 = vector.load %arg9[%c0_70, %c0_71, %c0_72] : memref<2x8x1xf32, #tpu.memory_space<vmem>>, vector<1x8x1xf32>
      %108 = vector.shape_cast %107 : vector<1x8x1xf32> to vector<8x1xf32>
      %109 = tpu.reciprocal %108 {approx = true} : vector<8x1xf32> -> vector<8x1xf32>
      %c0_73 = arith.constant 0 : index
      %c0_74 = arith.constant 0 : index
      %c0_75 = arith.constant 0 : index
      %110 = vector.load %arg10[%c0_73, %c0_74, %c0_75] : memref<2x8x16xf32, #tpu.memory_space<vmem>>, vector<1x8x16xf32>
      %111 = vector.shape_cast %110 : vector<1x8x16xf32> to vector<8x16xf32>
      %112 = vector.broadcast %109 : vector<8x1xf32> to vector<8x16xf32>
      %113 = arith.mulf %111, %112 : vector<8x16xf32>
      %114 = arith.truncf %113 : vector<8x16xf32> to vector<8x16xbf16>
      %c0_76 = arith.constant 0 : index
      %c0_77 = arith.constant 0 : index
      %c0_78 = arith.constant 0 : index
      %115 = vector.load %arg7[%c0_76, %c0_77, %c0_78] : memref<1x8x32xbf16, #tpu.memory_space<vmem>>, vector<1x8x16xbf16>
      %116 = vector.shape_cast %115 : vector<1x8x16xbf16> to vector<8x16xbf16>
      %117 = vector.shape_cast %114 : vector<8x16xbf16> to vector<1x8x16xbf16>
      tpu.vector_store %arg7[%c0_76, %c0_77, %c0_78], %117 {strides = array<i32>} : memref<1x8x32xbf16, #tpu.memory_space<vmem>>, vector<1x8x16xbf16>,
      %c1_79 = arith.constant 1 : index
      %c0_80 = arith.constant 0 : index
      %c0_81 = arith.constant 0 : index
      %118 = vector.load %arg9[%c1_79, %c0_80, %c0_81] : memref<2x8x1xf32, #tpu.memory_space<vmem>>, vector<1x8x1xf32>
      %119 = vector.shape_cast %118 : vector<1x8x1xf32> to vector<8x1xf32>
      %120 = tpu.reciprocal %119 {approx = true} : vector<8x1xf32> -> vector<8x1xf32>
      %c1_82 = arith.constant 1 : index
      %c0_83 = arith.constant 0 : index
      %c0_84 = arith.constant 0 : index
      %121 = vector.load %arg10[%c1_82, %c0_83, %c0_84] : memref<2x8x16xf32, #tpu.memory_space<vmem>>, vector<1x8x16xf32>
      %122 = vector.shape_cast %121 : vector<1x8x16xf32> to vector<8x16xf32>
      %123 = vector.broadcast %120 : vector<8x1xf32> to vector<8x16xf32>
      %124 = arith.mulf %122, %123 : vector<8x16xf32>
      %125 = arith.truncf %124 : vector<8x16xf32> to vector<8x16xbf16>
      %c0_85 = arith.constant 0 : index
      %c0_86 = arith.constant 0 : index
      %c16_87 = arith.constant 16 : index
      %126 = vector.load %arg7[%c0_85, %c0_86, %c16_87] : memref<1x8x32xbf16, #tpu.memory_space<vmem>>, vector<1x8x16xbf16>
      %127 = vector.shape_cast %126 : vector<1x8x16xbf16> to vector<8x16xbf16>
      %128 = vector.shape_cast %125 : vector<8x16xbf16> to vector<1x8x16xbf16>
      tpu.vector_store %arg7[%c0_85, %c0_86, %c16_87], %128 {strides = array<i32>} : memref<1x8x32xbf16, #tpu.memory_space<vmem>>, vector<1x8x16xbf16>,
    } else {
    }
    return
  }
  func.func @transform_0(%arg0: i32, %arg1: i32, %arg2: i32) -> (i32, i32, i32) {
    %c0_i32 = arith.constant 0 : i32
    %c0_i32_0 = arith.constant 0 : i32
    return %arg0, %arg1, %c0_i32 : i32, i32, i32
  }
  func.func @transform_1(%arg0: i32, %arg1: i32, %arg2: i32) -> (i32, i32, i32) {
    %c0_i32 = arith.constant 0 : i32
    %c0_i32_0 = arith.constant 0 : i32
    return %arg0, %arg2, %c0_i32 : i32, i32, i32
  }
  func.func @transform_2(%arg0: i32, %arg1: i32, %arg2: i32) -> (i32, i32, i32) {
    %c0_i32 = arith.constant 0 : i32
    %c0_i32_0 = arith.constant 0 : i32
    return %arg0, %arg2, %c0_i32 : i32, i32, i32
  }
  func.func @transform_3(%arg0: i32, %arg1: i32, %arg2: i32) -> (i32, i32, i32) {
    %c0_i32 = arith.constant 0 : i32
    %c0_i32_0 = arith.constant 0 : i32
    return %arg0, %c0_i32, %arg2 : i32, i32, i32
  }
  func.func @transform_4(%arg0: i32, %arg1: i32, %arg2: i32) -> (i32, i32, i32) {
    %c0_i32 = arith.constant 0 : i32
    %c0_i32_0 = arith.constant 0 : i32
    return %arg0, %arg1, %c0_i32 : i32, i32, i32
  }
}

module attributes {stable_mosaic.version = 11 : i64} {
  func.func @_proj_kernel(%arg0: i32, %arg1: memref<16x32xf32, #tpu.memory_space<vmem>>, %arg2: memref<32x32xbf16, #tpu.memory_space<vmem>>, %arg3: memref<1x32xf32, #tpu.memory_space<vmem>>, %arg4: memref<32x32xbf16, #tpu.memory_space<vmem>>, %arg5: memref<1x32xf32, #tpu.memory_space<vmem>>, %arg6: memref<32x32xbf16, #tpu.memory_space<vmem>>, %arg7: memref<1x32xf32, #tpu.memory_space<vmem>>, %arg8: memref<16x32xbf16, #tpu.memory_space<vmem>>, %arg9: memref<16x32xbf16, #tpu.memory_space<vmem>>, %arg10: memref<16x32xbf16, #tpu.memory_space<vmem>>) attributes {dimension_semantics = [#tpu.dimension_semantics<parallel>], iteration_bounds = array<i64: 1>, scalar_prefetch = 0 : i64, scratch_operands = 0 : i64, tpu.core_type = #tpu.core_type<tc>, window_params = [{transform_indices = @transform_0, window_bounds = array<i64: 16, 32>}, {pipeline_mode = #tpu.pipeline_mode<synchronous>, transform_indices = @transform_1, window_bounds = array<i64: 32, 32>}, {pipeline_mode = #tpu.pipeline_mode<synchronous>, transform_indices = @transform_2, window_bounds = array<i64: 1, 32>}, {pipeline_mode = #tpu.pipeline_mode<synchronous>, transform_indices = @transform_3, window_bounds = array<i64: 32, 32>}, {pipeline_mode = #tpu.pipeline_mode<synchronous>, transform_indices = @transform_4, window_bounds = array<i64: 1, 32>}, {pipeline_mode = #tpu.pipeline_mode<synchronous>, transform_indices = @transform_5, window_bounds = array<i64: 32, 32>}, {pipeline_mode = #tpu.pipeline_mode<synchronous>, transform_indices = @transform_6, window_bounds = array<i64: 1, 32>}, {transform_indices = @transform_7, window_bounds = array<i64: 16, 32>}, {transform_indices = @transform_8, window_bounds = array<i64: 16, 32>}, {transform_indices = @transform_9, window_bounds = array<i64: 16, 32>}]} {
    %c0 = arith.constant 0 : index
    %c0_0 = arith.constant 0 : index
    %0 = vector.load %arg1[%c0, %c0_0] : memref<16x32xf32, #tpu.memory_space<vmem>>, vector<16x32xf32>
    %1 = arith.truncf %0 : vector<16x32xf32> to vector<16x32xbf16>
    %c0_1 = arith.constant 0 : index
    %c0_2 = arith.constant 0 : index
    %2 = vector.load %arg2[%c0_1, %c0_2] : memref<32x32xbf16, #tpu.memory_space<vmem>>, vector<32x32xbf16>
    %c0_3 = arith.constant 0 : index
    %c0_4 = arith.constant 0 : index
    %3 = vector.load %arg3[%c0_3, %c0_4] : memref<1x32xf32, #tpu.memory_space<vmem>>, vector<1x32xf32>
    %cst = arith.constant dense<0.000000e+00> : vector<16x32xf32>
    %4 = tpu.matmul %1, %2, %cst {dimension_numbers = #tpu.dot_dimension_numbers<[1], [0], [0], [1], [0, 0, 1, 1], [], []>} : vector<16x32xbf16>, vector<32x32xbf16>, vector<16x32xf32> -> vector<16x32xf32>
    %5 = vector.broadcast %3 : vector<1x32xf32> to vector<16x32xf32>
    %6 = arith.addf %4, %5 : vector<16x32xf32>
    %7 = arith.truncf %6 : vector<16x32xf32> to vector<16x32xbf16>
    %c0_5 = arith.constant 0 : index
    %c0_6 = arith.constant 0 : index
    %8 = vector.load %arg8[%c0_5, %c0_6] : memref<16x32xbf16, #tpu.memory_space<vmem>>, vector<16x32xbf16>
    tpu.vector_store %arg8[%c0_5, %c0_6], %7 {strides = array<i32>} : memref<16x32xbf16, #tpu.memory_space<vmem>>, vector<16x32xbf16>,
    %c0_7 = arith.constant 0 : index
    %c0_8 = arith.constant 0 : index
    %9 = vector.load %arg4[%c0_7, %c0_8] : memref<32x32xbf16, #tpu.memory_space<vmem>>, vector<32x32xbf16>
    %c0_9 = arith.constant 0 : index
    %c0_10 = arith.constant 0 : index
    %10 = vector.load %arg5[%c0_9, %c0_10] : memref<1x32xf32, #tpu.memory_space<vmem>>, vector<1x32xf32>
    %cst_11 = arith.constant dense<0.000000e+00> : vector<16x32xf32>
    %11 = tpu.matmul %1, %9, %cst_11 {dimension_numbers = #tpu.dot_dimension_numbers<[1], [0], [0], [1], [0, 0, 1, 1], [], []>} : vector<16x32xbf16>, vector<32x32xbf16>, vector<16x32xf32> -> vector<16x32xf32>
    %12 = vector.broadcast %10 : vector<1x32xf32> to vector<16x32xf32>
    %13 = arith.addf %11, %12 : vector<16x32xf32>
    %14 = arith.truncf %13 : vector<16x32xf32> to vector<16x32xbf16>
    %c0_12 = arith.constant 0 : index
    %c0_13 = arith.constant 0 : index
    %15 = vector.load %arg9[%c0_12, %c0_13] : memref<16x32xbf16, #tpu.memory_space<vmem>>, vector<16x32xbf16>
    tpu.vector_store %arg9[%c0_12, %c0_13], %14 {strides = array<i32>} : memref<16x32xbf16, #tpu.memory_space<vmem>>, vector<16x32xbf16>,
    %c0_14 = arith.constant 0 : index
    %c0_15 = arith.constant 0 : index
    %16 = vector.load %arg6[%c0_14, %c0_15] : memref<32x32xbf16, #tpu.memory_space<vmem>>, vector<32x32xbf16>
    %c0_16 = arith.constant 0 : index
    %c0_17 = arith.constant 0 : index
    %17 = vector.load %arg7[%c0_16, %c0_17] : memref<1x32xf32, #tpu.memory_space<vmem>>, vector<1x32xf32>
    %cst_18 = arith.constant dense<0.000000e+00> : vector<16x32xf32>
    %18 = tpu.matmul %1, %16, %cst_18 {dimension_numbers = #tpu.dot_dimension_numbers<[1], [0], [0], [1], [0, 0, 1, 1], [], []>} : vector<16x32xbf16>, vector<32x32xbf16>, vector<16x32xf32> -> vector<16x32xf32>
    %19 = vector.broadcast %17 : vector<1x32xf32> to vector<16x32xf32>
    %20 = arith.addf %18, %19 : vector<16x32xf32>
    %21 = arith.truncf %20 : vector<16x32xf32> to vector<16x32xbf16>
    %c0_19 = arith.constant 0 : index
    %c0_20 = arith.constant 0 : index
    %22 = vector.load %arg10[%c0_19, %c0_20] : memref<16x32xbf16, #tpu.memory_space<vmem>>, vector<16x32xbf16>
    tpu.vector_store %arg10[%c0_19, %c0_20], %21 {strides = array<i32>} : memref<16x32xbf16, #tpu.memory_space<vmem>>, vector<16x32xbf16>,
    return
  }
  func.func @transform_0(%arg0: i32) -> (i32, i32) {
    %c0_i32 = arith.constant 0 : i32
    %c0_i32_0 = arith.constant 0 : i32
    return %arg0, %c0_i32 : i32, i32
  }
  func.func @transform_1(%arg0: i32) -> (i32, i32) {
    %c0_i32 = arith.constant 0 : i32
    %c0_i32_0 = arith.constant 0 : i32
    %c0_i32_1 = arith.constant 0 : i32
    return %c0_i32, %c0_i32_0 : i32, i32
  }
  func.func @transform_2(%arg0: i32) -> (i32, i32) {
    %c0_i32 = arith.constant 0 : i32
    %c0_i32_0 = arith.constant 0 : i32
    %c0_i32_1 = arith.constant 0 : i32
    return %c0_i32, %c0_i32_0 : i32, i32
  }
  func.func @transform_3(%arg0: i32) -> (i32, i32) {
    %c0_i32 = arith.constant 0 : i32
    %c0_i32_0 = arith.constant 0 : i32
    %c0_i32_1 = arith.constant 0 : i32
    return %c0_i32, %c0_i32_0 : i32, i32
  }
  func.func @transform_4(%arg0: i32) -> (i32, i32) {
    %c0_i32 = arith.constant 0 : i32
    %c0_i32_0 = arith.constant 0 : i32
    %c0_i32_1 = arith.constant 0 : i32
    return %c0_i32, %c0_i32_0 : i32, i32
  }
  func.func @transform_5(%arg0: i32) -> (i32, i32) {
    %c0_i32 = arith.constant 0 : i32
    %c0_i32_0 = arith.constant 0 : i32
    %c0_i32_1 = arith.constant 0 : i32
    return %c0_i32, %c0_i32_0 : i32, i32
  }
  func.func @transform_6(%arg0: i32) -> (i32, i32) {
    %c0_i32 = arith.constant 0 : i32
    %c0_i32_0 = arith.constant 0 : i32
    %c0_i32_1 = arith.constant 0 : i32
    return %c0_i32, %c0_i32_0 : i32, i32
  }
  func.func @transform_7(%arg0: i32) -> (i32, i32) {
    %c0_i32 = arith.constant 0 : i32
    %c0_i32_0 = arith.constant 0 : i32
    return %arg0, %c0_i32 : i32, i32
  }
  func.func @transform_8(%arg0: i32) -> (i32, i32) {
    %c0_i32 = arith.constant 0 : i32
    %c0_i32_0 = arith.constant 0 : i32
    return %arg0, %c0_i32 : i32, i32
  }
  func.func @transform_9(%arg0: i32) -> (i32, i32) {
    %c0_i32 = arith.constant 0 : i32
    %c0_i32_0 = arith.constant 0 : i32
    return %arg0, %c0_i32 : i32, i32
  }
}

module attributes {stable_mosaic.version = 11 : i64} {
  func.func @_proj_kernel(%arg0: i32, %arg1: memref<16x32xf32, #tpu.memory_space<vmem>>, %arg2: memref<32x32xbf16, #tpu.memory_space<vmem>>, %arg3: memref<1x32xf32, #tpu.memory_space<vmem>>, %arg4: memref<16x32xbf16, #tpu.memory_space<vmem>>) attributes {dimension_semantics = [#tpu.dimension_semantics<parallel>], iteration_bounds = array<i64: 1>, scalar_prefetch = 0 : i64, scratch_operands = 0 : i64, tpu.core_type = #tpu.core_type<tc>, window_params = [{transform_indices = @transform_0, window_bounds = array<i64: 16, 32>}, {pipeline_mode = #tpu.pipeline_mode<synchronous>, transform_indices = @transform_1, window_bounds = array<i64: 32, 32>}, {pipeline_mode = #tpu.pipeline_mode<synchronous>, transform_indices = @transform_2, window_bounds = array<i64: 1, 32>}, {transform_indices = @transform_3, window_bounds = array<i64: 16, 32>}]} {
    %c0 = arith.constant 0 : index
    %c0_0 = arith.constant 0 : index
    %0 = vector.load %arg1[%c0, %c0_0] : memref<16x32xf32, #tpu.memory_space<vmem>>, vector<16x32xf32>
    %1 = arith.truncf %0 : vector<16x32xf32> to vector<16x32xbf16>
    %c0_1 = arith.constant 0 : index
    %c0_2 = arith.constant 0 : index
    %2 = vector.load %arg2[%c0_1, %c0_2] : memref<32x32xbf16, #tpu.memory_space<vmem>>, vector<32x32xbf16>
    %c0_3 = arith.constant 0 : index
    %c0_4 = arith.constant 0 : index
    %3 = vector.load %arg3[%c0_3, %c0_4] : memref<1x32xf32, #tpu.memory_space<vmem>>, vector<1x32xf32>
    %cst = arith.constant dense<0.000000e+00> : vector<16x32xf32>
    %4 = tpu.matmul %1, %2, %cst {dimension_numbers = #tpu.dot_dimension_numbers<[1], [0], [0], [1], [0, 0, 1, 1], [], []>} : vector<16x32xbf16>, vector<32x32xbf16>, vector<16x32xf32> -> vector<16x32xf32>
    %5 = vector.broadcast %3 : vector<1x32xf32> to vector<16x32xf32>
    %6 = arith.addf %4, %5 : vector<16x32xf32>
    %7 = arith.truncf %6 : vector<16x32xf32> to vector<16x32xbf16>
    %c0_5 = arith.constant 0 : index
    %c0_6 = arith.constant 0 : index
    %8 = vector.load %arg4[%c0_5, %c0_6] : memref<16x32xbf16, #tpu.memory_space<vmem>>, vector<16x32xbf16>
    tpu.vector_store %arg4[%c0_5, %c0_6], %7 {strides = array<i32>} : memref<16x32xbf16, #tpu.memory_space<vmem>>, vector<16x32xbf16>,
    return
  }
  func.func @transform_0(%arg0: i32) -> (i32, i32) {
    %c0_i32 = arith.constant 0 : i32
    %c0_i32_0 = arith.constant 0 : i32
    return %arg0, %c0_i32 : i32, i32
  }
  func.func @transform_1(%arg0: i32) -> (i32, i32) {
    %c0_i32 = arith.constant 0 : i32
    %c0_i32_0 = arith.constant 0 : i32
    %c0_i32_1 = arith.constant 0 : i32
    return %c0_i32, %c0_i32_0 : i32, i32
  }
  func.func @transform_2(%arg0: i32) -> (i32, i32) {
    %c0_i32 = arith.constant 0 : i32
    %c0_i32_0 = arith.constant 0 : i32
    %c0_i32_1 = arith.constant 0 : i32
    return %c0_i32, %c0_i32_0 : i32, i32
  }
  func.func @transform_3(%arg0: i32) -> (i32, i32) {
    %c0_i32 = arith.constant 0 : i32
    %c0_i32_0 = arith.constant 0 : i32
    return %arg0, %c0_i32 : i32, i32
  }
}

module attributes {stable_mosaic.version = 11 : i64} {
  func.func @_proj_kernel(%arg0: i32, %arg1: memref<32x32xf32, #tpu.memory_space<vmem>>, %arg2: memref<32x32xbf16, #tpu.memory_space<vmem>>, %arg3: memref<1x32xf32, #tpu.memory_space<vmem>>, %arg4: memref<32x32xbf16, #tpu.memory_space<vmem>>, %arg5: memref<1x32xf32, #tpu.memory_space<vmem>>, %arg6: memref<32x32xbf16, #tpu.memory_space<vmem>>, %arg7: memref<32x32xbf16, #tpu.memory_space<vmem>>) attributes {dimension_semantics = [#tpu.dimension_semantics<parallel>], iteration_bounds = array<i64: 1>, scalar_prefetch = 0 : i64, scratch_operands = 0 : i64, tpu.core_type = #tpu.core_type<tc>, window_params = [{transform_indices = @transform_0, window_bounds = array<i64: 32, 32>}, {pipeline_mode = #tpu.pipeline_mode<synchronous>, transform_indices = @transform_1, window_bounds = array<i64: 32, 32>}, {pipeline_mode = #tpu.pipeline_mode<synchronous>, transform_indices = @transform_2, window_bounds = array<i64: 1, 32>}, {pipeline_mode = #tpu.pipeline_mode<synchronous>, transform_indices = @transform_3, window_bounds = array<i64: 32, 32>}, {pipeline_mode = #tpu.pipeline_mode<synchronous>, transform_indices = @transform_4, window_bounds = array<i64: 1, 32>}, {transform_indices = @transform_5, window_bounds = array<i64: 32, 32>}, {transform_indices = @transform_6, window_bounds = array<i64: 32, 32>}]} {
    %c0 = arith.constant 0 : index
    %c0_0 = arith.constant 0 : index
    %0 = vector.load %arg1[%c0, %c0_0] : memref<32x32xf32, #tpu.memory_space<vmem>>, vector<32x32xf32>
    %1 = arith.truncf %0 : vector<32x32xf32> to vector<32x32xbf16>
    %c0_1 = arith.constant 0 : index
    %c0_2 = arith.constant 0 : index
    %2 = vector.load %arg2[%c0_1, %c0_2] : memref<32x32xbf16, #tpu.memory_space<vmem>>, vector<32x32xbf16>
    %c0_3 = arith.constant 0 : index
    %c0_4 = arith.constant 0 : index
    %3 = vector.load %arg3[%c0_3, %c0_4] : memref<1x32xf32, #tpu.memory_space<vmem>>, vector<1x32xf32>
    %cst = arith.constant dense<0.000000e+00> : vector<32x32xf32>
    %4 = tpu.matmul %1, %2, %cst {dimension_numbers = #tpu.dot_dimension_numbers<[1], [0], [0], [1], [0, 0, 1, 1], [], []>} : vector<32x32xbf16>, vector<32x32xbf16>, vector<32x32xf32> -> vector<32x32xf32>
    %5 = vector.broadcast %3 : vector<1x32xf32> to vector<32x32xf32>
    %6 = arith.addf %4, %5 : vector<32x32xf32>
    %7 = arith.truncf %6 : vector<32x32xf32> to vector<32x32xbf16>
    %c0_5 = arith.constant 0 : index
    %c0_6 = arith.constant 0 : index
    %8 = vector.load %arg6[%c0_5, %c0_6] : memref<32x32xbf16, #tpu.memory_space<vmem>>, vector<32x32xbf16>
    tpu.vector_store %arg6[%c0_5, %c0_6], %7 {strides = array<i32>} : memref<32x32xbf16, #tpu.memory_space<vmem>>, vector<32x32xbf16>,
    %c0_7 = arith.constant 0 : index
    %c0_8 = arith.constant 0 : index
    %9 = vector.load %arg4[%c0_7, %c0_8] : memref<32x32xbf16, #tpu.memory_space<vmem>>, vector<32x32xbf16>
    %c0_9 = arith.constant 0 : index
    %c0_10 = arith.constant 0 : index
    %10 = vector.load %arg5[%c0_9, %c0_10] : memref<1x32xf32, #tpu.memory_space<vmem>>, vector<1x32xf32>
    %cst_11 = arith.constant dense<0.000000e+00> : vector<32x32xf32>
    %11 = tpu.matmul %1, %9, %cst_11 {dimension_numbers = #tpu.dot_dimension_numbers<[1], [0], [0], [1], [0, 0, 1, 1], [], []>} : vector<32x32xbf16>, vector<32x32xbf16>, vector<32x32xf32> -> vector<32x32xf32>
    %12 = vector.broadcast %10 : vector<1x32xf32> to vector<32x32xf32>
    %13 = arith.addf %11, %12 : vector<32x32xf32>
    %14 = arith.truncf %13 : vector<32x32xf32> to vector<32x32xbf16>
    %c0_12 = arith.constant 0 : index
    %c0_13 = arith.constant 0 : index
    %15 = vector.load %arg7[%c0_12, %c0_13] : memref<32x32xbf16, #tpu.memory_space<vmem>>, vector<32x32xbf16>
    tpu.vector_store %arg7[%c0_12, %c0_13], %14 {strides = array<i32>} : memref<32x32xbf16, #tpu.memory_space<vmem>>, vector<32x32xbf16>,
    return
  }
  func.func @transform_0(%arg0: i32) -> (i32, i32) {
    %c0_i32 = arith.constant 0 : i32
    %c0_i32_0 = arith.constant 0 : i32
    return %arg0, %c0_i32 : i32, i32
  }
  func.func @transform_1(%arg0: i32) -> (i32, i32) {
    %c0_i32 = arith.constant 0 : i32
    %c0_i32_0 = arith.constant 0 : i32
    %c0_i32_1 = arith.constant 0 : i32
    return %c0_i32, %c0_i32_0 : i32, i32
  }
  func.func @transform_2(%arg0: i32) -> (i32, i32) {
    %c0_i32 = arith.constant 0 : i32
    %c0_i32_0 = arith.constant 0 : i32
    %c0_i32_1 = arith.constant 0 : i32
    return %c0_i32, %c0_i32_0 : i32, i32
  }
  func.func @transform_3(%arg0: i32) -> (i32, i32) {
    %c0_i32 = arith.constant 0 : i32
    %c0_i32_0 = arith.constant 0 : i32
    %c0_i32_1 = arith.constant 0 : i32
    return %c0_i32, %c0_i32_0 : i32, i32
  }
  func.func @transform_4(%arg0: i32) -> (i32, i32) {
    %c0_i32 = arith.constant 0 : i32
    %c0_i32_0 = arith.constant 0 : i32
    %c0_i32_1 = arith.constant 0 : i32
    return %c0_i32, %c0_i32_0 : i32, i32
  }
  func.func @transform_5(%arg0: i32) -> (i32, i32) {
    %c0_i32 = arith.constant 0 : i32
    %c0_i32_0 = arith.constant 0 : i32
    return %arg0, %c0_i32 : i32, i32
  }
  func.func @transform_6(%arg0: i32) -> (i32, i32) {
    %c0_i32 = arith.constant 0 : i32
    %c0_i32_0 = arith.constant 0 : i32
    return %arg0, %c0_i32 : i32, i32
  }
}

module attributes {stable_mosaic.version = 11 : i64} {
  func.func @_attn_kernel(%arg0: i32, %arg1: i32, %arg2: i32, %arg3: memref<1x8x32xbf16, #tpu.memory_space<vmem>>, %arg4: memref<1x16x32xbf16, #tpu.memory_space<vmem>>, %arg5: memref<1x16x32xbf16, #tpu.memory_space<vmem>>, %arg6: memref<1x1x16xf32, #tpu.memory_space<vmem>>, %arg7: memref<1x8x32xbf16, #tpu.memory_space<vmem>>, %arg8: memref<2x8x1xf32, #tpu.memory_space<vmem>>, %arg9: memref<2x8x1xf32, #tpu.memory_space<vmem>>, %arg10: memref<2x8x16xf32, #tpu.memory_space<vmem>>) attributes {dimension_semantics = [#tpu.dimension_semantics<parallel>, #tpu.dimension_semantics<parallel>, #tpu.dimension_semantics<arbitrary>], iteration_bounds = array<i64: 2, 1, 1>, scalar_prefetch = 0 : i64, scratch_operands = 3 : i64, tpu.core_type = #tpu.core_type<tc>, window_params = [{transform_indices = @transform_0, window_bounds = array<i64: 1, 8, 32>}, {transform_indices = @transform_1, window_bounds = array<i64: 1, 16, 32>}, {transform_indices = @transform_2, window_bounds = array<i64: 1, 16, 32>}, {transform_indices = @transform_3, window_bounds = array<i64: 1, 1, 16>}, {transform_indices = @transform_4, window_bounds = array<i64: 1, 8, 32>}]} {
    %c0_i32 = arith.constant 0 : i32
    %0 = arith.cmpi eq, %arg2, %c0_i32 : i32
    %1 = arith.extui %0 : i1 to i32
    %c0_i32_0 = arith.constant 0 : i32
    %2 = arith.cmpi ne, %1, %c0_i32_0 : i32
    scf.if %2 {
      %cst_69 = arith.constant 0xFF800000 : f32
      %100 = vector.broadcast %cst_69 : f32 to vector<2x8x1xf32>
      %c0_70 = arith.constant 0 : index
      %c0_71 = arith.constant 0 : index
      %c0_72 = arith.constant 0 : index
      %101 = vector.load %arg8[%c0_70, %c0_71, %c0_72] : memref<2x8x1xf32, #tpu.memory_space<vmem>>, vector<2x8x1xf32>
      tpu.vector_store %arg8[%c0_70, %c0_71, %c0_72], %100 {strides = array<i32>} : memref<2x8x1xf32, #tpu.memory_space<vmem>>, vector<2x8x1xf32>,
      %cst_73 = arith.constant 0.000000e+00 : f32
      %102 = vector.broadcast %cst_73 : f32 to vector<2x8x1xf32>
      %c0_74 = arith.constant 0 : index
      %c0_75 = arith.constant 0 : index
      %c0_76 = arith.constant 0 : index
      %103 = vector.load %arg9[%c0_74, %c0_75, %c0_76] : memref<2x8x1xf32, #tpu.memory_space<vmem>>, vector<2x8x1xf32>
      tpu.vector_store %arg9[%c0_74, %c0_75, %c0_76], %102 {strides = array<i32>} : memref<2x8x1xf32, #tpu.memory_space<vmem>>, vector<2x8x1xf32>,
      %cst_77 = arith.constant 0.000000e+00 : f32
      %104 = vector.broadcast %cst_77 : f32 to vector<2x8x16xf32>
      %c0_78 = arith.constant 0 : index
      %c0_79 = arith.constant 0 : index
      %c0_80 = arith.constant 0 : index
      %105 = vector.load %arg10[%c0_78, %c0_79, %c0_80] : memref<2x8x16xf32, #tpu.memory_space<vmem>>, vector<2x8x16xf32>
      tpu.vector_store %arg10[%c0_78, %c0_79, %c0_80], %104 {strides = array<i32>} : memref<2x8x16xf32, #tpu.memory_space<vmem>>, vector<2x8x16xf32>,
    } else {
    }
    %c0 = arith.constant 0 : index
    %c0_1 = arith.constant 0 : index
    %c0_2 = arith.constant 0 : index
    %3 = vector.load %arg6[%c0, %c0_1, %c0_2] : memref<1x1x16xf32, #tpu.memory_space<vmem>>, vector<1x1x16xf32>
    %4 = vector.shape_cast %3 : vector<1x1x16xf32> to vector<1x16xf32>
    %cst = arith.constant 0.000000e+00 : f32
    %5 = vector.broadcast %cst : f32 to vector<1x16xf32>
    %6 = arith.cmpf ogt, %4, %5 : vector<1x16xf32>
    %c0_3 = arith.constant 0 : index
    %c0_4 = arith.constant 0 : index
    %c0_5 = arith.constant 0 : index
    %7 = vector.load %arg3[%c0_3, %c0_4, %c0_5] : memref<1x8x32xbf16, #tpu.memory_space<vmem>>, vector<1x8x16xbf16>
    %8 = vector.shape_cast %7 : vector<1x8x16xbf16> to vector<8x16xbf16>
    %c0_6 = arith.constant 0 : index
    %c0_7 = arith.constant 0 : index
    %c0_8 = arith.constant 0 : index
    %9 = vector.load %arg4[%c0_6, %c0_7, %c0_8] : memref<1x16x32xbf16, #tpu.memory_space<vmem>>, vector<1x16x16xbf16>
    %10 = vector.shape_cast %9 : vector<1x16x16xbf16> to vector<16x16xbf16>
    %c0_9 = arith.constant 0 : index
    %c0_10 = arith.constant 0 : index
    %c0_11 = arith.constant 0 : index
    %11 = vector.load %arg5[%c0_9, %c0_10, %c0_11] : memref<1x16x32xbf16, #tpu.memory_space<vmem>>, vector<1x16x16xbf16>
    %12 = vector.shape_cast %11 : vector<1x16x16xbf16> to vector<16x16xbf16>
    %cst_12 = arith.constant dense<0.000000e+00> : vector<8x16xf32>
    %13 = tpu.matmul %8, %10, %cst_12 {dimension_numbers = #tpu.dot_dimension_numbers<[1], [1], [0], [0], [0, 0, 1, 0], [], []>} : vector<8x16xbf16>, vector<16x16xbf16>, vector<8x16xf32> -> vector<8x16xf32>
    %cst_13 = arith.constant 2.500000e-01 : f32
    %14 = vector.broadcast %cst_13 : f32 to vector<8x16xf32>
    %15 = arith.mulf %13, %14 : vector<8x16xf32>
    %cst_14 = arith.constant -1.000000e+09 : f32
    %16 = vector.shape_cast %6 : vector<1x16xi1> to vector<1x16xi1>
    %17 = vector.broadcast %16 : vector<1x16xi1> to vector<8x16xi1>
    %18 = vector.broadcast %cst_14 : f32 to vector<8x16xf32>
    %19 = arith.select %17, %15, %18 : vector<8x16xi1>, vector<8x16xf32>
    %c0_15 = arith.constant 0 : index
    %c0_16 = arith.constant 0 : index
    %c0_17 = arith.constant 0 : index
    %20 = vector.load %arg8[%c0_15, %c0_16, %c0_17] : memref<2x8x1xf32, #tpu.memory_space<vmem>>, vector<1x8x1xf32>
    %21 = vector.shape_cast %20 : vector<1x8x1xf32> to vector<8x1xf32>
    %cst_18 = arith.constant dense<0xFF800000> : vector<8xf32>
    %22 = vector.multi_reduction <maximumf>, %19, %cst_18 [1] : vector<8x16xf32> to vector<8xf32>
    %23 = vector.shape_cast %22 : vector<8xf32> to vector<8x1xf32>
    %24 = arith.maximumf %21, %23 : vector<8x1xf32>
    %25 = arith.subf %21, %24 : vector<8x1xf32>
    %26 = math.exp %25 : vector<8x1xf32>
    %27 = vector.broadcast %24 : vector<8x1xf32> to vector<8x16xf32>
    %28 = arith.subf %19, %27 : vector<8x16xf32>
    %29 = math.exp %28 : vector<8x16xf32>
    %c0_19 = arith.constant 0 : index
    %c0_20 = arith.constant 0 : index
    %c0_21 = arith.constant 0 : index
    %30 = vector.load %arg9[%c0_19, %c0_20, %c0_21] : memref<2x8x1xf32, #tpu.memory_space<vmem>>, vector<1x8x1xf32>
    %31 = vector.shape_cast %30 : vector<1x8x1xf32> to vector<8x1xf32>
    %32 = arith.mulf %26, %31 : vector<8x1xf32>
    %cst_22 = arith.constant dense<0.000000e+00> : vector<8xf32>
    %33 = vector.multi_reduction <add>, %29, %cst_22 [1] : vector<8x16xf32> to vector<8xf32>
    %34 = vector.shape_cast %33 : vector<8xf32> to vector<8x1xf32>
    %35 = arith.addf %32, %34 : vector<8x1xf32>
    %c0_23 = arith.constant 0 : index
    %c0_24 = arith.constant 0 : index
    %c0_25 = arith.constant 0 : index
    %36 = vector.load %arg9[%c0_23, %c0_24, %c0_25] : memref<2x8x1xf32, #tpu.memory_space<vmem>>, vector<1x8x1xf32>
    %37 = vector.shape_cast %36 : vector<1x8x1xf32> to vector<8x1xf32>
    %38 = vector.shape_cast %35 : vector<8x1xf32> to vector<1x8x1xf32>
    tpu.vector_store %arg9[%c0_23, %c0_24, %c0_25], %38 {strides = array<i32>} : memref<2x8x1xf32, #tpu.memory_space<vmem>>, vector<1x8x1xf32>,
    %c0_26 = arith.constant 0 : index
    %c0_27 = arith.constant 0 : index
    %c0_28 = arith.constant 0 : index
    %39 = vector.load %arg10[%c0_26, %c0_27, %c0_28] : memref<2x8x16xf32, #tpu.memory_space<vmem>>, vector<1x8x16xf32>
    %40 = vector.shape_cast %39 : vector<1x8x16xf32> to vector<8x16xf32>
    %41 = vector.broadcast %26 : vector<8x1xf32> to vector<8x16xf32>
    %42 = arith.mulf %41, %40 : vector<8x16xf32>
    %43 = arith.truncf %29 : vector<8x16xf32> to vector<8x16xbf16>
    %cst_29 = arith.constant dense<0.000000e+00> : vector<8x16xf32>
    %44 = tpu.matmul %43, %12, %cst_29 {dimension_numbers = #tpu.dot_dimension_numbers<[1], [0], [0], [1], [0, 0, 1, 1], [], []>} : vector<8x16xbf16>, vector<16x16xbf16>, vector<8x16xf32> -> vector<8x16xf32>
    %45 = arith.addf %42, %44 : vector<8x16xf32>
    %c0_30 = arith.constant 0 : index
    %c0_31 = arith.constant 0 : index
    %c0_32 = arith.constant 0 : index
    %46 = vector.load %arg10[%c0_30, %c0_31, %c0_32] : memref<2x8x16xf32, #tpu.memory_space<vmem>>, vector<1x8x16xf32>
    %47 = vector.shape_cast %46 : vector<1x8x16xf32> to vector<8x16xf32>
    %48 = vector.shape_cast %45 : vector<8x16xf32> to vector<1x8x16xf32>
    tpu.vector_store %arg10[%c0_30, %c0_31, %c0_32], %48 {strides = array<i32>} : memref<2x8x16xf32, #tpu.memory_space<vmem>>, vector<1x8x16xf32>,
    %c0_33 = arith.constant 0 : index
    %c0_34 = arith.constant 0 : index
    %c0_35 = arith.constant 0 : index
    %49 = vector.load %arg8[%c0_33, %c0_34, %c0_35] : memref<2x8x1xf32, #tpu.memory_space<vmem>>, vector<1x8x1xf32>
    %50 = vector.shape_cast %49 : vector<1x8x1xf32> to vector<8x1xf32>
    %51 = vector.shape_cast %24 : vector<8x1xf32> to vector<1x8x1xf32>
    tpu.vector_store %arg8[%c0_33, %c0_34, %c0_35], %51 {strides = array<i32>} : memref<2x8x1xf32, #tpu.memory_space<vmem>>, vector<1x8x1xf32>,
    %c0_36 = arith.constant 0 : index
    %c0_37 = arith.constant 0 : index
    %c16 = arith.constant 16 : index
    %52 = vector.load %arg3[%c0_36, %c0_37, %c16] : memref<1x8x32xbf16, #tpu.memory_space<vmem>>, vector<1x8x16xbf16>
    %53 = vector.shape_cast %52 : vector<1x8x16xbf16> to vector<8x16xbf16>
    %c0_38 = arith.constant 0 : index
    %c0_39 = arith.constant 0 : index
    %c16_40 = arith.constant 16 : index
    %54 = vector.load %arg4[%c0_38, %c0_39, %c16_40] : memref<1x16x32xbf16, #tpu.memory_space<vmem>>, vector<1x16x16xbf16>
    %55 = vector.shape_cast %54 : vector<1x16x16xbf16> to vector<16x16xbf16>
    %c0_41 = arith.constant 0 : index
    %c0_42 = arith.constant 0 : index
    %c16_43 = arith.constant 16 : index
    %56 = vector.load %arg5[%c0_41, %c0_42, %c16_43] : memref<1x16x32xbf16, #tpu.memory_space<vmem>>, vector<1x16x16xbf16>
    %57 = vector.shape_cast %56 : vector<1x16x16xbf16> to vector<16x16xbf16>
    %cst_44 = arith.constant dense<0.000000e+00> : vector<8x16xf32>
    %58 = tpu.matmul %53, %55, %cst_44 {dimension_numbers = #tpu.dot_dimension_numbers<[1], [1], [0], [0], [0, 0, 1, 0], [], []>} : vector<8x16xbf16>, vector<16x16xbf16>, vector<8x16xf32> -> vector<8x16xf32>
    %cst_45 = arith.constant 2.500000e-01 : f32
    %59 = vector.broadcast %cst_45 : f32 to vector<8x16xf32>
    %60 = arith.mulf %58, %59 : vector<8x16xf32>
    %cst_46 = arith.constant -1.000000e+09 : f32
    %61 = vector.shape_cast %6 : vector<1x16xi1> to vector<1x16xi1>
    %62 = vector.broadcast %61 : vector<1x16xi1> to vector<8x16xi1>
    %63 = vector.broadcast %cst_46 : f32 to vector<8x16xf32>
    %64 = arith.select %62, %60, %63 : vector<8x16xi1>, vector<8x16xf32>
    %c1 = arith.constant 1 : index
    %c0_47 = arith.constant 0 : index
    %c0_48 = arith.constant 0 : index
    %65 = vector.load %arg8[%c1, %c0_47, %c0_48] : memref<2x8x1xf32, #tpu.memory_space<vmem>>, vector<1x8x1xf32>
    %66 = vector.shape_cast %65 : vector<1x8x1xf32> to vector<8x1xf32>
    %cst_49 = arith.constant dense<0xFF800000> : vector<8xf32>
    %67 = vector.multi_reduction <maximumf>, %64, %cst_49 [1] : vector<8x16xf32> to vector<8xf32>
    %68 = vector.shape_cast %67 : vector<8xf32> to vector<8x1xf32>
    %69 = arith.maximumf %66, %68 : vector<8x1xf32>
    %70 = arith.subf %66, %69 : vector<8x1xf32>
    %71 = math.exp %70 : vector<8x1xf32>
    %72 = vector.broadcast %69 : vector<8x1xf32> to vector<8x16xf32>
    %73 = arith.subf %64, %72 : vector<8x16xf32>
    %74 = math.exp %73 : vector<8x16xf32>
    %c1_50 = arith.constant 1 : index
    %c0_51 = arith.constant 0 : index
    %c0_52 = arith.constant 0 : index
    %75 = vector.load %arg9[%c1_50, %c0_51, %c0_52] : memref<2x8x1xf32, #tpu.memory_space<vmem>>, vector<1x8x1xf32>
    %76 = vector.shape_cast %75 : vector<1x8x1xf32> to vector<8x1xf32>
    %77 = arith.mulf %71, %76 : vector<8x1xf32>
    %cst_53 = arith.constant dense<0.000000e+00> : vector<8xf32>
    %78 = vector.multi_reduction <add>, %74, %cst_53 [1] : vector<8x16xf32> to vector<8xf32>
    %79 = vector.shape_cast %78 : vector<8xf32> to vector<8x1xf32>
    %80 = arith.addf %77, %79 : vector<8x1xf32>
    %c1_54 = arith.constant 1 : index
    %c0_55 = arith.constant 0 : index
    %c0_56 = arith.constant 0 : index
    %81 = vector.load %arg9[%c1_54, %c0_55, %c0_56] : memref<2x8x1xf32, #tpu.memory_space<vmem>>, vector<1x8x1xf32>
    %82 = vector.shape_cast %81 : vector<1x8x1xf32> to vector<8x1xf32>
    %83 = vector.shape_cast %80 : vector<8x1xf32> to vector<1x8x1xf32>
    tpu.vector_store %arg9[%c1_54, %c0_55, %c0_56], %83 {strides = array<i32>} : memref<2x8x1xf32, #tpu.memory_space<vmem>>, vector<1x8x1xf32>,
    %c1_57 = arith.constant 1 : index
    %c0_58 = arith.constant 0 : index
    %c0_59 = arith.constant 0 : index
    %84 = vector.load %arg10[%c1_57, %c0_58, %c0_59] : memref<2x8x16xf32, #tpu.memory_space<vmem>>, vector<1x8x16xf32>
    %85 = vector.shape_cast %84 : vector<1x8x16xf32> to vector<8x16xf32>
    %86 = vector.broadcast %71 : vector<8x1xf32> to vector<8x16xf32>
    %87 = arith.mulf %86, %85 : vector<8x16xf32>
    %88 = arith.truncf %74 : vector<8x16xf32> to vector<8x16xbf16>
    %cst_60 = arith.constant dense<0.000000e+00> : vector<8x16xf32>
    %89 = tpu.matmul %88, %57, %cst_60 {dimension_numbers = #tpu.dot_dimension_numbers<[1], [0], [0], [1], [0, 0, 1, 1], [], []>} : vector<8x16xbf16>, vector<16x16xbf16>, vector<8x16xf32> -> vector<8x16xf32>
    %90 = arith.addf %87, %89 : vector<8x16xf32>
    %c1_61 = arith.constant 1 : index
    %c0_62 = arith.constant 0 : index
    %c0_63 = arith.constant 0 : index
    %91 = vector.load %arg10[%c1_61, %c0_62, %c0_63] : memref<2x8x16xf32, #tpu.memory_space<vmem>>, vector<1x8x16xf32>
    %92 = vector.shape_cast %91 : vector<1x8x16xf32> to vector<8x16xf32>
    %93 = vector.shape_cast %90 : vector<8x16xf32> to vector<1x8x16xf32>
    tpu.vector_store %arg10[%c1_61, %c0_62, %c0_63], %93 {strides = array<i32>} : memref<2x8x16xf32, #tpu.memory_space<vmem>>, vector<1x8x16xf32>,
    %c1_64 = arith.constant 1 : index
    %c0_65 = arith.constant 0 : index
    %c0_66 = arith.constant 0 : index
    %94 = vector.load %arg8[%c1_64, %c0_65, %c0_66] : memref<2x8x1xf32, #tpu.memory_space<vmem>>, vector<1x8x1xf32>
    %95 = vector.shape_cast %94 : vector<1x8x1xf32> to vector<8x1xf32>
    %96 = vector.shape_cast %69 : vector<8x1xf32> to vector<1x8x1xf32>
    tpu.vector_store %arg8[%c1_64, %c0_65, %c0_66], %96 {strides = array<i32>} : memref<2x8x1xf32, #tpu.memory_space<vmem>>, vector<1x8x1xf32>,
    %c0_i32_67 = arith.constant 0 : i32
    %97 = arith.cmpi eq, %arg2, %c0_i32_67 : i32
    %98 = arith.extui %97 : i1 to i32
    %c0_i32_68 = arith.constant 0 : i32
    %99 = arith.cmpi ne, %98, %c0_i32_68 : i32
    scf.if %99 {
      %c0_69 = arith.constant 0 : index
      %c0_70 = arith.constant 0 : index
      %c0_71 = arith.constant 0 : index
      %100 = vector.load %arg9[%c0_69, %c0_70, %c0_71] : memref<2x8x1xf32, #tpu.memory_space<vmem>>, vector<1x8x1xf32>
      %101 = vector.shape_cast %100 : vector<1x8x1xf32> to vector<8x1xf32>
      %102 = tpu.reciprocal %101 {approx = true} : vector<8x1xf32> -> vector<8x1xf32>
      %c0_72 = arith.constant 0 : index
      %c0_73 = arith.constant 0 : index
      %c0_74 = arith.constant 0 : index
      %103 = vector.load %arg10[%c0_72, %c0_73, %c0_74] : memref<2x8x16xf32, #tpu.memory_space<vmem>>, vector<1x8x16xf32>
      %104 = vector.shape_cast %103 : vector<1x8x16xf32> to vector<8x16xf32>
      %105 = vector.broadcast %102 : vector<8x1xf32> to vector<8x16xf32>
      %106 = arith.mulf %104, %105 : vector<8x16xf32>
      %107 = arith.truncf %106 : vector<8x16xf32> to vector<8x16xbf16>
      %c0_75 = arith.constant 0 : index
      %c0_76 = arith.constant 0 : index
      %c0_77 = arith.constant 0 : index
      %108 = vector.load %arg7[%c0_75, %c0_76, %c0_77] : memref<1x8x32xbf16, #tpu.memory_space<vmem>>, vector<1x8x16xbf16>
      %109 = vector.shape_cast %108 : vector<1x8x16xbf16> to vector<8x16xbf16>
      %110 = vector.shape_cast %107 : vector<8x16xbf16> to vector<1x8x16xbf16>
      tpu.vector_store %arg7[%c0_75, %c0_76, %c0_77], %110 {strides = array<i32>} : memref<1x8x32xbf16, #tpu.memory_space<vmem>>, vector<1x8x16xbf16>,
      %c1_78 = arith.constant 1 : index
      %c0_79 = arith.constant 0 : index
      %c0_80 = arith.constant 0 : index
      %111 = vector.load %arg9[%c1_78, %c0_79, %c0_80] : memref<2x8x1xf32, #tpu.memory_space<vmem>>, vector<1x8x1xf32>
      %112 = vector.shape_cast %111 : vector<1x8x1xf32> to vector<8x1xf32>
      %113 = tpu.reciprocal %112 {approx = true} : vector<8x1xf32> -> vector<8x1xf32>
      %c1_81 = arith.constant 1 : index
      %c0_82 = arith.constant 0 : index
      %c0_83 = arith.constant 0 : index
      %114 = vector.load %arg10[%c1_81, %c0_82, %c0_83] : memref<2x8x16xf32, #tpu.memory_space<vmem>>, vector<1x8x16xf32>
      %115 = vector.shape_cast %114 : vector<1x8x16xf32> to vector<8x16xf32>
      %116 = vector.broadcast %113 : vector<8x1xf32> to vector<8x16xf32>
      %117 = arith.mulf %115, %116 : vector<8x16xf32>
      %118 = arith.truncf %117 : vector<8x16xf32> to vector<8x16xbf16>
      %c0_84 = arith.constant 0 : index
      %c0_85 = arith.constant 0 : index
      %c16_86 = arith.constant 16 : index
      %119 = vector.load %arg7[%c0_84, %c0_85, %c16_86] : memref<1x8x32xbf16, #tpu.memory_space<vmem>>, vector<1x8x16xbf16>
      %120 = vector.shape_cast %119 : vector<1x8x16xbf16> to vector<8x16xbf16>
      %121 = vector.shape_cast %118 : vector<8x16xbf16> to vector<1x8x16xbf16>
      tpu.vector_store %arg7[%c0_84, %c0_85, %c16_86], %121 {strides = array<i32>} : memref<1x8x32xbf16, #tpu.memory_space<vmem>>, vector<1x8x16xbf16>,
    } else {
    }
    return
  }
  func.func @transform_0(%arg0: i32, %arg1: i32, %arg2: i32) -> (i32, i32, i32) {
    %c0_i32 = arith.constant 0 : i32
    %c0_i32_0 = arith.constant 0 : i32
    return %arg0, %arg1, %c0_i32 : i32, i32, i32
  }
  func.func @transform_1(%arg0: i32, %arg1: i32, %arg2: i32) -> (i32, i32, i32) {
    %c0_i32 = arith.constant 0 : i32
    %c0_i32_0 = arith.constant 0 : i32
    return %arg0, %arg2, %c0_i32 : i32, i32, i32
  }
  func.func @transform_2(%arg0: i32, %arg1: i32, %arg2: i32) -> (i32, i32, i32) {
    %c0_i32 = arith.constant 0 : i32
    %c0_i32_0 = arith.constant 0 : i32
    return %arg0, %arg2, %c0_i32 : i32, i32, i32
  }
  func.func @transform_3(%arg0: i32, %arg1: i32, %arg2: i32) -> (i32, i32, i32) {
    %c0_i32 = arith.constant 0 : i32
    %c0_i32_0 = arith.constant 0 : i32
    return %arg0, %c0_i32, %arg2 : i32, i32, i32
  }
  func.func @transform_4(%arg0: i32, %arg1: i32, %arg2: i32) -> (i32, i32, i32) {
    %c0_i32 = arith.constant 0 : i32
    %c0_i32_0 = arith.constant 0 : i32
    return %arg0, %arg1, %c0_i32 : i32, i32, i32
  }
}

module attributes {stable_mosaic.version = 11 : i64} {
  func.func @_ffn_add_ln_kernel(%arg0: i32, %arg1: memref<16x32xf32, #tpu.memory_space<vmem>>, %arg2: memref<32x64xbf16, #tpu.memory_space<vmem>>, %arg3: memref<1x64xf32, #tpu.memory_space<vmem>>, %arg4: memref<64x32xbf16, #tpu.memory_space<vmem>>, %arg5: memref<1x32xf32, #tpu.memory_space<vmem>>, %arg6: memref<1x32xf32, #tpu.memory_space<vmem>>, %arg7: memref<1x32xf32, #tpu.memory_space<vmem>>, %arg8: memref<16x32xf32, #tpu.memory_space<vmem>>) attributes {dimension_semantics = [#tpu.dimension_semantics<parallel>], iteration_bounds = array<i64: 1>, scalar_prefetch = 0 : i64, scratch_operands = 0 : i64, tpu.core_type = #tpu.core_type<tc>, window_params = [{transform_indices = @transform_0, window_bounds = array<i64: 16, 32>}, {pipeline_mode = #tpu.pipeline_mode<synchronous>, transform_indices = @transform_1, window_bounds = array<i64: 32, 64>}, {pipeline_mode = #tpu.pipeline_mode<synchronous>, transform_indices = @transform_2, window_bounds = array<i64: 1, 64>}, {pipeline_mode = #tpu.pipeline_mode<synchronous>, transform_indices = @transform_3, window_bounds = array<i64: 64, 32>}, {pipeline_mode = #tpu.pipeline_mode<synchronous>, transform_indices = @transform_4, window_bounds = array<i64: 1, 32>}, {pipeline_mode = #tpu.pipeline_mode<synchronous>, transform_indices = @transform_5, window_bounds = array<i64: 1, 32>}, {pipeline_mode = #tpu.pipeline_mode<synchronous>, transform_indices = @transform_6, window_bounds = array<i64: 1, 32>}, {transform_indices = @transform_7, window_bounds = array<i64: 16, 32>}]} {
    %c0 = arith.constant 0 : index
    %c0_0 = arith.constant 0 : index
    %0 = vector.load %arg1[%c0, %c0_0] : memref<16x32xf32, #tpu.memory_space<vmem>>, vector<16x32xf32>
    %1 = arith.truncf %0 : vector<16x32xf32> to vector<16x32xbf16>
    %c0_1 = arith.constant 0 : index
    %c0_2 = arith.constant 0 : index
    %2 = vector.load %arg2[%c0_1, %c0_2] : memref<32x64xbf16, #tpu.memory_space<vmem>>, vector<32x64xbf16>
    %cst = arith.constant dense<0.000000e+00> : vector<16x64xf32>
    %3 = tpu.matmul %1, %2, %cst {dimension_numbers = #tpu.dot_dimension_numbers<[1], [0], [0], [1], [0, 0, 1, 1], [], []>} : vector<16x32xbf16>, vector<32x64xbf16>, vector<16x64xf32> -> vector<16x64xf32>
    %c0_3 = arith.constant 0 : index
    %c0_4 = arith.constant 0 : index
    %4 = vector.load %arg3[%c0_3, %c0_4] : memref<1x64xf32, #tpu.memory_space<vmem>>, vector<1x64xf32>
    %5 = vector.broadcast %4 : vector<1x64xf32> to vector<16x64xf32>
    %6 = arith.addf %3, %5 : vector<16x64xf32>
    %cst_5 = arith.constant 0.000000e+00 : f32
    %7 = vector.broadcast %cst_5 : f32 to vector<16x64xf32>
    %8 = arith.maximumf %6, %7 : vector<16x64xf32>
    %9 = arith.truncf %8 : vector<16x64xf32> to vector<16x64xbf16>
    %c0_6 = arith.constant 0 : index
    %c0_7 = arith.constant 0 : index
    %10 = vector.load %arg4[%c0_6, %c0_7] : memref<64x32xbf16, #tpu.memory_space<vmem>>, vector<64x32xbf16>
    %cst_8 = arith.constant dense<0.000000e+00> : vector<16x32xf32>
    %11 = tpu.matmul %9, %10, %cst_8 {dimension_numbers = #tpu.dot_dimension_numbers<[1], [0], [0], [1], [0, 0, 1, 1], [], []>} : vector<16x64xbf16>, vector<64x32xbf16>, vector<16x32xf32> -> vector<16x32xf32>
    %c0_9 = arith.constant 0 : index
    %c0_10 = arith.constant 0 : index
    %12 = vector.load %arg5[%c0_9, %c0_10] : memref<1x32xf32, #tpu.memory_space<vmem>>, vector<1x32xf32>
    %13 = vector.broadcast %12 : vector<1x32xf32> to vector<16x32xf32>
    %14 = arith.addf %11, %13 : vector<16x32xf32>
    %15 = arith.addf %14, %0 : vector<16x32xf32>
    %cst_11 = arith.constant dense<0.000000e+00> : vector<16xf32>
    %16 = vector.multi_reduction <add>, %15, %cst_11 [1] : vector<16x32xf32> to vector<16xf32>
    %17 = vector.shape_cast %16 : vector<16xf32> to vector<16x1xf32>
    %cst_12 = arith.constant 3.200000e+01 : f32
    %18 = vector.broadcast %cst_12 : f32 to vector<16x1xf32>
    %19 = arith.divf %17, %18 : vector<16x1xf32>
    %20 = vector.broadcast %19 : vector<16x1xf32> to vector<16x32xf32>
    %21 = arith.subf %15, %20 : vector<16x32xf32>
    %22 = arith.mulf %21, %21 : vector<16x32xf32>
    %cst_13 = arith.constant dense<0.000000e+00> : vector<16xf32>
    %23 = vector.multi_reduction <add>, %22, %cst_13 [1] : vector<16x32xf32> to vector<16xf32>
    %24 = vector.shape_cast %23 : vector<16xf32> to vector<16x1xf32>
    %cst_14 = arith.constant 3.200000e+01 : f32
    %25 = vector.broadcast %cst_14 : f32 to vector<16x1xf32>
    %26 = arith.divf %24, %25 : vector<16x1xf32>
    %cst_15 = arith.constant 9.99999974E-6 : f32
    %27 = vector.broadcast %cst_15 : f32 to vector<16x1xf32>
    %28 = arith.addf %26, %27 : vector<16x1xf32>
    %29 = math.rsqrt %28 : vector<16x1xf32>
    %30 = vector.broadcast %29 : vector<16x1xf32> to vector<16x32xf32>
    %31 = arith.mulf %21, %30 : vector<16x32xf32>
    %c0_16 = arith.constant 0 : index
    %c0_17 = arith.constant 0 : index
    %32 = vector.load %arg6[%c0_16, %c0_17] : memref<1x32xf32, #tpu.memory_space<vmem>>, vector<1x32xf32>
    %33 = vector.broadcast %32 : vector<1x32xf32> to vector<16x32xf32>
    %34 = arith.mulf %31, %33 : vector<16x32xf32>
    %c0_18 = arith.constant 0 : index
    %c0_19 = arith.constant 0 : index
    %35 = vector.load %arg7[%c0_18, %c0_19] : memref<1x32xf32, #tpu.memory_space<vmem>>, vector<1x32xf32>
    %36 = vector.broadcast %35 : vector<1x32xf32> to vector<16x32xf32>
    %37 = arith.addf %34, %36 : vector<16x32xf32>
    %c0_20 = arith.constant 0 : index
    %c0_21 = arith.constant 0 : index
    %38 = vector.load %arg8[%c0_20, %c0_21] : memref<16x32xf32, #tpu.memory_space<vmem>>, vector<16x32xf32>
    tpu.vector_store %arg8[%c0_20, %c0_21], %37 {strides = array<i32>} : memref<16x32xf32, #tpu.memory_space<vmem>>, vector<16x32xf32>,
    return
  }
  func.func @transform_0(%arg0: i32) -> (i32, i32) {
    %c0_i32 = arith.constant 0 : i32
    %c0_i32_0 = arith.constant 0 : i32
    return %arg0, %c0_i32 : i32, i32
  }
  func.func @transform_1(%arg0: i32) -> (i32, i32) {
    %c0_i32 = arith.constant 0 : i32
    %c0_i32_0 = arith.constant 0 : i32
    %c0_i32_1 = arith.constant 0 : i32
    return %c0_i32, %c0_i32_0 : i32, i32
  }
  func.func @transform_2(%arg0: i32) -> (i32, i32) {
    %c0_i32 = arith.constant 0 : i32
    %c0_i32_0 = arith.constant 0 : i32
    %c0_i32_1 = arith.constant 0 : i32
    return %c0_i32, %c0_i32_0 : i32, i32
  }
  func.func @transform_3(%arg0: i32) -> (i32, i32) {
    %c0_i32 = arith.constant 0 : i32
    %c0_i32_0 = arith.constant 0 : i32
    %c0_i32_1 = arith.constant 0 : i32
    return %c0_i32, %c0_i32_0 : i32, i32
  }
  func.func @transform_4(%arg0: i32) -> (i32, i32) {
    %c0_i32 = arith.constant 0 : i32
    %c0_i32_0 = arith.constant 0 : i32
    %c0_i32_1 = arith.constant 0 : i32
    return %c0_i32, %c0_i32_0 : i32, i32
  }
  func.func @transform_5(%arg0: i32) -> (i32, i32) {
    %c0_i32 = arith.constant 0 : i32
    %c0_i32_0 = arith.constant 0 : i32
    %c0_i32_1 = arith.constant 0 : i32
    return %c0_i32, %c0_i32_0 : i32, i32
  }
  func.func @transform_6(%arg0: i32) -> (i32, i32) {
    %c0_i32 = arith.constant 0 : i32
    %c0_i32_0 = arith.constant 0 : i32
    %c0_i32_1 = arith.constant 0 : i32
    return %c0_i32, %c0_i32_0 : i32, i32
  }
  func.func @transform_7(%arg0: i32) -> (i32, i32) {
    %c0_i32 = arith.constant 0 : i32
    %c0_i32_0 = arith.constant 0 : i32
    return %arg0, %c0_i32 : i32, i32
  }
}

</mosaic_0001>

<llo_original>
// kernel: decoder_layer.10
$region0: #{decoder_layer.10}
  #allocation0 [shape = 'u32[]', space=smem, size = 0x4, offset = 0x4, fixed_abs, tag = 'smem constant byte address 0x4 - core index']
  #allocation1 [shape = 'u32[144,128]{1,0:T(1,128)}', space=vmem, size = 0x12000, scoped, tag = 'internal scratch']
  %s0 = inlined_call_operand.vmem [shape: bf16[16,32], index: 0, kind: input, shape index: {}]
  %s1 = inlined_call_operand.vmem [shape: bf16[32,32], index: 1, kind: input, shape index: {}]
  %s2 = inlined_call_operand.vmem [shape: f32[1,32], index: 2, kind: input, shape index: {}]
  %s3 = inlined_call_operand.vmem [shape: f32[16,32], index: 3, kind: input, shape index: {}]
  %s4 = inlined_call_operand.vmem [shape: f32[1,32], index: 4, kind: input, shape index: {}]
  %s5 = inlined_call_operand.vmem [shape: f32[1,32], index: 5, kind: input, shape index: {}]
  %s6 = inlined_call_operand.vmem [shape: f32[16,32], index: 6, kind: output, shape index: {}]
  %s7 = sld [smem:[#allocation0]]
  $region34: #{decoder_layer.10} parent=0
    _
  %s9 = ssub.s32 1, %s7
  %s10 = scalar_select 0, %s9, %s7
  // Predicated region
  $region2: #{decoder_layer.10} parent=0 // pred_check
    _
  $region3: #{decoder_layer.10} parent=0 // pred_check_branch
    %12 = sbr.rel (0) target = $region5
  $region4: #{decoder_layer.10} parent=0 // pred_region
    _
  $region5: #{decoder_layer.10} parent=0 // pred_fallthru
    _
  // Predicated region
  $region6: #{decoder_layer.10} parent=0 // pred_check
    _
  $region7: #{decoder_layer.10} parent=0 // pred_check_branch
    %14 = sbr.rel (0) target = $region9
  $region8: #{decoder_layer.10} parent=0 // pred_region
    _
  $region9: #{decoder_layer.10} parent=0 // pred_fallthru
    _
  // Predicated region
  $region10: #{decoder_layer.10} parent=0 // pred_check
    _
  $region11: #{decoder_layer.10} parent=0 // pred_check_branch
    %16 = sbr.rel (0) target = $region13
  $region12: #{decoder_layer.10} parent=0 // pred_region
    _
  $region13: #{decoder_layer.10} parent=0 // pred_fallthru
    _
  // Predicated region
  $region14: #{decoder_layer.10} parent=0 // pred_check
    _
  $region15: #{decoder_layer.10} parent=0 // pred_check_branch
    %18 = sbr.rel (0) target = $region17
  $region16: #{decoder_layer.10} parent=0 // pred_region
    _
  $region17: #{decoder_layer.10} parent=0 // pred_fallthru
    _
  // Predicated region
  $region18: #{decoder_layer.10} parent=0 // pred_check
    _
  $region19: #{decoder_layer.10} parent=0 // pred_check_branch
    %20 = sbr.rel (0) target = $region21
  $region20: #{decoder_layer.10} parent=0 // pred_region
    _
  $region21: #{decoder_layer.10} parent=0 // pred_fallthru
    _
  // Predicated region
  $region22: #{decoder_layer.10} parent=0 // pred_check
    _
  $region23: #{decoder_layer.10} parent=0 // pred_check_branch
    %22 = sbr.rel (0) target = $region25
  $region24: #{decoder_layer.10} parent=0 // pred_region
    _
  $region25: #{decoder_layer.10} parent=0 // pred_fallthru
    _
  %v24 = vld [vmem:[%s0] sm:$0xf]
  %v25 = vld [vmem:[%s0 + $0x4] sm:$0xf]
  %v26 = vld [vmem:[%s1] sm:$0xf]
  %v27 = vld [vmem:[%s1 + $0x4] sm:$0xf]
  %v28 = vld [vmem:[%s1 + $0x8] sm:$0xf]
  %v29 = vld [vmem:[%s1 + $0xc] sm:$0xf]
  %v30 = vld [vmem:[%s2] sm:$0x1]
  %v32 = vlaneseq
  %v33 = vshrl.u32 %v32, 7
  %v34 = vsub.s32 0, %v33
  %v35 = vrot.slane %v30, %v34
  %v39 = vunpack.c.l.b16 %v24
  %v40 = vunpack.c.l.b16 %v25
  %v41 = vpack.c.b16 %v40, %v39
  %v46 = vunpack.c.l.b16 %v26
  %v47 = vunpack.c.l.b16 %v27
  %v48 = vunpack.c.l.b16 %v28
  %v49 = vunpack.c.l.b16 %v29
  %v50 = vpack.c.b16 %v47, %v46
  %v51 = vpack.c.b16 %v49, %v48
  %vm54 = vcmask 261120
  %v56 = vsel %vm54, %v41, 0
  %58 = vmatprep.subr.bf16.mxu0 0
  %59 = vmatpush1.bf16.msra.mxu0 0
  %60 = vmatprep.subr.bf16.mxu0 0
  %61 = vmatpush1.bf16.msra.mxu0 0
  %62 = vmatprep.subr.bf16.mxu0 0
  %63 = vmatpush1.bf16.msra.mxu0 0
  %64 = vmatprep.subr.bf16.mxu0 0
  %65 = vmatpush1.bf16.msra.mxu0 0
  %66 = vmatprep.subr.bf16.mxu0 0
  %67 = vmatpush1.bf16.msra.mxu0 0
  %68 = vmatprep.subr.bf16.mxu0 0
  %69 = vmatpush1.bf16.msra.mxu0 0
  %70 = vmatprep.subr.bf16.mxu0 0
  %71 = vmatpush1.bf16.msra.mxu0 %v51
  %72 = vmatprep.subr.bf16.mxu0 0
  %73 = vmatpush1.bf16.msra.mxu0 %v50
  %74 = vmatprep.subr.bf16.mxu0 0
  %75 = vmatpush2.bf16.msra.mxu0 0
  %76 = vmatprep.subr.bf16.mxu0 0
  %77 = vmatpush2.bf16.msra.mxu0 0
  %78 = vmatprep.subr.bf16.mxu0 0
  %79 = vmatpush2.bf16.msra.mxu0 0
  %80 = vmatprep.subr.bf16.mxu0 0
  %81 = vmatpush2.bf16.msra.mxu0 0
  %82 = vmatprep.subr.bf16.mxu0 0
  %83 = vmatpush2.bf16.msra.mxu0 0
  %84 = vmatprep.subr.bf16.mxu0 0
  %85 = vmatpush2.bf16.msra.mxu0 0
  %86 = vmatprep.subr.bf16.mxu0 0
  %87 = vmatpush2.bf16.msra.mxu0 0
  %88 = vmatprep.subr.bf16.mxu0 0
  %89 = vmatpush2.bf16.msra.mxu0 0
  %90 = vmatprep.mubr.bf16.mxu0 0
  %91 = vmatmul.mubr.bf16.gmra.mxu0 %v56
  %v92 = vpop.f32.mrf.mxu0
  %v93 = vadd.f32 %v35, %v92
  %v94 = vpop.f32.mrf.mxu0
  %v95 = vpop.f32.mrf.mxu0
  %v96 = vadd.f32 %v35, %v95
  %v97 = vpop.f32.mrf.mxu0
  %98 = vdwg.mxu0
  %v99 = vld [vmem:[%s3] sm:$0xff]
  %v100 = vld [vmem:[%s3 + $0x8] sm:$0xff]
  %v101 = vadd.f32 %v93, %v99
  %v102 = vadd.f32 %v96, %v100
  %v103 = vsel %vm54, %v101, 0.0
  %104 = vadd.xlane.f32.xlu0 %v103
  %v105 = vpop.xlane.xlu0 %104
  %v106 = vsel %vm54, %v102, 0.0
  %107 = vadd.xlane.f32.xlu0 %v106
  %v108 = vpop.xlane.xlu0 %107
  %v109 = vrcp.pop 32.0
  %v110 = vmul.f32 %v105, %v109
  %v111 = vmul.f32 %v108, %v109
  %v112 = vsub.f32 %v101, %v110
  %v113 = vsub.f32 %v102, %v111
  %v114 = vmul.f32 %v112, %v112
  %v115 = vmul.f32 %v113, %v113
  %v116 = vsel %vm54, %v114, 0.0
  %117 = vadd.xlane.f32.xlu0 %v116
  %v118 = vpop.xlane.xlu0 %117
  %v119 = vsel %vm54, %v115, 0.0
  %120 = vadd.xlane.f32.xlu0 %v119
  %v121 = vpop.xlane.xlu0 %120
  %v122 = vmul.f32 %v118, %v109
  %v123 = vmul.f32 %v121, %v109
  %v124 = vadd.f32 %v122, 1e-05
  %v125 = vadd.f32 %v123, 1e-05
  %v126 = vrsqrt.pop %v124
  %v127 = vrsqrt.pop %v125
  %v128 = vmul.f32 %v112, %v126
  %v129 = vmul.f32 %v113, %v127
  %v130 = vld [vmem:[%s4] sm:$0x1]
  %v132 = vlaneseq
  %v133 = vshrl.u32 %v132, 7
  %v134 = vsub.s32 0, %v133
  %v135 = vrot.slane %v130, %v134
  %v137 = vmul.f32 %v128, %v135
  %v138 = vmul.f32 %v129, %v135
  %v139 = vld [vmem:[%s5] sm:$0x1]
  %v141 = vlaneseq
  %v142 = vshrl.u32 %v141, 7
  %v143 = vsub.s32 0, %v142
  %v144 = vrot.slane %v139, %v143
  %v146 = vadd.f32 %v137, %v144
  %v147 = vadd.f32 %v138, %v144
  %148 = vst.msk [vmem:[%s6] sm:$0xff] %vm54, %v146
  %149 = vst.msk [vmem:[%s6 + $0x8] sm:$0xff] %vm54, %v147
  // Predicated region
  $region26: #{decoder_layer.10} parent=0 // pred_check
    _
  $region27: #{decoder_layer.10} parent=0 // pred_check_branch
    %151 = sbr.rel (0) target = $region29
  $region28: #{decoder_layer.10} parent=0 // pred_region
    _
  $region29: #{decoder_layer.10} parent=0 // pred_fallthru
    _
  // Predicated region
  $region30: #{decoder_layer.10} parent=0 // pred_check
    _
  $region31: #{decoder_layer.10} parent=0 // pred_check_branch
    %153 = sbr.rel (0) target = $region33
  $region32: #{decoder_layer.10} parent=0 // pred_region
    _
  $region33: #{decoder_layer.10} parent=0 // pred_fallthru
    _

// kernel: decoder_layer.8
$region0: #{decoder_layer.8}
  #allocation0 [shape = 'u32[]', space=smem, size = 0x4, offset = 0x4, fixed_abs, tag = 'smem constant byte address 0x4 - core index']
  #allocation1 [shape = 'u32[144,128]{1,0:T(1,128)}', space=vmem, size = 0x12000, scoped, tag = 'internal scratch']
  %s0 = inlined_call_operand.vmem [shape: f32[16,32], index: 0, kind: input, shape index: {}]
  %s1 = inlined_call_operand.vmem [shape: bf16[32,32], index: 1, kind: input, shape index: {}]
  %s2 = inlined_call_operand.vmem [shape: f32[1,32], index: 2, kind: input, shape index: {}]
  %s3 = inlined_call_operand.vmem [shape: bf16[32,32], index: 3, kind: input, shape index: {}]
  %s4 = inlined_call_operand.vmem [shape: f32[1,32], index: 4, kind: input, shape index: {}]
  %s5 = inlined_call_operand.vmem [shape: bf16[32,32], index: 5, kind: input, shape index: {}]
  %s6 = inlined_call_operand.vmem [shape: f32[1,32], index: 6, kind: input, shape index: {}]
  %s7 = inlined_call_operand.vmem [shape: bf16[16,32], index: 7, kind: output, shape index: {0}]
  %s8 = inlined_call_operand.vmem [shape: bf16[16,32], index: 8, kind: output, shape index: {1}]
  %s9 = inlined_call_operand.vmem [shape: bf16[16,32], index: 9, kind: output, shape index: {2}]
  %10 = xla_tuple %s7, %s8, %s9
  %s11 = sld [smem:[#allocation0]]
  $region54: #{decoder_layer.8} parent=0
    _
  %s13 = ssub.s32 1, %s11
  %s14 = scalar_select 0, %s13, %s11
  // Predicated region
  $region2: #{decoder_layer.8} parent=0 // pred_check
    _
  $region3: #{decoder_layer.8} parent=0 // pred_check_branch
    %16 = sbr.rel (0) target = $region5
  $region4: #{decoder_layer.8} parent=0 // pred_region
    _
  $region5: #{decoder_layer.8} parent=0 // pred_fallthru
    _
  // Predicated region
  $region6: #{decoder_layer.8} parent=0 // pred_check
    _
  $region7: #{decoder_layer.8} parent=0 // pred_check_branch
    %18 = sbr.rel (0) target = $region9
  $region8: #{decoder_layer.8} parent=0 // pred_region
    _
  $region9: #{decoder_layer.8} parent=0 // pred_fallthru
    _
  // Predicated region
  $region10: #{decoder_layer.8} parent=0 // pred_check
    _
  $region11: #{decoder_layer.8} parent=0 // pred_check_branch
    %20 = sbr.rel (0) target = $region13
  $region12: #{decoder_layer.8} parent=0 // pred_region
    _
  $region13: #{decoder_layer.8} parent=0 // pred_fallthru
    _
  // Predicated region
  $region14: #{decoder_layer.8} parent=0 // pred_check
    _
  $region15: #{decoder_layer.8} parent=0 // pred_check_branch
    %22 = sbr.rel (0) target = $region17
  $region16: #{decoder_layer.8} parent=0 // pred_region
    _
  $region17: #{decoder_layer.8} parent=0 // pred_fallthru
    _
  // Predicated region
  $region18: #{decoder_layer.8} parent=0 // pred_check
    _
  $region19: #{decoder_layer.8} parent=0 // pred_check_branch
    %24 = sbr.rel (0) target = $region21
  $region20: #{decoder_layer.8} parent=0 // pred_region
    _
  $region21: #{decoder_layer.8} parent=0 // pred_fallthru
    _
  // Predicated region
  $region22: #{decoder_layer.8} parent=0 // pred_check
    _
  $region23: #{decoder_layer.8} parent=0 // pred_check_branch
    %26 = sbr.rel (0) target = $region25
  $region24: #{decoder_layer.8} parent=0 // pred_region
    _
  $region25: #{decoder_layer.8} parent=0 // pred_fallthru
    _
  // Predicated region
  $region26: #{decoder_layer.8} parent=0 // pred_check
    _
  $region27: #{decoder_layer.8} parent=0 // pred_check_branch
    %28 = sbr.rel (0) target = $region29
  $region28: #{decoder_layer.8} parent=0 // pred_region
    _
  $region29: #{decoder_layer.8} parent=0 // pred_fallthru
    _
  %v30 = vld [vmem:[%s0] sm:$0xff]
  %v31 = vld [vmem:[%s0 + $0x8] sm:$0xff]
  %v32 = vpack.c.bf16 %v31, %v30
  %v33 = vld [vmem:[%s1] sm:$0xf]
  %v34 = vld [vmem:[%s1 + $0x4] sm:$0xf]
  %v35 = vld [vmem:[%s1 + $0x8] sm:$0xf]
  %v36 = vld [vmem:[%s1 + $0xc] sm:$0xf]
  %v37 = vld [vmem:[%s2] sm:$0x1]
  %v39 = vlaneseq
  %v40 = vshrl.u32 %v39, 7
  %v41 = vsub.s32 0, %v40
  %v42 = vrot.slane %v37, %v41
  %v48 = vunpack.c.l.b16 %v33
  %v49 = vunpack.c.l.b16 %v34
  %v50 = vunpack.c.l.b16 %v35
  %v51 = vunpack.c.l.b16 %v36
  %v52 = vpack.c.b16 %v49, %v48
  %v53 = vpack.c.b16 %v51, %v50
  %vm56 = vcmask 261120
  %v58 = vsel %vm56, %v32, 0
  %60 = vmatprep.subr.bf16.mxu0 0
  %61 = vmatpush1.bf16.msra.mxu0 0
  %62 = vmatprep.subr.bf16.mxu0 0
  %63 = vmatpush1.bf16.msra.mxu0 0
  %64 = vmatprep.subr.bf16.mxu0 0
  %65 = vmatpush1.bf16.msra.mxu0 0
  %66 = vmatprep.subr.bf16.mxu0 0
  %67 = vmatpush1.bf16.msra.mxu0 0
  %68 = vmatprep.subr.bf16.mxu0 0
  %69 = vmatpush1.bf16.msra.mxu0 0
  %70 = vmatprep.subr.bf16.mxu0 0
  %71 = vmatpush1.bf16.msra.mxu0 0
  %72 = vmatprep.subr.bf16.mxu0 0
  %73 = vmatpush1.bf16.msra.mxu0 %v53
  %74 = vmatprep.subr.bf16.mxu0 0
  %75 = vmatpush1.bf16.msra.mxu0 %v52
  %76 = vmatprep.subr.bf16.mxu0 0
  %77 = vmatpush2.bf16.msra.mxu0 0
  %78 = vmatprep.subr.bf16.mxu0 0
  %79 = vmatpush2.bf16.msra.mxu0 0
  %80 = vmatprep.subr.bf16.mxu0 0
  %81 = vmatpush2.bf16.msra.mxu0 0
  %82 = vmatprep.subr.bf16.mxu0 0
  %83 = vmatpush2.bf16.msra.mxu0 0
  %84 = vmatprep.subr.bf16.mxu0 0
  %85 = vmatpush2.bf16.msra.mxu0 0
  %86 = vmatprep.subr.bf16.mxu0 0
  %87 = vmatpush2.bf16.msra.mxu0 0
  %88 = vmatprep.subr.bf16.mxu0 0
  %89 = vmatpush2.bf16.msra.mxu0 0
  %90 = vmatprep.subr.bf16.mxu0 0
  %91 = vmatpush2.bf16.msra.mxu0 0
  %92 = vmatprep.mubr.bf16.mxu0 0
  %93 = vmatmul.mubr.bf16.gmra.mxu0 %v58
  %v94 = vpop.f32.mrf.mxu0
  %v95 = vadd.f32 %v42, %v94
  %v96 = vpop.f32.mrf.mxu0
  %v97 = vpop.f32.mrf.mxu0
  %v98 = vadd.f32 %v42, %v97
  %v99 = vpop.f32.mrf.mxu0
  %100 = vdwg.mxu0
  %v101 = vpack.c.bf16 %v98, %v95
  %v103 = vunpack.c.l.b16 %v101
  %v104 = vunpack.c.h.b16 %v101
  %v105 = vpack.c.b16 %v103, %v103
  %v106 = vpack.c.b16 %v104, %v104
  %vm109 = vcmask 257024
  %110 = vst.msk [vmem:[%s7] sm:$0xf] %vm109, %v105
  %111 = vst.msk [vmem:[%s7 + $0x4] sm:$0xf] %vm109, %v106
  %v112 = vld [vmem:[%s3] sm:$0xf]
  %v113 = vld [vmem:[%s3 + $0x4] sm:$0xf]
  %v114 = vld [vmem:[%s3 + $0x8] sm:$0xf]
  %v115 = vld [vmem:[%s3 + $0xc] sm:$0xf]
  %v116 = vld [vmem:[%s4] sm:$0x1]
  %v118 = vlaneseq
  %v119 = vshrl.u32 %v118, 7
  %v120 = vsub.s32 0, %v119
  %v121 = vrot.slane %v116, %v120
  %v127 = vunpack.c.l.b16 %v112
  %v128 = vunpack.c.l.b16 %v113
  %v129 = vunpack.c.l.b16 %v114
  %v130 = vunpack.c.l.b16 %v115
  %v131 = vpack.c.b16 %v128, %v127
  %v132 = vpack.c.b16 %v130, %v129
  %135 = vmatprep.subr.bf16.mxu0 0
  %136 = vmatpush1.bf16.msra.mxu0 0
  %137 = vmatprep.subr.bf16.mxu0 0
  %138 = vmatpush1.bf16.msra.mxu0 0
  %139 = vmatprep.subr.bf16.mxu0 0
  %140 = vmatpush1.bf16.msra.mxu0 0
  %141 = vmatprep.subr.bf16.mxu0 0
  %142 = vmatpush1.bf16.msra.mxu0 0
  %143 = vmatprep.subr.bf16.mxu0 0
  %144 = vmatpush1.bf16.msra.mxu0 0
  %145 = vmatprep.subr.bf16.mxu0 0
  %146 = vmatpush1.bf16.msra.mxu0 0
  %147 = vmatprep.subr.bf16.mxu0 0
  %148 = vmatpush1.bf16.msra.mxu0 %v132
  %149 = vmatprep.subr.bf16.mxu0 0
  %150 = vmatpush1.bf16.msra.mxu0 %v131
  %151 = vmatprep.subr.bf16.mxu0 0
  %152 = vmatpush2.bf16.msra.mxu0 0
  %153 = vmatprep.subr.bf16.mxu0 0
  %154 = vmatpush2.bf16.msra.mxu0 0
  %155 = vmatprep.subr.bf16.mxu0 0
  %156 = vmatpush2.bf16.msra.mxu0 0
  %157 = vmatprep.subr.bf16.mxu0 0
  %158 = vmatpush2.bf16.msra.mxu0 0
  %159 = vmatprep.subr.bf16.mxu0 0
  %160 = vmatpush2.bf16.msra.mxu0 0
  %161 = vmatprep.subr.bf16.mxu0 0
  %162 = vmatpush2.bf16.msra.mxu0 0
  %163 = vmatprep.subr.bf16.mxu0 0
  %164 = vmatpush2.bf16.msra.mxu0 0
  %165 = vmatprep.subr.bf16.mxu0 0
  %166 = vmatpush2.bf16.msra.mxu0 0
  %167 = vmatprep.mubr.bf16.mxu0 0
  %168 = vmatmul.mubr.bf16.gmra.mxu0 %v58
  %v169 = vpop.f32.mrf.mxu0
  %v170 = vadd.f32 %v121, %v169
  %v171 = vpop.f32.mrf.mxu0
  %v172 = vpop.f32.mrf.mxu0
  %v173 = vadd.f32 %v121, %v172
  %v174 = vpop.f32.mrf.mxu0
  %175 = vdwg.mxu0
  %v176 = vpack.c.bf16 %v173, %v170
  %v178 = vunpack.c.l.b16 %v176
  %v179 = vunpack.c.h.b16 %v176
  %v180 = vpack.c.b16 %v178, %v178
  %v181 = vpack.c.b16 %v179, %v179
  %184 = vst.msk [vmem:[%s8] sm:$0xf] %vm109, %v180
  %185 = vst.msk [vmem:[%s8 + $0x4] sm:$0xf] %vm109, %v181
  %v186 = vld [vmem:[%s5] sm:$0xf]
  %v187 = vld [vmem:[%s5 + $0x4] sm:$0xf]
  %v188 = vld [vmem:[%s5 + $0x8] sm:$0xf]
  %v189 = vld [vmem:[%s5 + $0xc] sm:$0xf]
  %v190 = vld [vmem:[%s6] sm:$0x1]
  %v192 = vlaneseq
  %v193 = vshrl.u32 %v192, 7
  %v194 = vsub.s32 0, %v193
  %v195 = vrot.slane %v190, %v194
  %v201 = vunpack.c.l.b16 %v186
  %v202 = vunpack.c.l.b16 %v187
  %v203 = vunpack.c.l.b16 %v188
  %v204 = vunpack.c.l.b16 %v189
  %v205 = vpack.c.b16 %v202, %v201
  %v206 = vpack.c.b16 %v204, %v203
  %209 = vmatprep.subr.bf16.mxu0 0
  %210 = vmatpush1.bf16.msra.mxu0 0
  %211 = vmatprep.subr.bf16.mxu0 0
  %212 = vmatpush1.bf16.msra.mxu0 0
  %213 = vmatprep.subr.bf16.mxu0 0
  %214 = vmatpush1.bf16.msra.mxu0 0
  %215 = vmatprep.subr.bf16.mxu0 0
  %216 = vmatpush1.bf16.msra.mxu0 0
  %217 = vmatprep.subr.bf16.mxu0 0
  %218 = vmatpush1.bf16.msra.mxu0 0
  %219 = vmatprep.subr.bf16.mxu0 0
  %220 = vmatpush1.bf16.msra.mxu0 0
  %221 = vmatprep.subr.bf16.mxu0 0
  %222 = vmatpush1.bf16.msra.mxu0 %v206
  %223 = vmatprep.subr.bf16.mxu0 0
  %224 = vmatpush1.bf16.msra.mxu0 %v205
  %225 = vmatprep.subr.bf16.mxu0 0
  %226 = vmatpush2.bf16.msra.mxu0 0
  %227 = vmatprep.subr.bf16.mxu0 0
  %228 = vmatpush2.bf16.msra.mxu0 0
  %229 = vmatprep.subr.bf16.mxu0 0
  %230 = vmatpush2.bf16.msra.mxu0 0
  %231 = vmatprep.subr.bf16.mxu0 0
  %232 = vmatpush2.bf16.msra.mxu0 0
  %233 = vmatprep.subr.bf16.mxu0 0
  %234 = vmatpush2.bf16.msra.mxu0 0
  %235 = vmatprep.subr.bf16.mxu0 0
  %236 = vmatpush2.bf16.msra.mxu0 0
  %237 = vmatprep.subr.bf16.mxu0 0
  %238 = vmatpush2.bf16.msra.mxu0 0
  %239 = vmatprep.subr.bf16.mxu0 0
  %240 = vmatpush2.bf16.msra.mxu0 0
  %241 = vmatprep.mubr.bf16.mxu0 0
  %242 = vmatmul.mubr.bf16.gmra.mxu0 %v58
  %v243 = vpop.f32.mrf.mxu0
  %v244 = vadd.f32 %v195, %v243
  %v245 = vpop.f32.mrf.mxu0
  %v246 = vpop.f32.mrf.mxu0
  %v247 = vadd.f32 %v195, %v246
  %v248 = vpop.f32.mrf.mxu0
  %249 = vdwg.mxu0
  %v250 = vpack.c.bf16 %v247, %v244
  %v252 = vunpack.c.l.b16 %v250
  %v253 = vunpack.c.h.b16 %v250
  %v254 = vpack.c.b16 %v252, %v252
  %v255 = vpack.c.b16 %v253, %v253
  %258 = vst.msk [vmem:[%s9] sm:$0xf] %vm109, %v254
  %259 = vst.msk [vmem:[%s9 + $0x4] sm:$0xf] %vm109, %v255
  // Predicated region
  $region30: #{decoder_layer.8} parent=0 // pred_check
    _
  $region31: #{decoder_layer.8} parent=0 // pred_check_branch
    %261 = sbr.rel (0) target = $region33
  $region32: #{decoder_layer.8} parent=0 // pred_region
    _
  $region33: #{decoder_layer.8} parent=0 // pred_fallthru
    _
  // Predicated region
  $region34: #{decoder_layer.8} parent=0 // pred_check
    _
  $region35: #{decoder_layer.8} parent=0 // pred_check_branch
    %263 = sbr.rel (0) target = $region37
  $region36: #{decoder_layer.8} parent=0 // pred_region
    _
  $region37: #{decoder_layer.8} parent=0 // pred_fallthru
    _
  // Predicated region
  $region38: #{decoder_layer.8} parent=0 // pred_check
    _
  $region39: #{decoder_layer.8} parent=0 // pred_check_branch
    %265 = sbr.rel (0) target = $region41
  $region40: #{decoder_layer.8} parent=0 // pred_region
    _
  $region41: #{decoder_layer.8} parent=0 // pred_fallthru
    _
  // Predicated region
  $region42: #{decoder_layer.8} parent=0 // pred_check
    _
  $region43: #{decoder_layer.8} parent=0 // pred_check_branch
    %267 = sbr.rel (0) target = $region45
  $region44: #{decoder_layer.8} parent=0 // pred_region
    _
  $region45: #{decoder_layer.8} parent=0 // pred_fallthru
    _
  // Predicated region
  $region46: #{decoder_layer.8} parent=0 // pred_check
    _
  $region47: #{decoder_layer.8} parent=0 // pred_check_branch
    %269 = sbr.rel (0) target = $region49
  $region48: #{decoder_layer.8} parent=0 // pred_region
    _
  $region49: #{decoder_layer.8} parent=0 // pred_fallthru
    _
  // Predicated region
  $region50: #{decoder_layer.8} parent=0 // pred_check
    _
  $region51: #{decoder_layer.8} parent=0 // pred_check_branch
    %271 = sbr.rel (0) target = $region53
  $region52: #{decoder_layer.8} parent=0 // pred_region
    _
  $region53: #{decoder_layer.8} parent=0 // pred_fallthru
    _

// kernel: decoder_layer.9
$region0: #{decoder_layer.9}
  #allocation0 [shape = 'u32[]', space=smem, size = 0x4, offset = 0x4, fixed_abs, tag = 'smem constant byte address 0x4 - core index']
  #allocation1 [shape = 'u32[144,128]{1,0:T(1,128)}', space=vmem, size = 0x12000, scoped, tag = 'internal scratch']
  #allocation2 [shape = 'f32[2,8,1]{2,1,0:T(8,128)}', space=vmem, size = 0x2000, scoped, tag = 'scratch operand']
  #allocation3 [shape = 'f32[2,8,1]{2,1,0:T(8,128)}', space=vmem, size = 0x2000, scoped, tag = 'scratch operand']
  #allocation4 [shape = 'f32[2,8,16]{2,1,0:T(8,128)}', space=vmem, size = 0x2000, scoped, tag = 'scratch operand']
  %s0 = inlined_call_operand.vmem [shape: bf16[2,8,32], index: 0, kind: input, shape index: {}]
  %s1 = inlined_call_operand.vmem [shape: bf16[2,8,32], index: 1, kind: input, shape index: {}]
  %s2 = inlined_call_operand.vmem [shape: bf16[2,8,32], index: 2, kind: input, shape index: {}]
  %s3 = inlined_call_operand.vmem [shape: f32[2,1,8], index: 3, kind: input, shape index: {}]
  %s4 = inlined_call_operand.vmem [shape: bf16[2,8,32], index: 4, kind: output, shape index: {}]
  %s5 = sld [smem:[#allocation0]]
  $region57: #{decoder_layer.9} parent=0
    _
  %s7 = ssub.s32 1, %s5
  %s8 = scalar_select 0, %s7, %s5
  loop: start=0, step=1, limit=4
  $region2: #{decoder_layer.9} parent=0 // loop_pre_header
    _
  $region3: #{decoder_layer.9} parent=0 // loop_header
    %s10 = sphi 0, %s14
    %p11 = scmp.ge.s32.totalorder %s10, 4
    %s17 = sphi 0, %s36
    %s18 = sphi 0, %s32
    %s19 = sphi 0, %s28
    %s20 = sphi 0, %s17
    %s21 = sphi 0, %s18
    %s22 = sphi 0, %s19
    %s23 = sphi 0, %s20
    %s24 = sphi 0, %s21
    %s25 = sphi 0, %s22
    %s41 = sphi 0, %s43
    %s44 = sphi 0, %s41
    %s45 = sphi 0, %s44
    %s61 = sphi 0, %s45
    %s69 = sphi 0, %s71
    %s72 = sphi 0, %s69
    %s73 = sphi 0, %s72
    %s89 = sphi 0, %s73
    %s97 = sphi 0, %s99
    %s100 = sphi 0, %s97
    %s101 = sphi 0, %s100
    %s117 = sphi 0, %s101
    %s125 = sphi 0, %s127
    %s128 = sphi 0, %s125
    %s129 = sphi 0, %s128
    %s145 = sphi 0, %s129
    %s153 = sphi 0, %s155
    %s156 = sphi 0, %s153
    %s157 = sphi 0, %s156
    %s173 = sphi 0, %s157
  $region4: #{decoder_layer.9} parent=0 // loop_header_branch
    %13 = sbr.rel (%p11) target = $region8
  $region5: #{decoder_layer.9} parent=0 // loop_body
    %s15 = ssub.s32 %s10, 1
    %s16 = ssub.s32 %s10, 2
    %s26 = sadd.s32 1, %s19
    %p27 = scmp.ge.s32.totalorder %s26, 1
    %s28 = scalar_select %p27, 0, %s26
    %s29 = sadd.s32 1, %s18
    %s30 = scalar_select %p27, %s29, %s18
    %p31 = scmp.ge.s32.totalorder %s30, 1
    %s32 = scalar_select %p31, 0, %s30
    %s33 = sadd.s32 1, %s17
    %s34 = scalar_select %p31, %s33, %s17
    %p35 = scmp.ge.s32.totalorder %s34, 2
    %s36 = scalar_select %p35, 0, %s34
    %s37 = ssub.s32 %s17, %s36
    %s38 = ssub.s32 %s18, %s32
    %s39 = sor.u32 %s37, %s38
    %p40 = scmp.eq.s32.totalorder %s39, 0
    %s42 = sadd.s32 %s41, 1
    %s43 = scalar_select %p40, %s41, %s42
    %p46 = pneg %p40
    %p47 = scmp.eq.s32.totalorder %s10, 1
    %p48 = por %p46, %p47
    %p49 = scmp.ne.s32.totalorder %s41, %s44
    %p50 = scmp.eq.s32.totalorder %s10, 0
    %p51 = por %p49, %p50
    %p52 = scmp.ne.s32.totalorder %s41, %s44
    %p53 = scmp.eq.s32.totalorder %s15, 1
    %p54 = por %p52, %p53
    %p55 = scmp.ne.s32.totalorder %s44, %s45
    %p56 = scmp.eq.s32.totalorder %s15, 0
    %p57 = por %p55, %p56
    %p58 = scmp.ne.s32.totalorder %s44, %s45
    %p59 = scmp.eq.s32.totalorder %s16, 1
    %p60 = por %p58, %p59
    %p62 = scmp.ne.s32.totalorder %s45, %s61
    %p63 = scmp.eq.s32.totalorder %s16, 0
    %p64 = por %p62, %p63
    %s65 = ssub.s32 %s17, %s36
    %s66 = ssub.s32 %s19, %s28
    %s67 = sor.u32 %s65, %s66
    %p68 = scmp.eq.s32.totalorder %s67, 0
    %s70 = sadd.s32 %s69, 1
    %s71 = scalar_select %p68, %s69, %s70
    %p74 = pneg %p68
    %p75 = scmp.eq.s32.totalorder %s10, 1
    %p76 = por %p74, %p75
    %p77 = scmp.ne.s32.totalorder %s69, %s72
    %p78 = scmp.eq.s32.totalorder %s10, 0
    %p79 = por %p77, %p78
    %p80 = scmp.ne.s32.totalorder %s69, %s72
    %p81 = scmp.eq.s32.totalorder %s15, 1
    %p82 = por %p80, %p81
    %p83 = scmp.ne.s32.totalorder %s72, %s73
    %p84 = scmp.eq.s32.totalorder %s15, 0
    %p85 = por %p83, %p84
    %p86 = scmp.ne.s32.totalorder %s72, %s73
    %p87 = scmp.eq.s32.totalorder %s16, 1
    %p88 = por %p86, %p87
    %p90 = scmp.ne.s32.totalorder %s73, %s89
    %p91 = scmp.eq.s32.totalorder %s16, 0
    %p92 = por %p90, %p91
    %s93 = ssub.s32 %s17, %s36
    %s94 = ssub.s32 %s19, %s28
    %s95 = sor.u32 %s93, %s94
    %p96 = scmp.eq.s32.totalorder %s95, 0
    %s98 = sadd.s32 %s97, 1
    %s99 = scalar_select %p96, %s97, %s98
    %p102 = pneg %p96
    %p103 = scmp.eq.s32.totalorder %s10, 1
    %p104 = por %p102, %p103
    %p105 = scmp.ne.s32.totalorder %s97, %s100
    %p106 = scmp.eq.s32.totalorder %s10, 0
    %p107 = por %p105, %p106
    %p108 = scmp.ne.s32.totalorder %s97, %s100
    %p109 = scmp.eq.s32.totalorder %s15, 1
    %p110 = por %p108, %p109
    %p111 = scmp.ne.s32.totalorder %s100, %s101
    %p112 = scmp.eq.s32.totalorder %s15, 0
    %p113 = por %p111, %p112
    %p114 = scmp.ne.s32.totalorder %s100, %s101
    %p115 = scmp.eq.s32.totalorder %s16, 1
    %p116 = por %p114, %p115
    %p118 = scmp.ne.s32.totalorder %s101, %s117
    %p119 = scmp.eq.s32.totalorder %s16, 0
    %p120 = por %p118, %p119
    %s121 = ssub.s32 %s17, %s36
    %s122 = ssub.s32 %s19, %s28
    %s123 = sor.u32 %s121, %s122
    %p124 = scmp.eq.s32.totalorder %s123, 0
    %s126 = sadd.s32 %s125, 1
    %s127 = scalar_select %p124, %s125, %s126
    %p130 = pneg %p124
    %p131 = scmp.eq.s32.totalorder %s10, 1
    %p132 = por %p130, %p131
    %p133 = scmp.ne.s32.totalorder %s125, %s128
    %p134 = scmp.eq.s32.totalorder %s10, 0
    %p135 = por %p133, %p134
    %p136 = scmp.ne.s32.totalorder %s125, %s128
    %p137 = scmp.eq.s32.totalorder %s15, 1
    %p138 = por %p136, %p137
    %p139 = scmp.ne.s32.totalorder %s128, %s129
    %p140 = scmp.eq.s32.totalorder %s15, 0
    %p141 = por %p139, %p140
    %p142 = scmp.ne.s32.totalorder %s128, %s129
    %p143 = scmp.eq.s32.totalorder %s16, 1
    %p144 = por %p142, %p143
    %p146 = scmp.ne.s32.totalorder %s129, %s145
    %p147 = scmp.eq.s32.totalorder %s16, 0
    %p148 = por %p146, %p147
    %s149 = ssub.s32 %s17, %s36
    %s150 = ssub.s32 %s18, %s32
    %s151 = sor.u32 %s149, %s150
    %p152 = scmp.eq.s32.totalorder %s151, 0
    %s154 = sadd.s32 %s153, 1
    %s155 = scalar_select %p152, %s153, %s154
    %p158 = pneg %p152
    %p159 = scmp.eq.s32.totalorder %s10, 1
    %p160 = por %p158, %p159
    %p161 = scmp.ne.s32.totalorder %s153, %s156
    %p162 = scmp.eq.s32.totalorder %s10, 0
    %p163 = por %p161, %p162
    %p164 = scmp.ne.s32.totalorder %s153, %s156
    %p165 = scmp.eq.s32.totalorder %s15, 1
    %p166 = por %p164, %p165
    %p167 = scmp.ne.s32.totalorder %s156, %s157
    %p168 = scmp.eq.s32.totalorder %s15, 0
    %p169 = por %p167, %p168
    %p170 = scmp.ne.s32.totalorder %s156, %s157
    %p171 = scmp.eq.s32.totalorder %s16, 1
    %p172 = por %p170, %p171
    %p174 = scmp.ne.s32.totalorder %s157, %s173
    %p175 = scmp.eq.s32.totalorder %s16, 0
    %p176 = por %p174, %p175
    %p177 = scmp.le.s32.totalorder 1, %s10
    %p178 = scmp.lt.s32.totalorder %s10, 3
    %p179 = pnand %p177, %p178
    %p180 = pneg %p179
    // Predicated region
    $region9: #{decoder_layer.9} parent=5 // pred_check
      _
    $region10: #{decoder_layer.9} parent=5 // pred_check_branch
      %182 = sbr.rel (%p179) target = $region12
    $region11: #{decoder_layer.9} parent=5 // pred_region
      %s183 = ssub.s32 %s10, 1
    $region12: #{decoder_layer.9} parent=5 // pred_fallthru
      _
    %p184 = scmp.lt.s32.totalorder %s10, 2
    // Predicated region
    $region13: #{decoder_layer.9} parent=5 // pred_check
      %p185 = pneg %p184
    $region14: #{decoder_layer.9} parent=5 // pred_check_branch
      %187 = sbr.rel (%p185) target = $region16
    $region15: #{decoder_layer.9} parent=5 // pred_region
      // Predicated region
      $region17: #{decoder_layer.9} parent=15 // pred_check
        %p188 = pneg %p51
      $region18: #{decoder_layer.9} parent=15 // pred_check_branch
        %190 = sbr.rel (%p188) target = $region20
      $region19: #{decoder_layer.9} parent=15 // pred_region
        %p191 = scmp.lt.s32.totalorder %s17, 1
        %s192 = scalar_select %p191, %s17, 1
        %p193 = scmp.lt.s32.totalorder %s18, 0
        %s194 = scalar_select %p193, %s18, 0
        %s195 = sadd.s32 %s194, %s192
        %s196 = smul.addr %s195, 4
        %s197 = scalar_lea.vmem %s0, %s196
      $region20: #{decoder_layer.9} parent=15 // pred_fallthru
        _
      // Predicated region
      $region21: #{decoder_layer.9} parent=15 // pred_check
        %p198 = pneg %p79
      $region22: #{decoder_layer.9} parent=15 // pred_check_branch
        %200 = sbr.rel (%p198) target = $region24
      $region23: #{decoder_layer.9} parent=15 // pred_region
        %p201 = scmp.lt.s32.totalorder %s17, 1
        %s202 = scalar_select %p201, %s17, 1
        %p203 = scmp.lt.s32.totalorder %s19, 0
        %s204 = scalar_select %p203, %s19, 0
        %s205 = sadd.s32 %s204, %s202
        %s206 = smul.addr %s205, 4
        %s207 = scalar_lea.vmem %s1, %s206
      $region24: #{decoder_layer.9} parent=15 // pred_fallthru
        _
      // Predicated region
      $region25: #{decoder_layer.9} parent=15 // pred_check
        %p208 = pneg %p107
      $region26: #{decoder_layer.9} parent=15 // pred_check_branch
        %210 = sbr.rel (%p208) target = $region28
      $region27: #{decoder_layer.9} parent=15 // pred_region
        %p211 = scmp.lt.s32.totalorder %s17, 1
        %s212 = scalar_select %p211, %s17, 1
        %p213 = scmp.lt.s32.totalorder %s19, 0
        %s214 = scalar_select %p213, %s19, 0
        %s215 = sadd.s32 %s214, %s212
        %s216 = smul.addr %s215, 4
        %s217 = scalar_lea.vmem %s2, %s216
      $region28: #{decoder_layer.9} parent=15 // pred_fallthru
        _
      // Predicated region
      $region29: #{decoder_layer.9} parent=15 // pred_check
        %p218 = pneg %p135
      $region30: #{decoder_layer.9} parent=15 // pred_check_branch
        %220 = sbr.rel (%p218) target = $region32
      $region31: #{decoder_layer.9} parent=15 // pred_region
        %p221 = scmp.lt.s32.totalorder %s17, 1
        %s222 = scalar_select %p221, %s17, 1
        %p223 = scmp.lt.s32.totalorder %s19, 0
        %s224 = scalar_select %p223, %s19, 0
        %s225 = sadd.s32 %s224, %s222
        %s226 = scalar_lea.vmem %s3, %s225
      $region32: #{decoder_layer.9} parent=15 // pred_fallthru
        _
    $region16: #{decoder_layer.9} parent=5 // pred_fallthru
      _
    %p227 = scmp.le.s32.totalorder 1, %s10
    %p228 = scmp.lt.s32.totalorder %s10, 3
    %p229 = pnand %p227, %p228
    %p230 = pneg %p229
    // Predicated region
    $region33: #{decoder_layer.9} parent=5 // pred_check
      _
    $region34: #{decoder_layer.9} parent=5 // pred_check_branch
      %232 = sbr.rel (%p229) target = $region36
    $region35: #{decoder_layer.9} parent=5 // pred_region
      %s233 = ssub.s32 %s10, 1
      %p234 = scmp.lt.s32.totalorder %s20, 1
      %s235 = scalar_select %p234, %s20, 1
      %p236 = scmp.lt.s32.totalorder %s21, 0
      %s237 = scalar_select %p236, %s21, 0
      %s238 = sadd.s32 %s237, %s235
      %s239 = smul.addr %s238, 4
      %s240 = scalar_lea.vmem %s0, %s239
      %p241 = pneg %p57
      %p242 = pneg %p54
      %p243 = scmp.lt.s32.totalorder %s20, 1
      %s244 = scalar_select %p243, %s20, 1
      %p245 = scmp.lt.s32.totalorder %s22, 0
      %s246 = scalar_select %p245, %s22, 0
      %s247 = sadd.s32 %s246, %s244
      %s248 = smul.addr %s247, 4
      %s249 = scalar_lea.vmem %s1, %s248
      %p250 = pneg %p85
      %p251 = pneg %p82
      %p252 = scmp.lt.s32.totalorder %s20, 1
      %s253 = scalar_select %p252, %s20, 1
      %p254 = scmp.lt.s32.totalorder %s22, 0
      %s255 = scalar_select %p254, %s22, 0
      %s256 = sadd.s32 %s255, %s253
      %s257 = smul.addr %s256, 4
      %s258 = scalar_lea.vmem %s2, %s257
      %p259 = pneg %p113
      %p260 = pneg %p110
      %p261 = scmp.lt.s32.totalorder %s20, 1
      %s262 = scalar_select %p261, %s20, 1
      %p263 = scmp.lt.s32.totalorder %s22, 0
      %s264 = scalar_select %p263, %s22, 0
      %s265 = sadd.s32 %s264, %s262
      %s266 = scalar_lea.vmem %s3, %s265
      %p267 = pneg %p141
      %p268 = pneg %p138
      %p269 = pneg %p169
      %p270 = pneg %p166
      %p271 = scmp.lt.s32.totalorder %s20, 1
      %s272 = scalar_select %p271, %s20, 1
      %p273 = scmp.lt.s32.totalorder %s21, 0
      %s274 = scalar_select %p273, %s21, 0
      %s275 = sadd.s32 %s274, %s272
      %s276 = smul.addr %s275, 4
      %s277 = scalar_lea.vmem %s4, %s276
      %p278 = scmp.lt.s32.totalorder %s20, 1
      %s279 = scalar_select %p278, %s20, 1
      %p280 = scmp.lt.s32.totalorder %s21, 0
      %s281 = scalar_select %p280, %s21, 0
      %s282 = sadd.s32 %s281, %s279
      %s283 = smul.addr %s282, 4
      %s284 = scalar_lea.vmem %s0, %s283
      %p285 = scmp.lt.s32.totalorder %s20, 1
      %s286 = scalar_select %p285, %s20, 1
      %p287 = scmp.lt.s32.totalorder %s22, 0
      %s288 = scalar_select %p287, %s22, 0
      %s289 = sadd.s32 %s288, %s286
      %s290 = smul.addr %s289, 4
      %s291 = scalar_lea.vmem %s1, %s290
      %p292 = scmp.lt.s32.totalorder %s20, 1
      %s293 = scalar_select %p292, %s20, 1
      %p294 = scmp.lt.s32.totalorder %s22, 0
      %s295 = scalar_select %p294, %s22, 0
      %s296 = sadd.s32 %s295, %s293
      %s297 = smul.addr %s296, 4
      %s298 = scalar_lea.vmem %s2, %s297
      %p299 = scmp.lt.s32.totalorder %s20, 1
      %s300 = scalar_select %p299, %s20, 1
      %p301 = scmp.lt.s32.totalorder %s22, 0
      %s302 = scalar_select %p301, %s22, 0
      %s303 = sadd.s32 %s302, %s300
      %s304 = scalar_lea.vmem %s3, %s303
      %p305 = scmp.lt.s32.totalorder %s20, 1
      %s306 = scalar_select %p305, %s20, 1
      %p307 = scmp.lt.s32.totalorder %s21, 0
      %s308 = scalar_select %p307, %s21, 0
      %s309 = sadd.s32 %s308, %s306
      %s310 = smul.addr %s309, 4
      %s311 = scalar_lea.vmem %s4, %s310
      %p313 = scmp.eq.s32.totalorder %s22, 0
      // Predicated region
      $region37: #{decoder_layer.9} parent=35 // pred_check
        %p314 = pneg %p313
      $region38: #{decoder_layer.9} parent=35 // pred_check_branch
        %316 = sbr.rel (%p314) target = $region40
      $region39: #{decoder_layer.9} parent=35 // pred_region
        %vm317 = vcmask 7168
        %318 = vst.msk [vmem:[#allocation2] sm:$0xff] %vm317, -inf
        %319 = vst.msk [vmem:[#allocation2 + $0x8] sm:$0xff] %vm317, -inf
        %320 = vst.msk [vmem:[#allocation3] sm:$0xff] %vm317, 0.0
        %321 = vst.msk [vmem:[#allocation3 + $0x8] sm:$0xff] %vm317, 0.0
        %vm322 = vcmask 130048
        %323 = vst.msk [vmem:[#allocation4] sm:$0xff] %vm322, 0.0
        %324 = vst.msk [vmem:[#allocation4 + $0x8] sm:$0xff] %vm322, 0.0
      $region40: #{decoder_layer.9} parent=35 // pred_fallthru
        _
      %v325 = vld [vmem:[%s304] sm:$0x1]
      %vm326 = vcmp.gt.f32.partialorder %v325, 0.0
      %v327 = vlaneseq
      %v328 = vshrl.u32 %v327, 7
      %s329 = smul.u32 %s21, 8
      %v330 = vstv %s329
      %v331 = vadd.s32 %v328, %v330
      %v332 = vlaneseq
      %v333 = vand.u32 %v332, 127
      %s334 = smul.u32 %s22, 8
      %v335 = vstv %s334
      %v336 = vadd.s32 %v333, %v335
      %vm337 = vcmp.le.s32.totalorder %v336, %v331
      %v338 = vsel %vm326, 1, 0
      %v339 = vlaneseq
      %v340 = vshrl.u32 %v339, 7
      %v341 = vsub.s32 0, %v340
      %v342 = vrot.slane %v338, %v341
      %vm343 = vcmp.eq.s32.totalorder %v342, 1
      %vm344 = vmand %vm343, %vm337
      %v345 = vld [vmem:[%s284] sm:$0xf]
      %v346 = vld [vmem:[%s291] sm:$0xf]
      %v347 = vld [vmem:[%s298] sm:$0xf]
      %vm348 = vcmask 130048
      %v350 = vsel %vm348, %v345, 0
      %v353 = vsel %vm348, %v346, 0
      %355 = vmatprep.subr.bf16.mxu0 0
      %356 = vmatpush1.bf16.xpose.msra.mxu0 0
      %357 = vmatprep.subr.bf16.mxu0 0
      %358 = vmatpush1.bf16.xpose.msra.mxu0 0
      %359 = vmatprep.subr.bf16.mxu0 0
      %360 = vmatpush1.bf16.xpose.msra.mxu0 0
      %361 = vmatprep.subr.bf16.mxu0 0
      %362 = vmatpush1.bf16.xpose.msra.mxu0 0
      %363 = vmatprep.subr.bf16.mxu0 0
      %364 = vmatpush1.bf16.xpose.msra.mxu0 0
      %365 = vmatprep.subr.bf16.mxu0 0
      %366 = vmatpush1.bf16.xpose.msra.mxu0 0
      %367 = vmatprep.subr.bf16.mxu0 0
      %368 = vmatpush1.bf16.xpose.msra.mxu0 0
      %369 = vmatprep.subr.bf16.mxu0 0
      %370 = vmatpush1.bf16.xpose.msra.mxu0 %v353
      %371 = vmatprep.subr.bf16.mxu0 0
      %372 = vmatpush2.bf16.xpose.msra.mxu0 0
      %373 = vmatprep.subr.bf16.mxu0 0
      %374 = vmatpush2.bf16.xpose.msra.mxu0 0
      %375 = vmatprep.subr.bf16.mxu0 0
      %376 = vmatpush2.bf16.xpose.msra.mxu0 0
      %377 = vmatprep.subr.bf16.mxu0 0
      %378 = vmatpush2.bf16.xpose.msra.mxu0 0
      %379 = vmatprep.subr.bf16.mxu0 0
      %380 = vmatpush2.bf16.xpose.msra.mxu0 0
      %381 = vmatprep.subr.bf16.mxu0 0
      %382 = vmatpush2.bf16.xpose.msra.mxu0 0
      %383 = vmatprep.subr.bf16.mxu0 0
      %384 = vmatpush2.bf16.xpose.msra.mxu0 0
      %385 = vmatprep.subr.bf16.mxu0 0
      %386 = vmatpush2.bf16.xpose.msra.mxu0 0
      %387 = vmatprep.mubr.bf16.mxu0 0
      %388 = vmatmul.mubr.bf16.gmra.mxu0 %v350
      %v389 = vpop.f32.mrf.mxu0
      %v390 = vadd.f32 0.0, %v389
      %v391 = vpop.f32.mrf.mxu0
      %v392 = vpop.f32.mrf.mxu0
      %v393 = vpop.f32.mrf.mxu0
      %394 = vdwg.mxu0
      %v395 = vmul.f32 %v390, 0.25
      %v396 = vsel %vm344, %v395, -1e+09
      %v397 = vld [vmem:[#allocation2] sm:$0xff]
      %vm398 = vcmask 64512
      %v399 = vsel %vm398, %v396, -inf
      %400 = vmax.xlane.f32.xlu0 %v399
      %v401 = vpop.xlane.xlu0 %400
      %v402 = vmax.f32 %v397, %v401
      %v403 = vsub.f32 %v397, %v402
      %v404 = vmul.f32 %v403, 1.442695
      %v405 = vpow.pop %v404
      %407 = vset.pattern.permute.xlu0 0
      %408 = vperm.xlu0 %407, %v402
      %v409 = vpop.permute.xlu0 %408
      %v411 = vsub.f32 %v396, %v409
      %v412 = vmul.f32 %v411, 1.442695
      %v413 = vpow.pop %v412
      %v414 = vld [vmem:[#allocation3] sm:$0xff]
      %v415 = vmul.f32 %v405, %v414
      %v416 = vsel %vm398, %v413, 0.0
      %417 = vadd.xlane.f32.xlu0 %v416
      %v418 = vpop.xlane.xlu0 %417
      %v419 = vadd.f32 %v415, %v418
      %vm420 = vcmask 7168
      %421 = vst.msk [vmem:[#allocation3] sm:$0xff] %vm420, %v419
      %v422 = vld [vmem:[#allocation4] sm:$0xff]
      %424 = vset.pattern.permute.xlu0 0
      %425 = vperm.xlu0 %424, %v405
      %v426 = vpop.permute.xlu0 %425
      %v428 = vmul.f32 %v426, %v422
      %v429 = vpack.c.bf16 %v413, %v413
      %v431 = vsel %vm398, %v429, 0
      %vm433 = vcmask 1043456
      %v435 = vsel %vm433, %v347, 0
      %437 = vmatprep.subr.bf16.mxu0 0
      %438 = vmatpush1.bf16.msra.mxu0 0
      %439 = vmatprep.subr.bf16.mxu0 0
      %440 = vmatpush1.bf16.msra.mxu0 0
      %441 = vmatprep.subr.bf16.mxu0 0
      %442 = vmatpush1.bf16.msra.mxu0 0
      %443 = vmatprep.subr.bf16.mxu0 0
      %444 = vmatpush1.bf16.msra.mxu0 0
      %445 = vmatprep.subr.bf16.mxu0 0
      %446 = vmatpush1.bf16.msra.mxu0 0
      %447 = vmatprep.subr.bf16.mxu0 0
      %448 = vmatpush1.bf16.msra.mxu0 0
      %449 = vmatprep.subr.bf16.mxu0 0
      %450 = vmatpush1.bf16.msra.mxu0 0
      %451 = vmatprep.subr.bf16.mxu0 0
      %452 = vmatpush1.bf16.msra.mxu0 %v435
      %453 = vmatprep.subr.bf16.mxu0 0
      %454 = vmatpush2.bf16.msra.mxu0 0
      %455 = vmatprep.subr.bf16.mxu0 0
      %456 = vmatpush2.bf16.msra.mxu0 0
      %457 = vmatprep.subr.bf16.mxu0 0
      %458 = vmatpush2.bf16.msra.mxu0 0
      %459 = vmatprep.subr.bf16.mxu0 0
      %460 = vmatpush2.bf16.msra.mxu0 0
      %461 = vmatprep.subr.bf16.mxu0 0
      %462 = vmatpush2.bf16.msra.mxu0 0
      %463 = vmatprep.subr.bf16.mxu0 0
      %464 = vmatpush2.bf16.msra.mxu0 0
      %465 = vmatprep.subr.bf16.mxu0 0
      %466 = vmatpush2.bf16.msra.mxu0 0
      %467 = vmatprep.subr.bf16.mxu0 0
      %468 = vmatpush2.bf16.msra.mxu0 0
      %469 = vmatprep.mubr.bf16.mxu0 0
      %470 = vmatmul.mubr.bf16.gmra.mxu0 %v431
      %v471 = vpop.f32.mrf.mxu0
      %v472 = vadd.f32 0.0, %v471
      %v473 = vpop.f32.mrf.mxu0
      %v474 = vpop.f32.mrf.mxu0
      %v475 = vpop.f32.mrf.mxu0
      %476 = vdwg.mxu0
      %v477 = vadd.f32 %v428, %v472
      %478 = vst.msk [vmem:[#allocation4] sm:$0xff] %vm348, %v477
      %479 = vst.msk [vmem:[#allocation2] sm:$0xff] %vm420, %v402
      %v480 = vld [vmem:[%s284] sm:$0xf]
      %v481 = vld [vmem:[%s291] sm:$0xf]
      %v482 = vld [vmem:[%s298] sm:$0xf]
      %v484 = vunpack.c.l.b16 %v480
      %v485 = vpack.c.b16 %v484, %v484
      %486 = vrot.lane.b32.xlu0 %v485, 112
      %v487 = vpop.permute.xlu0 %486
      %v489 = vunpack.c.l.b16 %v481
      %v490 = vpack.c.b16 %v489, %v489
      %491 = vrot.lane.b32.xlu0 %v490, 112
      %v492 = vpop.permute.xlu0 %491
      %v494 = vsel %vm348, %v487, 0
      %v497 = vsel %vm348, %v492, 0
      %499 = vmatprep.subr.bf16.mxu0 0
      %500 = vmatpush1.bf16.xpose.msra.mxu0 0
      %501 = vmatprep.subr.bf16.mxu0 0
      %502 = vmatpush1.bf16.xpose.msra.mxu0 0
      %503 = vmatprep.subr.bf16.mxu0 0
      %504 = vmatpush1.bf16.xpose.msra.mxu0 0
      %505 = vmatprep.subr.bf16.mxu0 0
      %506 = vmatpush1.bf16.xpose.msra.mxu0 0
      %507 = vmatprep.subr.bf16.mxu0 0
      %508 = vmatpush1.bf16.xpose.msra.mxu0 0
      %509 = vmatprep.subr.bf16.mxu0 0
      %510 = vmatpush1.bf16.xpose.msra.mxu0 0
      %511 = vmatprep.subr.bf16.mxu0 0
      %512 = vmatpush1.bf16.xpose.msra.mxu0 0
      %513 = vmatprep.subr.bf16.mxu0 0
      %514 = vmatpush1.bf16.xpose.msra.mxu0 %v497
      %515 = vmatprep.subr.bf16.mxu0 0
      %516 = vmatpush2.bf16.xpose.msra.mxu0 0
      %517 = vmatprep.subr.bf16.mxu0 0
      %518 = vmatpush2.bf16.xpose.msra.mxu0 0
      %519 = vmatprep.subr.bf16.mxu0 0
      %520 = vmatpush2.bf16.xpose.msra.mxu0 0
      %521 = vmatprep.subr.bf16.mxu0 0
      %522 = vmatpush2.bf16.xpose.msra.mxu0 0
      %523 = vmatprep.subr.bf16.mxu0 0
      %524 = vmatpush2.bf16.xpose.msra.mxu0 0
      %525 = vmatprep.subr.bf16.mxu0 0
      %526 = vmatpush2.bf16.xpose.msra.mxu0 0
      %527 = vmatprep.subr.bf16.mxu0 0
      %528 = vmatpush2.bf16.xpose.msra.mxu0 0
      %529 = vmatprep.subr.bf16.mxu0 0
      %530 = vmatpush2.bf16.xpose.msra.mxu0 0
      %531 = vmatprep.mubr.bf16.mxu0 0
      %532 = vmatmul.mubr.bf16.gmra.mxu0 %v494
      %v533 = vpop.f32.mrf.mxu0
      %v534 = vadd.f32 0.0, %v533
      %v535 = vpop.f32.mrf.mxu0
      %v536 = vpop.f32.mrf.mxu0
      %v537 = vpop.f32.mrf.mxu0
      %538 = vdwg.mxu0
      %v539 = vmul.f32 %v534, 0.25
      %v540 = vsel %vm344, %v539, -1e+09
      %s541 = scalar_lea.vmem [#allocation2], 8
      %v542 = vld [vmem:[%s541] sm:$0xff]
      %v543 = vsel %vm398, %v540, -inf
      %544 = vmax.xlane.f32.xlu0 %v543
      %v545 = vpop.xlane.xlu0 %544
      %v546 = vmax.f32 %v542, %v545
      %v547 = vsub.f32 %v542, %v546
      %v548 = vmul.f32 %v547, 1.442695
      %v549 = vpow.pop %v548
      %551 = vset.pattern.permute.xlu0 0
      %552 = vperm.xlu0 %551, %v546
      %v553 = vpop.permute.xlu0 %552
      %v555 = vsub.f32 %v540, %v553
      %v556 = vmul.f32 %v555, 1.442695
      %v557 = vpow.pop %v556
      %s558 = scalar_lea.vmem [#allocation3], 8
      %v559 = vld [vmem:[%s558] sm:$0xff]
      %v560 = vmul.f32 %v549, %v559
      %v561 = vsel %vm398, %v557, 0.0
      %562 = vadd.xlane.f32.xlu0 %v561
      %v563 = vpop.xlane.xlu0 %562
      %v564 = vadd.f32 %v560, %v563
      %565 = vst.msk [vmem:[%s558] sm:$0xff] %vm420, %v564
      %s566 = scalar_lea.vmem [#allocation4], 8
      %v567 = vld [vmem:[%s566] sm:$0xff]
      %569 = vset.pattern.permute.xlu0 0
      %570 = vperm.xlu0 %569, %v549
      %v571 = vpop.permute.xlu0 %570
      %v573 = vmul.f32 %v571, %v567
      %v574 = vpack.c.bf16 %v557, %v557
      %v576 = vunpack.c.l.b16 %v482
      %v577 = vpack.c.b16 %v576, %v576
      %578 = vrot.lane.b32.xlu0 %v577, 112
      %v579 = vpop.permute.xlu0 %578
      %v581 = vsel %vm398, %v574, 0
      %v584 = vsel %vm433, %v579, 0
      %586 = vmatprep.subr.bf16.mxu0 0
      %587 = vmatpush1.bf16.msra.mxu0 0
      %588 = vmatprep.subr.bf16.mxu0 0
      %589 = vmatpush1.bf16.msra.mxu0 0
      %590 = vmatprep.subr.bf16.mxu0 0
      %591 = vmatpush1.bf16.msra.mxu0 0
      %592 = vmatprep.subr.bf16.mxu0 0
      %593 = vmatpush1.bf16.msra.mxu0 0
      %594 = vmatprep.subr.bf16.mxu0 0
      %595 = vmatpush1.bf16.msra.mxu0 0
      %596 = vmatprep.subr.bf16.mxu0 0
      %597 = vmatpush1.bf16.msra.mxu0 0
      %598 = vmatprep.subr.bf16.mxu0 0
      %599 = vmatpush1.bf16.msra.mxu0 0
      %600 = vmatprep.subr.bf16.mxu0 0
      %601 = vmatpush1.bf16.msra.mxu0 %v584
      %602 = vmatprep.subr.bf16.mxu0 0
      %603 = vmatpush2.bf16.msra.mxu0 0
      %604 = vmatprep.subr.bf16.mxu0 0
      %605 = vmatpush2.bf16.msra.mxu0 0
      %606 = vmatprep.subr.bf16.mxu0 0
      %607 = vmatpush2.bf16.msra.mxu0 0
      %608 = vmatprep.subr.bf16.mxu0 0
      %609 = vmatpush2.bf16.msra.mxu0 0
      %610 = vmatprep.subr.bf16.mxu0 0
      %611 = vmatpush2.bf16.msra.mxu0 0
      %612 = vmatprep.subr.bf16.mxu0 0
      %613 = vmatpush2.bf16.msra.mxu0 0
      %614 = vmatprep.subr.bf16.mxu0 0
      %615 = vmatpush2.bf16.msra.mxu0 0
      %616 = vmatprep.subr.bf16.mxu0 0
      %617 = vmatpush2.bf16.msra.mxu0 0
      %618 = vmatprep.mubr.bf16.mxu0 0
      %619 = vmatmul.mubr.bf16.gmra.mxu0 %v581
      %v620 = vpop.f32.mrf.mxu0
      %v621 = vadd.f32 0.0, %v620
      %v622 = vpop.f32.mrf.mxu0
      %v623 = vpop.f32.mrf.mxu0
      %v624 = vpop.f32.mrf.mxu0
      %625 = vdwg.mxu0
      %v626 = vadd.f32 %v573, %v621
      %627 = vst.msk [vmem:[%s566] sm:$0xff] %vm348, %v626
      %628 = vst.msk [vmem:[%s541] sm:$0xff] %vm420, %v546
      // Predicated region
      $region41: #{decoder_layer.9} parent=35 // pred_check
        %p629 = pneg %p313
      $region42: #{decoder_layer.9} parent=35 // pred_check_branch
        %631 = sbr.rel (%p629) target = $region44
      $region43: #{decoder_layer.9} parent=35 // pred_region
        %v632 = vld [vmem:[#allocation3] sm:$0xff]
        %v633 = vrcp.pop %v632
        %v634 = vld [vmem:[#allocation4] sm:$0xff]
        %636 = vset.pattern.permute.xlu0 0
        %637 = vperm.xlu0 %636, %v633
        %v638 = vpop.permute.xlu0 %637
        %v640 = vmul.f32 %v634, %v638
        %v641 = vpack.c.bf16 %v640, %v640
        %vm642 = vcmask 125952
        %643 = vst.msk [vmem:[%s311] sm:$0xf] %vm642, %v641
        %v644 = vld [vmem:[%s558] sm:$0xff]
        %v645 = vrcp.pop %v644
        %v646 = vld [vmem:[%s566] sm:$0xff]
        %648 = vset.pattern.permute.xlu0 0
        %649 = vperm.xlu0 %648, %v645
        %v650 = vpop.permute.xlu0 %649
        %v652 = vmul.f32 %v646, %v650
        %v653 = vpack.c.bf16 %v652, %v652
        %v655 = vunpack.c.l.b16 %v653
        %v656 = vpack.c.b16 %v655, %v655
        %657 = vrot.lane.b32.xlu0 %v656, 16
        %v658 = vpop.permute.xlu0 %657
        %vm660 = vcmask 257152
        %661 = vst.msk [vmem:[%s311] sm:$0xf] %vm660, %v658
      $region44: #{decoder_layer.9} parent=35 // pred_fallthru
        _
      %p662 = scmp.lt.s32.totalorder %s20, 1
      %s663 = scalar_select %p662, %s20, 1
      %p664 = scmp.lt.s32.totalorder %s21, 0
      %s665 = scalar_select %p664, %s21, 0
      %s666 = sadd.s32 %s665, %s663
      %s667 = smul.addr %s666, 4
      %s668 = scalar_lea.vmem %s4, %s667
      // Predicated region
      $region45: #{decoder_layer.9} parent=35 // pred_check
        %p669 = pneg %p166
      $region46: #{decoder_layer.9} parent=35 // pred_check_branch
        %671 = sbr.rel (%p669) target = $region48
      $region47: #{decoder_layer.9} parent=35 // pred_region
        _
      $region48: #{decoder_layer.9} parent=35 // pred_fallthru
        _
    $region36: #{decoder_layer.9} parent=5 // pred_fallthru
      _
    %p672 = scmp.le.s32.totalorder 2, %s10
    // Predicated region
    $region49: #{decoder_layer.9} parent=5 // pred_check
      %p673 = pneg %p672
    $region50: #{decoder_layer.9} parent=5 // pred_check_branch
      %675 = sbr.rel (%p673) target = $region52
    $region51: #{decoder_layer.9} parent=5 // pred_region
      %s676 = ssub.s32 %s10, 2
      // Predicated region
      $region53: #{decoder_layer.9} parent=51 // pred_check
        %p677 = pneg %p172
      $region54: #{decoder_layer.9} parent=51 // pred_check_branch
        %679 = sbr.rel (%p677) target = $region56
      $region55: #{decoder_layer.9} parent=51 // pred_region
        %p680 = scmp.lt.s32.totalorder %s23, 1
        %s681 = scalar_select %p680, %s23, 1
        %p682 = scmp.lt.s32.totalorder %s24, 0
        %s683 = scalar_select %p682, %s24, 0
        %s684 = sadd.s32 %s683, %s681
        %s685 = smul.addr %s684, 4
        %s686 = scalar_lea.vmem %s4, %s685
      $region56: #{decoder_layer.9} parent=51 // pred_fallthru
        _
    $region52: #{decoder_layer.9} parent=5 // pred_fallthru
      _
  $region6: #{decoder_layer.9} parent=0 // loop_footer
    %s14 = sadd.s32 1, %s10
  $region7: #{decoder_layer.9} parent=0 // loop_footer_branch
    %9 = sbr.rel target = $region3
  $region8: #{decoder_layer.9} parent=0 // loop_exit
    _

// kernel: decoder_layer.11
$region0: #{decoder_layer.11}
  #allocation0 [shape = 'u32[]', space=smem, size = 0x4, offset = 0x4, fixed_abs, tag = 'smem constant byte address 0x4 - core index']
  #allocation1 [shape = 'u32[144,128]{1,0:T(1,128)}', space=vmem, size = 0x12000, scoped, tag = 'internal scratch']
  %s0 = inlined_call_operand.vmem [shape: f32[16,32], index: 0, kind: input, shape index: {}]
  %s1 = inlined_call_operand.vmem [shape: bf16[32,32], index: 1, kind: input, shape index: {}]
  %s2 = inlined_call_operand.vmem [shape: f32[1,32], index: 2, kind: input, shape index: {}]
  %s3 = inlined_call_operand.vmem [shape: bf16[16,32], index: 3, kind: output, shape index: {}]
  %s4 = sld [smem:[#allocation0]]
  $region22: #{decoder_layer.11} parent=0
    _
  %s6 = ssub.s32 1, %s4
  %s7 = scalar_select 0, %s6, %s4
  // Predicated region
  $region2: #{decoder_layer.11} parent=0 // pred_check
    _
  $region3: #{decoder_layer.11} parent=0 // pred_check_branch
    %9 = sbr.rel (0) target = $region5
  $region4: #{decoder_layer.11} parent=0 // pred_region
    _
  $region5: #{decoder_layer.11} parent=0 // pred_fallthru
    _
  // Predicated region
  $region6: #{decoder_layer.11} parent=0 // pred_check
    _
  $region7: #{decoder_layer.11} parent=0 // pred_check_branch
    %11 = sbr.rel (0) target = $region9
  $region8: #{decoder_layer.11} parent=0 // pred_region
    _
  $region9: #{decoder_layer.11} parent=0 // pred_fallthru
    _
  // Predicated region
  $region10: #{decoder_layer.11} parent=0 // pred_check
    _
  $region11: #{decoder_layer.11} parent=0 // pred_check_branch
    %13 = sbr.rel (0) target = $region13
  $region12: #{decoder_layer.11} parent=0 // pred_region
    _
  $region13: #{decoder_layer.11} parent=0 // pred_fallthru
    _
  %v15 = vld [vmem:[%s0] sm:$0xff]
  %v16 = vld [vmem:[%s0 + $0x8] sm:$0xff]
  %v17 = vpack.c.bf16 %v16, %v15
  %v18 = vld [vmem:[%s1] sm:$0xf]
  %v19 = vld [vmem:[%s1 + $0x4] sm:$0xf]
  %v20 = vld [vmem:[%s1 + $0x8] sm:$0xf]
  %v21 = vld [vmem:[%s1 + $0xc] sm:$0xf]
  %v22 = vld [vmem:[%s2] sm:$0x1]
  %v24 = vlaneseq
  %v25 = vshrl.u32 %v24, 7
  %v26 = vsub.s32 0, %v25
  %v27 = vrot.slane %v22, %v26
  %v33 = vunpack.c.l.b16 %v18
  %v34 = vunpack.c.l.b16 %v19
  %v35 = vunpack.c.l.b16 %v20
  %v36 = vunpack.c.l.b16 %v21
  %v37 = vpack.c.b16 %v34, %v33
  %v38 = vpack.c.b16 %v36, %v35
  %vm41 = vcmask 261120
  %v43 = vsel %vm41, %v17, 0
  %45 = vmatprep.subr.bf16.mxu0 0
  %46 = vmatpush1.bf16.msra.mxu0 0
  %47 = vmatprep.subr.bf16.mxu0 0
  %48 = vmatpush1.bf16.msra.mxu0 0
  %49 = vmatprep.subr.bf16.mxu0 0
  %50 = vmatpush1.bf16.msra.mxu0 0
  %51 = vmatprep.subr.bf16.mxu0 0
  %52 = vmatpush1.bf16.msra.mxu0 0
  %53 = vmatprep.subr.bf16.mxu0 0
  %54 = vmatpush1.bf16.msra.mxu0 0
  %55 = vmatprep.subr.bf16.mxu0 0
  %56 = vmatpush1.bf16.msra.mxu0 0
  %57 = vmatprep.subr.bf16.mxu0 0
  %58 = vmatpush1.bf16.msra.mxu0 %v38
  %59 = vmatprep.subr.bf16.mxu0 0
  %60 = vmatpush1.bf16.msra.mxu0 %v37
  %61 = vmatprep.subr.bf16.mxu0 0
  %62 = vmatpush2.bf16.msra.mxu0 0
  %63 = vmatprep.subr.bf16.mxu0 0
  %64 = vmatpush2.bf16.msra.mxu0 0
  %65 = vmatprep.subr.bf16.mxu0 0
  %66 = vmatpush2.bf16.msra.mxu0 0
  %67 = vmatprep.subr.bf16.mxu0 0
  %68 = vmatpush2.bf16.msra.mxu0 0
  %69 = vmatprep.subr.bf16.mxu0 0
  %70 = vmatpush2.bf16.msra.mxu0 0
  %71 = vmatprep.subr.bf16.mxu0 0
  %72 = vmatpush2.bf16.msra.mxu0 0
  %73 = vmatprep.subr.bf16.mxu0 0
  %74 = vmatpush2.bf16.msra.mxu0 0
  %75 = vmatprep.subr.bf16.mxu0 0
  %76 = vmatpush2.bf16.msra.mxu0 0
  %77 = vmatprep.mubr.bf16.mxu0 0
  %78 = vmatmul.mubr.bf16.gmra.mxu0 %v43
  %v79 = vpop.f32.mrf.mxu0
  %v80 = vadd.f32 %v27, %v79
  %v81 = vpop.f32.mrf.mxu0
  %v82 = vpop.f32.mrf.mxu0
  %v83 = vadd.f32 %v27, %v82
  %v84 = vpop.f32.mrf.mxu0
  %85 = vdwg.mxu0
  %v86 = vpack.c.bf16 %v83, %v80
  %v88 = vunpack.c.l.b16 %v86
  %v89 = vunpack.c.h.b16 %v86
  %v90 = vpack.c.b16 %v88, %v88
  %v91 = vpack.c.b16 %v89, %v89
  %vm94 = vcmask 257024
  %95 = vst.msk [vmem:[%s3] sm:$0xf] %vm94, %v90
  %96 = vst.msk [vmem:[%s3 + $0x4] sm:$0xf] %vm94, %v91
  // Predicated region
  $region14: #{decoder_layer.11} parent=0 // pred_check
    _
  $region15: #{decoder_layer.11} parent=0 // pred_check_branch
    %98 = sbr.rel (0) target = $region17
  $region16: #{decoder_layer.11} parent=0 // pred_region
    _
  $region17: #{decoder_layer.11} parent=0 // pred_fallthru
    _
  // Predicated region
  $region18: #{decoder_layer.11} parent=0 // pred_check
    _
  $region19: #{decoder_layer.11} parent=0 // pred_check_branch
    %100 = sbr.rel (0) target = $region21
  $region20: #{decoder_layer.11} parent=0 // pred_region
    _
  $region21: #{decoder_layer.11} parent=0 // pred_fallthru
    _

// kernel: decoder_layer.12
$region0: #{decoder_layer.12}
  #allocation0 [shape = 'u32[]', space=smem, size = 0x4, offset = 0x4, fixed_abs, tag = 'smem constant byte address 0x4 - core index']
  #allocation1 [shape = 'u32[144,128]{1,0:T(1,128)}', space=vmem, size = 0x12000, scoped, tag = 'internal scratch']
  %s0 = inlined_call_operand.vmem [shape: f32[32,32], index: 0, kind: input, shape index: {}]
  %s1 = inlined_call_operand.vmem [shape: bf16[32,32], index: 1, kind: input, shape index: {}]
  %s2 = inlined_call_operand.vmem [shape: f32[1,32], index: 2, kind: input, shape index: {}]
  %s3 = inlined_call_operand.vmem [shape: bf16[32,32], index: 3, kind: input, shape index: {}]
  %s4 = inlined_call_operand.vmem [shape: f32[1,32], index: 4, kind: input, shape index: {}]
  %s5 = inlined_call_operand.vmem [shape: bf16[32,32], index: 5, kind: output, shape index: {0}]
  %s6 = inlined_call_operand.vmem [shape: bf16[32,32], index: 6, kind: output, shape index: {1}]
  %7 = xla_tuple %s5, %s6
  %s8 = sld [smem:[#allocation0]]
  $region38: #{decoder_layer.12} parent=0
    _
  %s10 = ssub.s32 1, %s8
  %s11 = scalar_select 0, %s10, %s8
  // Predicated region
  $region2: #{decoder_layer.12} parent=0 // pred_check
    _
  $region3: #{decoder_layer.12} parent=0 // pred_check_branch
    %13 = sbr.rel (0) target = $region5
  $region4: #{decoder_layer.12} parent=0 // pred_region
    _
  $region5: #{decoder_layer.12} parent=0 // pred_fallthru
    _
  // Predicated region
  $region6: #{decoder_layer.12} parent=0 // pred_check
    _
  $region7: #{decoder_layer.12} parent=0 // pred_check_branch
    %15 = sbr.rel (0) target = $region9
  $region8: #{decoder_layer.12} parent=0 // pred_region
    _
  $region9: #{decoder_layer.12} parent=0 // pred_fallthru
    _
  // Predicated region
  $region10: #{decoder_layer.12} parent=0 // pred_check
    _
  $region11: #{decoder_layer.12} parent=0 // pred_check_branch
    %17 = sbr.rel (0) target = $region13
  $region12: #{decoder_layer.12} parent=0 // pred_region
    _
  $region13: #{decoder_layer.12} parent=0 // pred_fallthru
    _
  // Predicated region
  $region14: #{decoder_layer.12} parent=0 // pred_check
    _
  $region15: #{decoder_layer.12} parent=0 // pred_check_branch
    %19 = sbr.rel (0) target = $region17
  $region16: #{decoder_layer.12} parent=0 // pred_region
    _
  $region17: #{decoder_layer.12} parent=0 // pred_fallthru
    _
  // Predicated region
  $region18: #{decoder_layer.12} parent=0 // pred_check
    _
  $region19: #{decoder_layer.12} parent=0 // pred_check_branch
    %21 = sbr.rel (0) target = $region21
  $region20: #{decoder_layer.12} parent=0 // pred_region
    _
  $region21: #{decoder_layer.12} parent=0 // pred_fallthru
    _
  %v23 = vld [vmem:[%s0] sm:$0xff]
  %v24 = vld [vmem:[%s0 + $0x8] sm:$0xff]
  %v25 = vld [vmem:[%s0 + $0x10] sm:$0xff]
  %v26 = vld [vmem:[%s0 + $0x18] sm:$0xff]
  %v27 = vpack.c.bf16 %v24, %v23
  %v28 = vpack.c.bf16 %v26, %v25
  %v29 = vld [vmem:[%s1] sm:$0xf]
  %v30 = vld [vmem:[%s1 + $0x4] sm:$0xf]
  %v31 = vld [vmem:[%s1 + $0x8] sm:$0xf]
  %v32 = vld [vmem:[%s1 + $0xc] sm:$0xf]
  %v33 = vld [vmem:[%s2] sm:$0x1]
  %v35 = vlaneseq
  %v36 = vshrl.u32 %v35, 7
  %v37 = vsub.s32 0, %v36
  %v38 = vrot.slane %v33, %v37
  %v44 = vunpack.c.l.b16 %v29
  %v45 = vunpack.c.l.b16 %v30
  %v46 = vunpack.c.l.b16 %v31
  %v47 = vunpack.c.l.b16 %v32
  %v48 = vpack.c.b16 %v45, %v44
  %v49 = vpack.c.b16 %v47, %v46
  %vm52 = vcmask 261120
  %v54 = vsel %vm52, %v27, 0
  %v57 = vsel %vm52, %v28, 0
  %59 = vmatprep.subr.bf16.mxu0 0
  %60 = vmatpush1.bf16.msra.mxu0 0
  %61 = vmatprep.subr.bf16.mxu0 0
  %62 = vmatpush1.bf16.msra.mxu0 0
  %63 = vmatprep.subr.bf16.mxu0 0
  %64 = vmatpush1.bf16.msra.mxu0 0
  %65 = vmatprep.subr.bf16.mxu0 0
  %66 = vmatpush1.bf16.msra.mxu0 0
  %67 = vmatprep.subr.bf16.mxu0 0
  %68 = vmatpush1.bf16.msra.mxu0 0
  %69 = vmatprep.subr.bf16.mxu0 0
  %70 = vmatpush1.bf16.msra.mxu0 0
  %71 = vmatprep.subr.bf16.mxu0 0
  %72 = vmatpush1.bf16.msra.mxu0 %v49
  %73 = vmatprep.subr.bf16.mxu0 0
  %74 = vmatpush1.bf16.msra.mxu0 %v48
  %75 = vmatprep.subr.bf16.mxu0 0
  %76 = vmatpush2.bf16.msra.mxu0 0
  %77 = vmatprep.subr.bf16.mxu0 0
  %78 = vmatpush2.bf16.msra.mxu0 0
  %79 = vmatprep.subr.bf16.mxu0 0
  %80 = vmatpush2.bf16.msra.mxu0 0
  %81 = vmatprep.subr.bf16.mxu0 0
  %82 = vmatpush2.bf16.msra.mxu0 0
  %83 = vmatprep.subr.bf16.mxu0 0
  %84 = vmatpush2.bf16.msra.mxu0 0
  %85 = vmatprep.subr.bf16.mxu0 0
  %86 = vmatpush2.bf16.msra.mxu0 0
  %87 = vmatprep.subr.bf16.mxu0 0
  %88 = vmatpush2.bf16.msra.mxu0 0
  %89 = vmatprep.subr.bf16.mxu0 0
  %90 = vmatpush2.bf16.msra.mxu0 0
  %91 = vmatprep.mubr.bf16.mxu0 0
  %92 = vmatmul.mubr.bf16.gmra.mxu0 %v54
  %v93 = vpop.f32.mrf.mxu0
  %v94 = vadd.f32 %v38, %v93
  %v95 = vpop.f32.mrf.mxu0
  %v96 = vpop.f32.mrf.mxu0
  %v97 = vadd.f32 %v38, %v96
  %v98 = vpop.f32.mrf.mxu0
  %99 = vmatprep.mubr.bf16.mxu0 0
  %100 = vmatmul.mubr.bf16.gmra.mxu0 %v57
  %v101 = vpop.f32.mrf.mxu0
  %v102 = vadd.f32 %v38, %v101
  %v103 = vpop.f32.mrf.mxu0
  %v104 = vpop.f32.mrf.mxu0
  %v105 = vadd.f32 %v38, %v104
  %v106 = vpop.f32.mrf.mxu0
  %107 = vdwg.mxu0
  %v108 = vpack.c.bf16 %v97, %v94
  %v109 = vpack.c.bf16 %v105, %v102
  %v112 = vunpack.c.l.b16 %v108
  %v113 = vunpack.c.h.b16 %v108
  %v114 = vunpack.c.l.b16 %v109
  %v115 = vunpack.c.h.b16 %v109
  %v116 = vpack.c.b16 %v112, %v112
  %v117 = vpack.c.b16 %v113, %v113
  %v118 = vpack.c.b16 %v114, %v114
  %v119 = vpack.c.b16 %v115, %v115
  %vm124 = vcmask 257024
  %125 = vst.msk [vmem:[%s5] sm:$0xf] %vm124, %v116
  %126 = vst.msk [vmem:[%s5 + $0x4] sm:$0xf] %vm124, %v117
  %127 = vst.msk [vmem:[%s5 + $0x8] sm:$0xf] %vm124, %v118
  %128 = vst.msk [vmem:[%s5 + $0xc] sm:$0xf] %vm124, %v119
  %v129 = vld [vmem:[%s3] sm:$0xf]
  %v130 = vld [vmem:[%s3 + $0x4] sm:$0xf]
  %v131 = vld [vmem:[%s3 + $0x8] sm:$0xf]
  %v132 = vld [vmem:[%s3 + $0xc] sm:$0xf]
  %v133 = vld [vmem:[%s4] sm:$0x1]
  %v135 = vlaneseq
  %v136 = vshrl.u32 %v135, 7
  %v137 = vsub.s32 0, %v136
  %v138 = vrot.slane %v133, %v137
  %v144 = vunpack.c.l.b16 %v129
  %v145 = vunpack.c.l.b16 %v130
  %v146 = vunpack.c.l.b16 %v131
  %v147 = vunpack.c.l.b16 %v132
  %v148 = vpack.c.b16 %v145, %v144
  %v149 = vpack.c.b16 %v147, %v146
  %152 = vmatprep.subr.bf16.mxu0 0
  %153 = vmatpush1.bf16.msra.mxu0 0
  %154 = vmatprep.subr.bf16.mxu0 0
  %155 = vmatpush1.bf16.msra.mxu0 0
  %156 = vmatprep.subr.bf16.mxu0 0
  %157 = vmatpush1.bf16.msra.mxu0 0
  %158 = vmatprep.subr.bf16.mxu0 0
  %159 = vmatpush1.bf16.msra.mxu0 0
  %160 = vmatprep.subr.bf16.mxu0 0
  %161 = vmatpush1.bf16.msra.mxu0 0
  %162 = vmatprep.subr.bf16.mxu0 0
  %163 = vmatpush1.bf16.msra.mxu0 0
  %164 = vmatprep.subr.bf16.mxu0 0
  %165 = vmatpush1.bf16.msra.mxu0 %v149
  %166 = vmatprep.subr.bf16.mxu0 0
  %167 = vmatpush1.bf16.msra.mxu0 %v148
  %168 = vmatprep.subr.bf16.mxu0 0
  %169 = vmatpush2.bf16.msra.mxu0 0
  %170 = vmatprep.subr.bf16.mxu0 0
  %171 = vmatpush2.bf16.msra.mxu0 0
  %172 = vmatprep.subr.bf16.mxu0 0
  %173 = vmatpush2.bf16.msra.mxu0 0
  %174 = vmatprep.subr.bf16.mxu0 0
  %175 = vmatpush2.bf16.msra.mxu0 0
  %176 = vmatprep.subr.bf16.mxu0 0
  %177 = vmatpush2.bf16.msra.mxu0 0
  %178 = vmatprep.subr.bf16.mxu0 0
  %179 = vmatpush2.bf16.msra.mxu0 0
  %180 = vmatprep.subr.bf16.mxu0 0
  %181 = vmatpush2.bf16.msra.mxu0 0
  %182 = vmatprep.subr.bf16.mxu0 0
  %183 = vmatpush2.bf16.msra.mxu0 0
  %184 = vmatprep.mubr.bf16.mxu0 0
  %185 = vmatmul.mubr.bf16.gmra.mxu0 %v54
  %v186 = vpop.f32.mrf.mxu0
  %v187 = vadd.f32 %v138, %v186
  %v188 = vpop.f32.mrf.mxu0
  %v189 = vpop.f32.mrf.mxu0
  %v190 = vadd.f32 %v138, %v189
  %v191 = vpop.f32.mrf.mxu0
  %192 = vmatprep.mubr.bf16.mxu0 0
  %193 = vmatmul.mubr.bf16.gmra.mxu0 %v57
  %v194 = vpop.f32.mrf.mxu0
  %v195 = vadd.f32 %v138, %v194
  %v196 = vpop.f32.mrf.mxu0
  %v197 = vpop.f32.mrf.mxu0
  %v198 = vadd.f32 %v138, %v197
  %v199 = vpop.f32.mrf.mxu0
  %200 = vdwg.mxu0
  %v201 = vpack.c.bf16 %v190, %v187
  %v202 = vpack.c.bf16 %v198, %v195
  %v205 = vunpack.c.l.b16 %v201
  %v206 = vunpack.c.h.b16 %v201
  %v207 = vunpack.c.l.b16 %v202
  %v208 = vunpack.c.h.b16 %v202
  %v209 = vpack.c.b16 %v205, %v205
  %v210 = vpack.c.b16 %v206, %v206
  %v211 = vpack.c.b16 %v207, %v207
  %v212 = vpack.c.b16 %v208, %v208
  %217 = vst.msk [vmem:[%s6] sm:$0xf] %vm124, %v209
  %218 = vst.msk [vmem:[%s6 + $0x4] sm:$0xf] %vm124, %v210
  %219 = vst.msk [vmem:[%s6 + $0x8] sm:$0xf] %vm124, %v211
  %220 = vst.msk [vmem:[%s6 + $0xc] sm:$0xf] %vm124, %v212
  // Predicated region
  $region22: #{decoder_layer.12} parent=0 // pred_check
    _
  $region23: #{decoder_layer.12} parent=0 // pred_check_branch
    %222 = sbr.rel (0) target = $region25
  $region24: #{decoder_layer.12} parent=0 // pred_region
    _
  $region25: #{decoder_layer.12} parent=0 // pred_fallthru
    _
  // Predicated region
  $region26: #{decoder_layer.12} parent=0 // pred_check
    _
  $region27: #{decoder_layer.12} parent=0 // pred_check_branch
    %224 = sbr.rel (0) target = $region29
  $region28: #{decoder_layer.12} parent=0 // pred_region
    _
  $region29: #{decoder_layer.12} parent=0 // pred_fallthru
    _
  // Predicated region
  $region30: #{decoder_layer.12} parent=0 // pred_check
    _
  $region31: #{decoder_layer.12} parent=0 // pred_check_branch
    %226 = sbr.rel (0) target = $region33
  $region32: #{decoder_layer.12} parent=0 // pred_region
    _
  $region33: #{decoder_layer.12} parent=0 // pred_fallthru
    _
  // Predicated region
  $region34: #{decoder_layer.12} parent=0 // pred_check
    _
  $region35: #{decoder_layer.12} parent=0 // pred_check_branch
    %228 = sbr.rel (0) target = $region37
  $region36: #{decoder_layer.12} parent=0 // pred_region
    _
  $region37: #{decoder_layer.12} parent=0 // pred_fallthru
    _

// kernel: decoder_layer.15
$region0: #{decoder_layer.15}
  #allocation0 [shape = 'u32[]', space=smem, size = 0x4, offset = 0x4, fixed_abs, tag = 'smem constant byte address 0x4 - core index']
  #allocation1 [shape = 'u32[144,128]{1,0:T(1,128)}', space=vmem, size = 0x12000, scoped, tag = 'internal scratch']
  %s0 = inlined_call_operand.vmem [shape: f32[16,32], index: 0, kind: input, shape index: {}]
  %s1 = inlined_call_operand.vmem [shape: bf16[32,64], index: 1, kind: input, shape index: {}]
  %s2 = inlined_call_operand.vmem [shape: f32[1,64], index: 2, kind: input, shape index: {}]
  %s3 = inlined_call_operand.vmem [shape: bf16[64,32], index: 3, kind: input, shape index: {}]
  %s4 = inlined_call_operand.vmem [shape: f32[1,32], index: 4, kind: input, shape index: {}]
  %s5 = inlined_call_operand.vmem [shape: f32[1,32], index: 5, kind: input, shape index: {}]
  %s6 = inlined_call_operand.vmem [shape: f32[1,32], index: 6, kind: input, shape index: {}]
  %s7 = inlined_call_operand.hbm [shape: f32[16,32], index: 7, kind: output, shape index: {}]
  %s8 = sld [smem:[#allocation0]]
  $region38: #{decoder_layer.15} parent=0
    _
  %s10 = ssub.s32 1, %s8
  %s11 = scalar_select 0, %s10, %s8
  $region1: #{decoder_layer.15} parent=0
    #allocation2 [shape = 'u8[8192]{0}', space=vmem, size = 0x2000, scoped, tag = 'output window, operand 0, single buffered']
    #allocation3 [shape = 's32[1]{0}', space=sflag, size = 0x4, scoped, tag = 'scoped memory for decoder_layer.15']
    %12 = vsyncpa [#allocation3], 0
    // Predicated region
    $region2: #{decoder_layer.15} parent=1 // pred_check
      _
    $region3: #{decoder_layer.15} parent=1 // pred_check_branch
      %14 = sbr.rel (0) target = $region5
    $region4: #{decoder_layer.15} parent=1 // pred_region
      _
    $region5: #{decoder_layer.15} parent=1 // pred_fallthru
      _
    // Predicated region
    $region6: #{decoder_layer.15} parent=1 // pred_check
      _
    $region7: #{decoder_layer.15} parent=1 // pred_check_branch
      %16 = sbr.rel (0) target = $region9
    $region8: #{decoder_layer.15} parent=1 // pred_region
      _
    $region9: #{decoder_layer.15} parent=1 // pred_fallthru
      _
    // Predicated region
    $region10: #{decoder_layer.15} parent=1 // pred_check
      _
    $region11: #{decoder_layer.15} parent=1 // pred_check_branch
      %18 = sbr.rel (0) target = $region13
    $region12: #{decoder_layer.15} parent=1 // pred_region
      _
    $region13: #{decoder_layer.15} parent=1 // pred_fallthru
      _
    // Predicated region
    $region14: #{decoder_layer.15} parent=1 // pred_check
      _
    $region15: #{decoder_layer.15} parent=1 // pred_check_branch
      %20 = sbr.rel (0) target = $region17
    $region16: #{decoder_layer.15} parent=1 // pred_region
      _
    $region17: #{decoder_layer.15} parent=1 // pred_fallthru
      _
    // Predicated region
    $region18: #{decoder_layer.15} parent=1 // pred_check
      _
    $region19: #{decoder_layer.15} parent=1 // pred_check_branch
      %22 = sbr.rel (0) target = $region21
    $region20: #{decoder_layer.15} parent=1 // pred_region
      _
    $region21: #{decoder_layer.15} parent=1 // pred_fallthru
      _
    // Predicated region
    $region22: #{decoder_layer.15} parent=1 // pred_check
      _
    $region23: #{decoder_layer.15} parent=1 // pred_check_branch
      %24 = sbr.rel (0) target = $region25
    $region24: #{decoder_layer.15} parent=1 // pred_region
      _
    $region25: #{decoder_layer.15} parent=1 // pred_fallthru
      _
    // Predicated region
    $region26: #{decoder_layer.15} parent=1 // pred_check
      _
    $region27: #{decoder_layer.15} parent=1 // pred_check_branch
      %26 = sbr.rel (0) target = $region29
    $region28: #{decoder_layer.15} parent=1 // pred_region
      _
    $region29: #{decoder_layer.15} parent=1 // pred_fallthru
      _
    %v28 = vld [vmem:[%s0] sm:$0xff]
    %v29 = vld [vmem:[%s0 + $0x8] sm:$0xff]
    %v30 = vpack.c.bf16 %v29, %v28
    %v31 = vld [vmem:[%s1] sm:$0xf]
    %v32 = vld [vmem:[%s1 + $0x4] sm:$0xf]
    %v33 = vld [vmem:[%s1 + $0x8] sm:$0xf]
    %v34 = vld [vmem:[%s1 + $0xc] sm:$0xf]
    %v35 = vld [vmem:[%s2] sm:$0x1]
    %v37 = vlaneseq
    %v38 = vshrl.u32 %v37, 7
    %v39 = vsub.s32 0, %v38
    %v40 = vrot.slane %v35, %v39
    %v46 = vunpack.c.l.b16 %v31
    %v47 = vunpack.c.l.b16 %v32
    %v48 = vunpack.c.l.b16 %v33
    %v49 = vunpack.c.l.b16 %v34
    %v50 = vpack.c.b16 %v47, %v46
    %v51 = vpack.c.b16 %v49, %v48
    %vm54 = vcmask 261120
    %v56 = vsel %vm54, %v30, 0
    %58 = vmatprep.subr.bf16.mxu0 0
    %59 = vmatpush1.bf16.msra.mxu0 0
    %60 = vmatprep.subr.bf16.mxu0 0
    %61 = vmatpush1.bf16.msra.mxu0 0
    %62 = vmatprep.subr.bf16.mxu0 0
    %63 = vmatpush1.bf16.msra.mxu0 0
    %64 = vmatprep.subr.bf16.mxu0 0
    %65 = vmatpush1.bf16.msra.mxu0 0
    %66 = vmatprep.subr.bf16.mxu0 0
    %67 = vmatpush1.bf16.msra.mxu0 0
    %68 = vmatprep.subr.bf16.mxu0 0
    %69 = vmatpush1.bf16.msra.mxu0 0
    %70 = vmatprep.subr.bf16.mxu0 0
    %71 = vmatpush1.bf16.msra.mxu0 %v51
    %72 = vmatprep.subr.bf16.mxu0 0
    %73 = vmatpush1.bf16.msra.mxu0 %v50
    %74 = vmatprep.subr.bf16.mxu0 0
    %75 = vmatpush2.bf16.msra.mxu0 0
    %76 = vmatprep.subr.bf16.mxu0 0
    %77 = vmatpush2.bf16.msra.mxu0 0
    %78 = vmatprep.subr.bf16.mxu0 0
    %79 = vmatpush2.bf16.msra.mxu0 0
    %80 = vmatprep.subr.bf16.mxu0 0
    %81 = vmatpush2.bf16.msra.mxu0 0
    %82 = vmatprep.subr.bf16.mxu0 0
    %83 = vmatpush2.bf16.msra.mxu0 0
    %84 = vmatprep.subr.bf16.mxu0 0
    %85 = vmatpush2.bf16.msra.mxu0 0
    %86 = vmatprep.subr.bf16.mxu0 0
    %87 = vmatpush2.bf16.msra.mxu0 0
    %88 = vmatprep.subr.bf16.mxu0 0
    %89 = vmatpush2.bf16.msra.mxu0 0
    %90 = vmatprep.mubr.bf16.mxu0 0
    %91 = vmatmul.mubr.bf16.gmra.mxu0 %v56
    %v92 = vpop.f32.mrf.mxu0
    %v93 = vadd.f32 %v40, %v92
    %v94 = vpop.f32.mrf.mxu0
    %v95 = vpop.f32.mrf.mxu0
    %v96 = vadd.f32 %v40, %v95
    %v97 = vpop.f32.mrf.mxu0
    %98 = vdwg.mxu0
    %v99 = vmax.f32 %v93, 0.0
    %v100 = vmax.f32 %v96, 0.0
    %v101 = vpack.c.bf16 %v100, %v99
    %v102 = vld [vmem:[%s3] sm:$0xf]
    %v103 = vld [vmem:[%s3 + $0x4] sm:$0xf]
    %v104 = vld [vmem:[%s3 + $0x8] sm:$0xf]
    %v105 = vld [vmem:[%s3 + $0xc] sm:$0xf]
    %v106 = vld [vmem:[%s3 + $0x10] sm:$0xf]
    %v107 = vld [vmem:[%s3 + $0x14] sm:$0xf]
    %v108 = vld [vmem:[%s3 + $0x18] sm:$0xf]
    %v109 = vld [vmem:[%s3 + $0x1c] sm:$0xf]
    %v110 = vld [vmem:[%s4] sm:$0x1]
    %v112 = vlaneseq
    %v113 = vshrl.u32 %v112, 7
    %v114 = vsub.s32 0, %v113
    %v115 = vrot.slane %v110, %v114
    %v125 = vunpack.c.l.b16 %v102
    %v126 = vunpack.c.l.b16 %v103
    %v127 = vunpack.c.l.b16 %v104
    %v128 = vunpack.c.l.b16 %v105
    %v129 = vunpack.c.l.b16 %v106
    %v130 = vunpack.c.l.b16 %v107
    %v131 = vunpack.c.l.b16 %v108
    %v132 = vunpack.c.l.b16 %v109
    %v133 = vpack.c.b16 %v126, %v125
    %v134 = vpack.c.b16 %v128, %v127
    %v135 = vpack.c.b16 %v130, %v129
    %v136 = vpack.c.b16 %v132, %v131
    %vm141 = vcmask 523264
    %v143 = vsel %vm141, %v101, 0
    %145 = vmatprep.subr.bf16.mxu0 0
    %146 = vmatpush1.bf16.msra.mxu0 0
    %147 = vmatprep.subr.bf16.mxu0 0
    %148 = vmatpush1.bf16.msra.mxu0 0
    %149 = vmatprep.subr.bf16.mxu0 0
    %150 = vmatpush1.bf16.msra.mxu0 0
    %151 = vmatprep.subr.bf16.mxu0 0
    %152 = vmatpush1.bf16.msra.mxu0 0
    %153 = vmatprep.subr.bf16.mxu0 0
    %154 = vmatpush1.bf16.msra.mxu0 %v136
    %155 = vmatprep.subr.bf16.mxu0 0
    %156 = vmatpush1.bf16.msra.mxu0 %v135
    %157 = vmatprep.subr.bf16.mxu0 0
    %158 = vmatpush1.bf16.msra.mxu0 %v134
    %159 = vmatprep.subr.bf16.mxu0 0
    %160 = vmatpush1.bf16.msra.mxu0 %v133
    %161 = vmatprep.subr.bf16.mxu0 0
    %162 = vmatpush2.bf16.msra.mxu0 0
    %163 = vmatprep.subr.bf16.mxu0 0
    %164 = vmatpush2.bf16.msra.mxu0 0
    %165 = vmatprep.subr.bf16.mxu0 0
    %166 = vmatpush2.bf16.msra.mxu0 0
    %167 = vmatprep.subr.bf16.mxu0 0
    %168 = vmatpush2.bf16.msra.mxu0 0
    %169 = vmatprep.subr.bf16.mxu0 0
    %170 = vmatpush2.bf16.msra.mxu0 0
    %171 = vmatprep.subr.bf16.mxu0 0
    %172 = vmatpush2.bf16.msra.mxu0 0
    %173 = vmatprep.subr.bf16.mxu0 0
    %174 = vmatpush2.bf16.msra.mxu0 0
    %175 = vmatprep.subr.bf16.mxu0 0
    %176 = vmatpush2.bf16.msra.mxu0 0
    %177 = vmatprep.mubr.bf16.mxu0 0
    %178 = vmatmul.mubr.bf16.gmra.mxu0 %v143
    %v179 = vpop.f32.mrf.mxu0
    %v180 = vadd.f32 %v115, %v179
    %v181 = vpop.f32.mrf.mxu0
    %v182 = vpop.f32.mrf.mxu0
    %v183 = vadd.f32 %v115, %v182
    %v184 = vpop.f32.mrf.mxu0
    %185 = vdwg.mxu0
    %v186 = vadd.f32 %v180, %v28
    %v187 = vadd.f32 %v183, %v29
    %v188 = vsel %vm54, %v186, 0.0
    %189 = vadd.xlane.f32.xlu0 %v188
    %v190 = vpop.xlane.xlu0 %189
    %v191 = vsel %vm54, %v187, 0.0
    %192 = vadd.xlane.f32.xlu0 %v191
    %v193 = vpop.xlane.xlu0 %192
    %v194 = vrcp.pop 32.0
    %v195 = vmul.f32 %v190, %v194
    %v196 = vmul.f32 %v193, %v194
    %v197 = vsub.f32 %v186, %v195
    %v198 = vsub.f32 %v187, %v196
    %v199 = vmul.f32 %v197, %v197
    %v200 = vmul.f32 %v198, %v198
    %v201 = vsel %vm54, %v199, 0.0
    %202 = vadd.xlane.f32.xlu0 %v201
    %v203 = vpop.xlane.xlu0 %202
    %v204 = vsel %vm54, %v200, 0.0
    %205 = vadd.xlane.f32.xlu0 %v204
    %v206 = vpop.xlane.xlu0 %205
    %v207 = vmul.f32 %v203, %v194
    %v208 = vmul.f32 %v206, %v194
    %v209 = vadd.f32 %v207, 1e-05
    %v210 = vadd.f32 %v208, 1e-05
    %v211 = vrsqrt.pop %v209
    %v212 = vrsqrt.pop %v210
    %v213 = vmul.f32 %v197, %v211
    %v214 = vmul.f32 %v198, %v212
    %v215 = vld [vmem:[%s5] sm:$0x1]
    %v217 = vlaneseq
    %v218 = vshrl.u32 %v217, 7
    %v219 = vsub.s32 0, %v218
    %v220 = vrot.slane %v215, %v219
    %v222 = vmul.f32 %v213, %v220
    %v223 = vmul.f32 %v214, %v220
    %v224 = vld [vmem:[%s6] sm:$0x1]
    %v226 = vlaneseq
    %v227 = vshrl.u32 %v226, 7
    %v228 = vsub.s32 0, %v227
    %v229 = vrot.slane %v224, %v228
    %v231 = vadd.f32 %v222, %v229
    %v232 = vadd.f32 %v223, %v229
    %233 = vst.msk [vmem:[#allocation2] sm:$0xff] %vm54, %v231
    %234 = vst.msk [vmem:[#allocation2 + $0x8] sm:$0xff] %vm54, %v232
    // Predicated region
    $region30: #{decoder_layer.15} parent=1 // pred_check
      _
    $region31: #{decoder_layer.15} parent=1 // pred_check_branch
      %236 = sbr.rel (0) target = $region33
    $region32: #{decoder_layer.15} parent=1 // pred_region
      %s238 = ssub.s32 256, 256
      %239 = vsyncadd [#allocation3], %s238
      %s240 = sshll.u32 [#allocation2], 4
      %s241 = int_to_ptr.vmem [resolvable:$true] %s240
      %246 = dma.vmem_to_hbm [thread:$0]  %s241, 256, %s7, [#allocation3], 128, 128, 8
    $region33: #{decoder_layer.15} parent=1 // pred_fallthru
      _
    // Predicated region
    $region34: #{decoder_layer.15} parent=1 // pred_check
      _
    $region35: #{decoder_layer.15} parent=1 // pred_check_branch
      %248 = sbr.rel (0) target = $region37
    $region36: #{decoder_layer.15} parent=1 // pred_region
      %249 = dma.done [#allocation3], 256
    $region37: #{decoder_layer.15} parent=1 // pred_fallthru
      _
    %250 = vsyncpa [#allocation3], 1

// kernel: decoder_layer.13
$region0: #{decoder_layer.13}
  #allocation0 [shape = 'u32[]', space=smem, size = 0x4, offset = 0x4, fixed_abs, tag = 'smem constant byte address 0x4 - core index']
  #allocation1 [shape = 'u32[144,128]{1,0:T(1,128)}', space=vmem, size = 0x12000, scoped, tag = 'internal scratch']
  #allocation2 [shape = 'f32[2,8,1]{2,1,0:T(8,128)}', space=vmem, size = 0x2000, scoped, tag = 'scratch operand']
  #allocation3 [shape = 'f32[2,8,1]{2,1,0:T(8,128)}', space=vmem, size = 0x2000, scoped, tag = 'scratch operand']
  #allocation4 [shape = 'f32[2,8,16]{2,1,0:T(8,128)}', space=vmem, size = 0x2000, scoped, tag = 'scratch operand']
  %s0 = inlined_call_operand.vmem [shape: bf16[2,8,32], index: 0, kind: input, shape index: {}]
  %s1 = inlined_call_operand.vmem [shape: bf16[2,16,32], index: 1, kind: input, shape index: {}]
  %s2 = inlined_call_operand.vmem [shape: bf16[2,16,32], index: 2, kind: input, shape index: {}]
  %s3 = inlined_call_operand.vmem [shape: f32[2,1,16], index: 3, kind: input, shape index: {}]
  %s4 = inlined_call_operand.vmem [shape: bf16[2,8,32], index: 4, kind: output, shape index: {}]
  %s5 = sld [smem:[#allocation0]]
  $region57: #{decoder_layer.13} parent=0
    _
  %s7 = ssub.s32 1, %s5
  %s8 = scalar_select 0, %s7, %s5
  loop: start=0, step=1, limit=4
  $region2: #{decoder_layer.13} parent=0 // loop_pre_header
    _
  $region3: #{decoder_layer.13} parent=0 // loop_header
    %s10 = sphi 0, %s14
    %p11 = scmp.ge.s32.totalorder %s10, 4
    %s17 = sphi 0, %s36
    %s18 = sphi 0, %s32
    %s19 = sphi 0, %s28
    %s20 = sphi 0, %s17
    %s21 = sphi 0, %s18
    %s22 = sphi 0, %s19
    %s23 = sphi 0, %s20
    %s24 = sphi 0, %s21
    %s25 = sphi 0, %s22
    %s41 = sphi 0, %s43
    %s44 = sphi 0, %s41
    %s45 = sphi 0, %s44
    %s61 = sphi 0, %s45
    %s69 = sphi 0, %s71
    %s72 = sphi 0, %s69
    %s73 = sphi 0, %s72
    %s89 = sphi 0, %s73
    %s97 = sphi 0, %s99
    %s100 = sphi 0, %s97
    %s101 = sphi 0, %s100
    %s117 = sphi 0, %s101
    %s125 = sphi 0, %s127
    %s128 = sphi 0, %s125
    %s129 = sphi 0, %s128
    %s145 = sphi 0, %s129
    %s153 = sphi 0, %s155
    %s156 = sphi 0, %s153
    %s157 = sphi 0, %s156
    %s173 = sphi 0, %s157
  $region4: #{decoder_layer.13} parent=0 // loop_header_branch
    %13 = sbr.rel (%p11) target = $region8
  $region5: #{decoder_layer.13} parent=0 // loop_body
    %s15 = ssub.s32 %s10, 1
    %s16 = ssub.s32 %s10, 2
    %s26 = sadd.s32 1, %s19
    %p27 = scmp.ge.s32.totalorder %s26, 1
    %s28 = scalar_select %p27, 0, %s26
    %s29 = sadd.s32 1, %s18
    %s30 = scalar_select %p27, %s29, %s18
    %p31 = scmp.ge.s32.totalorder %s30, 1
    %s32 = scalar_select %p31, 0, %s30
    %s33 = sadd.s32 1, %s17
    %s34 = scalar_select %p31, %s33, %s17
    %p35 = scmp.ge.s32.totalorder %s34, 2
    %s36 = scalar_select %p35, 0, %s34
    %s37 = ssub.s32 %s17, %s36
    %s38 = ssub.s32 %s18, %s32
    %s39 = sor.u32 %s37, %s38
    %p40 = scmp.eq.s32.totalorder %s39, 0
    %s42 = sadd.s32 %s41, 1
    %s43 = scalar_select %p40, %s41, %s42
    %p46 = pneg %p40
    %p47 = scmp.eq.s32.totalorder %s10, 1
    %p48 = por %p46, %p47
    %p49 = scmp.ne.s32.totalorder %s41, %s44
    %p50 = scmp.eq.s32.totalorder %s10, 0
    %p51 = por %p49, %p50
    %p52 = scmp.ne.s32.totalorder %s41, %s44
    %p53 = scmp.eq.s32.totalorder %s15, 1
    %p54 = por %p52, %p53
    %p55 = scmp.ne.s32.totalorder %s44, %s45
    %p56 = scmp.eq.s32.totalorder %s15, 0
    %p57 = por %p55, %p56
    %p58 = scmp.ne.s32.totalorder %s44, %s45
    %p59 = scmp.eq.s32.totalorder %s16, 1
    %p60 = por %p58, %p59
    %p62 = scmp.ne.s32.totalorder %s45, %s61
    %p63 = scmp.eq.s32.totalorder %s16, 0
    %p64 = por %p62, %p63
    %s65 = ssub.s32 %s17, %s36
    %s66 = ssub.s32 %s19, %s28
    %s67 = sor.u32 %s65, %s66
    %p68 = scmp.eq.s32.totalorder %s67, 0
    %s70 = sadd.s32 %s69, 1
    %s71 = scalar_select %p68, %s69, %s70
    %p74 = pneg %p68
    %p75 = scmp.eq.s32.totalorder %s10, 1
    %p76 = por %p74, %p75
    %p77 = scmp.ne.s32.totalorder %s69, %s72
    %p78 = scmp.eq.s32.totalorder %s10, 0
    %p79 = por %p77, %p78
    %p80 = scmp.ne.s32.totalorder %s69, %s72
    %p81 = scmp.eq.s32.totalorder %s15, 1
    %p82 = por %p80, %p81
    %p83 = scmp.ne.s32.totalorder %s72, %s73
    %p84 = scmp.eq.s32.totalorder %s15, 0
    %p85 = por %p83, %p84
    %p86 = scmp.ne.s32.totalorder %s72, %s73
    %p87 = scmp.eq.s32.totalorder %s16, 1
    %p88 = por %p86, %p87
    %p90 = scmp.ne.s32.totalorder %s73, %s89
    %p91 = scmp.eq.s32.totalorder %s16, 0
    %p92 = por %p90, %p91
    %s93 = ssub.s32 %s17, %s36
    %s94 = ssub.s32 %s19, %s28
    %s95 = sor.u32 %s93, %s94
    %p96 = scmp.eq.s32.totalorder %s95, 0
    %s98 = sadd.s32 %s97, 1
    %s99 = scalar_select %p96, %s97, %s98
    %p102 = pneg %p96
    %p103 = scmp.eq.s32.totalorder %s10, 1
    %p104 = por %p102, %p103
    %p105 = scmp.ne.s32.totalorder %s97, %s100
    %p106 = scmp.eq.s32.totalorder %s10, 0
    %p107 = por %p105, %p106
    %p108 = scmp.ne.s32.totalorder %s97, %s100
    %p109 = scmp.eq.s32.totalorder %s15, 1
    %p110 = por %p108, %p109
    %p111 = scmp.ne.s32.totalorder %s100, %s101
    %p112 = scmp.eq.s32.totalorder %s15, 0
    %p113 = por %p111, %p112
    %p114 = scmp.ne.s32.totalorder %s100, %s101
    %p115 = scmp.eq.s32.totalorder %s16, 1
    %p116 = por %p114, %p115
    %p118 = scmp.ne.s32.totalorder %s101, %s117
    %p119 = scmp.eq.s32.totalorder %s16, 0
    %p120 = por %p118, %p119
    %s121 = ssub.s32 %s17, %s36
    %s122 = ssub.s32 %s19, %s28
    %s123 = sor.u32 %s121, %s122
    %p124 = scmp.eq.s32.totalorder %s123, 0
    %s126 = sadd.s32 %s125, 1
    %s127 = scalar_select %p124, %s125, %s126
    %p130 = pneg %p124
    %p131 = scmp.eq.s32.totalorder %s10, 1
    %p132 = por %p130, %p131
    %p133 = scmp.ne.s32.totalorder %s125, %s128
    %p134 = scmp.eq.s32.totalorder %s10, 0
    %p135 = por %p133, %p134
    %p136 = scmp.ne.s32.totalorder %s125, %s128
    %p137 = scmp.eq.s32.totalorder %s15, 1
    %p138 = por %p136, %p137
    %p139 = scmp.ne.s32.totalorder %s128, %s129
    %p140 = scmp.eq.s32.totalorder %s15, 0
    %p141 = por %p139, %p140
    %p142 = scmp.ne.s32.totalorder %s128, %s129
    %p143 = scmp.eq.s32.totalorder %s16, 1
    %p144 = por %p142, %p143
    %p146 = scmp.ne.s32.totalorder %s129, %s145
    %p147 = scmp.eq.s32.totalorder %s16, 0
    %p148 = por %p146, %p147
    %s149 = ssub.s32 %s17, %s36
    %s150 = ssub.s32 %s18, %s32
    %s151 = sor.u32 %s149, %s150
    %p152 = scmp.eq.s32.totalorder %s151, 0
    %s154 = sadd.s32 %s153, 1
    %s155 = scalar_select %p152, %s153, %s154
    %p158 = pneg %p152
    %p159 = scmp.eq.s32.totalorder %s10, 1
    %p160 = por %p158, %p159
    %p161 = scmp.ne.s32.totalorder %s153, %s156
    %p162 = scmp.eq.s32.totalorder %s10, 0
    %p163 = por %p161, %p162
    %p164 = scmp.ne.s32.totalorder %s153, %s156
    %p165 = scmp.eq.s32.totalorder %s15, 1
    %p166 = por %p164, %p165
    %p167 = scmp.ne.s32.totalorder %s156, %s157
    %p168 = scmp.eq.s32.totalorder %s15, 0
    %p169 = por %p167, %p168
    %p170 = scmp.ne.s32.totalorder %s156, %s157
    %p171 = scmp.eq.s32.totalorder %s16, 1
    %p172 = por %p170, %p171
    %p174 = scmp.ne.s32.totalorder %s157, %s173
    %p175 = scmp.eq.s32.totalorder %s16, 0
    %p176 = por %p174, %p175
    %p177 = scmp.le.s32.totalorder 1, %s10
    %p178 = scmp.lt.s32.totalorder %s10, 3
    %p179 = pnand %p177, %p178
    %p180 = pneg %p179
    // Predicated region
    $region9: #{decoder_layer.13} parent=5 // pred_check
      _
    $region10: #{decoder_layer.13} parent=5 // pred_check_branch
      %182 = sbr.rel (%p179) target = $region12
    $region11: #{decoder_layer.13} parent=5 // pred_region
      %s183 = ssub.s32 %s10, 1
    $region12: #{decoder_layer.13} parent=5 // pred_fallthru
      _
    %p184 = scmp.lt.s32.totalorder %s10, 2
    // Predicated region
    $region13: #{decoder_layer.13} parent=5 // pred_check
      %p185 = pneg %p184
    $region14: #{decoder_layer.13} parent=5 // pred_check_branch
      %187 = sbr.rel (%p185) target = $region16
    $region15: #{decoder_layer.13} parent=5 // pred_region
      // Predicated region
      $region17: #{decoder_layer.13} parent=15 // pred_check
        %p188 = pneg %p51
      $region18: #{decoder_layer.13} parent=15 // pred_check_branch
        %190 = sbr.rel (%p188) target = $region20
      $region19: #{decoder_layer.13} parent=15 // pred_region
        %p191 = scmp.lt.s32.totalorder %s17, 1
        %s192 = scalar_select %p191, %s17, 1
        %p193 = scmp.lt.s32.totalorder %s18, 0
        %s194 = scalar_select %p193, %s18, 0
        %s195 = sadd.s32 %s194, %s192
        %s196 = smul.addr %s195, 4
        %s197 = scalar_lea.vmem %s0, %s196
      $region20: #{decoder_layer.13} parent=15 // pred_fallthru
        _
      // Predicated region
      $region21: #{decoder_layer.13} parent=15 // pred_check
        %p198 = pneg %p79
      $region22: #{decoder_layer.13} parent=15 // pred_check_branch
        %200 = sbr.rel (%p198) target = $region24
      $region23: #{decoder_layer.13} parent=15 // pred_region
        %s201 = smul.u32 2, %s19
        %p202 = scmp.lt.s32.totalorder %s17, 1
        %s203 = scalar_select %p202, %s17, 1
        %p204 = scmp.lt.s32.totalorder %s201, 1
        %s205 = scalar_select %p204, %s201, 1
        %s206 = smul.addr %s203, 2
        %s207 = sadd.s32 %s205, %s206
        %s208 = smul.addr %s207, 4
        %s209 = scalar_lea.vmem %s1, %s208
        %s210 = smul.u32 2, %s19
      $region24: #{decoder_layer.13} parent=15 // pred_fallthru
        _
      // Predicated region
      $region25: #{decoder_layer.13} parent=15 // pred_check
        %p211 = pneg %p107
      $region26: #{decoder_layer.13} parent=15 // pred_check_branch
        %213 = sbr.rel (%p211) target = $region28
      $region27: #{decoder_layer.13} parent=15 // pred_region
        %s214 = smul.u32 2, %s19
        %p215 = scmp.lt.s32.totalorder %s17, 1
        %s216 = scalar_select %p215, %s17, 1
        %p217 = scmp.lt.s32.totalorder %s214, 1
        %s218 = scalar_select %p217, %s214, 1
        %s219 = smul.addr %s216, 2
        %s220 = sadd.s32 %s218, %s219
        %s221 = smul.addr %s220, 4
        %s222 = scalar_lea.vmem %s2, %s221
        %s223 = smul.u32 2, %s19
      $region28: #{decoder_layer.13} parent=15 // pred_fallthru
        _
      // Predicated region
      $region29: #{decoder_layer.13} parent=15 // pred_check
        %p224 = pneg %p135
      $region30: #{decoder_layer.13} parent=15 // pred_check_branch
        %226 = sbr.rel (%p224) target = $region32
      $region31: #{decoder_layer.13} parent=15 // pred_region
        %p227 = scmp.lt.s32.totalorder %s17, 1
        %s228 = scalar_select %p227, %s17, 1
        %p229 = scmp.lt.s32.totalorder %s19, 0
        %s230 = scalar_select %p229, %s19, 0
        %s231 = sadd.s32 %s230, %s228
        %s232 = scalar_lea.vmem %s3, %s231
      $region32: #{decoder_layer.13} parent=15 // pred_fallthru
        _
    $region16: #{decoder_layer.13} parent=5 // pred_fallthru
      _
    %p233 = scmp.le.s32.totalorder 1, %s10
    %p234 = scmp.lt.s32.totalorder %s10, 3
    %p235 = pnand %p233, %p234
    %p236 = pneg %p235
    // Predicated region
    $region33: #{decoder_layer.13} parent=5 // pred_check
      _
    $region34: #{decoder_layer.13} parent=5 // pred_check_branch
      %238 = sbr.rel (%p235) target = $region36
    $region35: #{decoder_layer.13} parent=5 // pred_region
      %s239 = ssub.s32 %s10, 1
      %p240 = scmp.lt.s32.totalorder %s20, 1
      %s241 = scalar_select %p240, %s20, 1
      %p242 = scmp.lt.s32.totalorder %s21, 0
      %s243 = scalar_select %p242, %s21, 0
      %s244 = sadd.s32 %s243, %s241
      %s245 = smul.addr %s244, 4
      %s246 = scalar_lea.vmem %s0, %s245
      %p247 = pneg %p57
      %p248 = pneg %p54
      %s249 = smul.u32 2, %s22
      %p250 = scmp.lt.s32.totalorder %s20, 1
      %s251 = scalar_select %p250, %s20, 1
      %p252 = scmp.lt.s32.totalorder %s249, 1
      %s253 = scalar_select %p252, %s249, 1
      %s254 = smul.addr %s251, 2
      %s255 = sadd.s32 %s253, %s254
      %s256 = smul.addr %s255, 4
      %s257 = scalar_lea.vmem %s1, %s256
      %p258 = pneg %p85
      %p259 = pneg %p82
      %s260 = smul.u32 2, %s22
      %p261 = scmp.lt.s32.totalorder %s20, 1
      %s262 = scalar_select %p261, %s20, 1
      %p263 = scmp.lt.s32.totalorder %s260, 1
      %s264 = scalar_select %p263, %s260, 1
      %s265 = smul.addr %s262, 2
      %s266 = sadd.s32 %s264, %s265
      %s267 = smul.addr %s266, 4
      %s268 = scalar_lea.vmem %s2, %s267
      %p269 = pneg %p113
      %p270 = pneg %p110
      %p271 = scmp.lt.s32.totalorder %s20, 1
      %s272 = scalar_select %p271, %s20, 1
      %p273 = scmp.lt.s32.totalorder %s22, 0
      %s274 = scalar_select %p273, %s22, 0
      %s275 = sadd.s32 %s274, %s272
      %s276 = scalar_lea.vmem %s3, %s275
      %p277 = pneg %p141
      %p278 = pneg %p138
      %p279 = pneg %p169
      %p280 = pneg %p166
      %p281 = scmp.lt.s32.totalorder %s20, 1
      %s282 = scalar_select %p281, %s20, 1
      %p283 = scmp.lt.s32.totalorder %s21, 0
      %s284 = scalar_select %p283, %s21, 0
      %s285 = sadd.s32 %s284, %s282
      %s286 = smul.addr %s285, 4
      %s287 = scalar_lea.vmem %s4, %s286
      %p288 = scmp.lt.s32.totalorder %s20, 1
      %s289 = scalar_select %p288, %s20, 1
      %p290 = scmp.lt.s32.totalorder %s21, 0
      %s291 = scalar_select %p290, %s21, 0
      %s292 = sadd.s32 %s291, %s289
      %s293 = smul.addr %s292, 4
      %s294 = scalar_lea.vmem %s0, %s293
      %s295 = smul.u32 2, %s22
      %p296 = scmp.lt.s32.totalorder %s20, 1
      %s297 = scalar_select %p296, %s20, 1
      %p298 = scmp.lt.s32.totalorder %s295, 1
      %s299 = scalar_select %p298, %s295, 1
      %s300 = smul.addr %s297, 2
      %s301 = sadd.s32 %s299, %s300
      %s302 = smul.addr %s301, 4
      %s303 = scalar_lea.vmem %s1, %s302
      %s304 = smul.u32 2, %s22
      %s305 = smul.u32 2, %s22
      %p306 = scmp.lt.s32.totalorder %s20, 1
      %s307 = scalar_select %p306, %s20, 1
      %p308 = scmp.lt.s32.totalorder %s305, 1
      %s309 = scalar_select %p308, %s305, 1
      %s310 = smul.addr %s307, 2
      %s311 = sadd.s32 %s309, %s310
      %s312 = smul.addr %s311, 4
      %s313 = scalar_lea.vmem %s2, %s312
      %s314 = smul.u32 2, %s22
      %p315 = scmp.lt.s32.totalorder %s20, 1
      %s316 = scalar_select %p315, %s20, 1
      %p317 = scmp.lt.s32.totalorder %s22, 0
      %s318 = scalar_select %p317, %s22, 0
      %s319 = sadd.s32 %s318, %s316
      %s320 = scalar_lea.vmem %s3, %s319
      %p321 = scmp.lt.s32.totalorder %s20, 1
      %s322 = scalar_select %p321, %s20, 1
      %p323 = scmp.lt.s32.totalorder %s21, 0
      %s324 = scalar_select %p323, %s21, 0
      %s325 = sadd.s32 %s324, %s322
      %s326 = smul.addr %s325, 4
      %s327 = scalar_lea.vmem %s4, %s326
      %p329 = scmp.eq.s32.totalorder %s22, 0
      // Predicated region
      $region37: #{decoder_layer.13} parent=35 // pred_check
        %p330 = pneg %p329
      $region38: #{decoder_layer.13} parent=35 // pred_check_branch
        %332 = sbr.rel (%p330) target = $region40
      $region39: #{decoder_layer.13} parent=35 // pred_region
        %vm333 = vcmask 7168
        %334 = vst.msk [vmem:[#allocation2] sm:$0xff] %vm333, -inf
        %335 = vst.msk [vmem:[#allocation2 + $0x8] sm:$0xff] %vm333, -inf
        %336 = vst.msk [vmem:[#allocation3] sm:$0xff] %vm333, 0.0
        %337 = vst.msk [vmem:[#allocation3 + $0x8] sm:$0xff] %vm333, 0.0
        %vm338 = vcmask 130048
        %339 = vst.msk [vmem:[#allocation4] sm:$0xff] %vm338, 0.0
        %340 = vst.msk [vmem:[#allocation4 + $0x8] sm:$0xff] %vm338, 0.0
      $region40: #{decoder_layer.13} parent=35 // pred_fallthru
        _
      %v341 = vld [vmem:[%s320] sm:$0x1]
      %vm342 = vcmp.gt.f32.partialorder %v341, 0.0
      %v343 = vld [vmem:[%s294] sm:$0xf]
      %v344 = vld [vmem:[%s303] sm:$0xf]
      %v345 = vld [vmem:[%s303 + $0x4] sm:$0xf]
      %v346 = vld [vmem:[%s313] sm:$0xf]
      %v347 = vld [vmem:[%s313 + $0x4] sm:$0xf]
      %v350 = vunpack.c.l.b16 %v344
      %v351 = vunpack.c.l.b16 %v345
      %v352 = vpack.c.b16 %v351, %v350
      %vm353 = vcmask 130048
      %v355 = vsel %vm353, %v343, 0
      %v358 = vsel %vm353, %v352, 0
      %360 = vmatprep.subr.bf16.mxu0 0
      %361 = vmatpush1.bf16.xpose.msra.mxu0 0
      %362 = vmatprep.subr.bf16.mxu0 0
      %363 = vmatpush1.bf16.xpose.msra.mxu0 0
      %364 = vmatprep.subr.bf16.mxu0 0
      %365 = vmatpush1.bf16.xpose.msra.mxu0 0
      %366 = vmatprep.subr.bf16.mxu0 0
      %367 = vmatpush1.bf16.xpose.msra.mxu0 0
      %368 = vmatprep.subr.bf16.mxu0 0
      %369 = vmatpush1.bf16.xpose.msra.mxu0 0
      %370 = vmatprep.subr.bf16.mxu0 0
      %371 = vmatpush1.bf16.xpose.msra.mxu0 0
      %372 = vmatprep.subr.bf16.mxu0 0
      %373 = vmatpush1.bf16.xpose.msra.mxu0 0
      %374 = vmatprep.subr.bf16.mxu0 0
      %375 = vmatpush1.bf16.xpose.msra.mxu0 %v358
      %376 = vmatprep.subr.bf16.mxu0 0
      %377 = vmatpush2.bf16.xpose.msra.mxu0 0
      %378 = vmatprep.subr.bf16.mxu0 0
      %379 = vmatpush2.bf16.xpose.msra.mxu0 0
      %380 = vmatprep.subr.bf16.mxu0 0
      %381 = vmatpush2.bf16.xpose.msra.mxu0 0
      %382 = vmatprep.subr.bf16.mxu0 0
      %383 = vmatpush2.bf16.xpose.msra.mxu0 0
      %384 = vmatprep.subr.bf16.mxu0 0
      %385 = vmatpush2.bf16.xpose.msra.mxu0 0
      %386 = vmatprep.subr.bf16.mxu0 0
      %387 = vmatpush2.bf16.xpose.msra.mxu0 0
      %388 = vmatprep.subr.bf16.mxu0 0
      %389 = vmatpush2.bf16.xpose.msra.mxu0 0
      %390 = vmatprep.subr.bf16.mxu0 0
      %391 = vmatpush2.bf16.xpose.msra.mxu0 0
      %392 = vmatprep.mubr.bf16.mxu0 0
      %393 = vmatmul.mubr.bf16.gmra.mxu0 %v355
      %v394 = vpop.f32.mrf.mxu0
      %v395 = vadd.f32 0.0, %v394
      %v396 = vpop.f32.mrf.mxu0
      %v397 = vpop.f32.mrf.mxu0
      %v398 = vpop.f32.mrf.mxu0
      %399 = vdwg.mxu0
      %v400 = vmul.f32 %v395, 0.25
      %v401 = vsel %vm342, 1, 0
      %v402 = vlaneseq
      %v403 = vshrl.u32 %v402, 7
      %v404 = vsub.s32 0, %v403
      %v405 = vrot.slane %v401, %v404
      %vm406 = vcmp.eq.s32.totalorder %v405, 1
      %v407 = vsel %vm406, %v400, -1e+09
      %v408 = vld [vmem:[#allocation2] sm:$0xff]
      %v409 = vsel %vm353, %v407, -inf
      %410 = vmax.xlane.f32.xlu0 %v409
      %v411 = vpop.xlane.xlu0 %410
      %v412 = vmax.f32 %v408, %v411
      %v413 = vsub.f32 %v408, %v412
      %v414 = vmul.f32 %v413, 1.442695
      %v415 = vpow.pop %v414
      %417 = vset.pattern.permute.xlu0 0
      %418 = vperm.xlu0 %417, %v412
      %v419 = vpop.permute.xlu0 %418
      %v421 = vsub.f32 %v407, %v419
      %v422 = vmul.f32 %v421, 1.442695
      %v423 = vpow.pop %v422
      %v424 = vld [vmem:[#allocation3] sm:$0xff]
      %v425 = vmul.f32 %v415, %v424
      %v426 = vsel %vm353, %v423, 0.0
      %427 = vadd.xlane.f32.xlu0 %v426
      %v428 = vpop.xlane.xlu0 %427
      %v429 = vadd.f32 %v425, %v428
      %vm430 = vcmask 7168
      %431 = vst.msk [vmem:[#allocation3] sm:$0xff] %vm430, %v429
      %v432 = vld [vmem:[#allocation4] sm:$0xff]
      %434 = vset.pattern.permute.xlu0 0
      %435 = vperm.xlu0 %434, %v415
      %v436 = vpop.permute.xlu0 %435
      %v438 = vmul.f32 %v436, %v432
      %v439 = vpack.c.bf16 %v423, %v423
      %v442 = vunpack.c.l.b16 %v346
      %v443 = vunpack.c.l.b16 %v347
      %v444 = vpack.c.b16 %v443, %v442
      %v447 = vsel %vm353, %v439, 0
      %449 = vmatprep.subr.bf16.mxu0 0
      %450 = vmatpush1.bf16.msra.mxu0 0
      %451 = vmatprep.subr.bf16.mxu0 0
      %452 = vmatpush1.bf16.msra.mxu0 0
      %453 = vmatprep.subr.bf16.mxu0 0
      %454 = vmatpush1.bf16.msra.mxu0 0
      %455 = vmatprep.subr.bf16.mxu0 0
      %456 = vmatpush1.bf16.msra.mxu0 0
      %457 = vmatprep.subr.bf16.mxu0 0
      %458 = vmatpush1.bf16.msra.mxu0 0
      %459 = vmatprep.subr.bf16.mxu0 0
      %460 = vmatpush1.bf16.msra.mxu0 0
      %461 = vmatprep.subr.bf16.mxu0 0
      %462 = vmatpush1.bf16.msra.mxu0 0
      %463 = vmatprep.subr.bf16.mxu0 0
      %464 = vmatpush1.bf16.msra.mxu0 %v444
      %465 = vmatprep.subr.bf16.mxu0 0
      %466 = vmatpush2.bf16.msra.mxu0 0
      %467 = vmatprep.subr.bf16.mxu0 0
      %468 = vmatpush2.bf16.msra.mxu0 0
      %469 = vmatprep.subr.bf16.mxu0 0
      %470 = vmatpush2.bf16.msra.mxu0 0
      %471 = vmatprep.subr.bf16.mxu0 0
      %472 = vmatpush2.bf16.msra.mxu0 0
      %473 = vmatprep.subr.bf16.mxu0 0
      %474 = vmatpush2.bf16.msra.mxu0 0
      %475 = vmatprep.subr.bf16.mxu0 0
      %476 = vmatpush2.bf16.msra.mxu0 0
      %477 = vmatprep.subr.bf16.mxu0 0
      %478 = vmatpush2.bf16.msra.mxu0 0
      %479 = vmatprep.subr.bf16.mxu0 0
      %480 = vmatpush2.bf16.msra.mxu0 0
      %481 = vmatprep.mubr.bf16.mxu0 0
      %482 = vmatmul.mubr.bf16.gmra.mxu0 %v447
      %v483 = vpop.f32.mrf.mxu0
      %v484 = vadd.f32 0.0, %v483
      %v485 = vpop.f32.mrf.mxu0
      %v486 = vpop.f32.mrf.mxu0
      %v487 = vpop.f32.mrf.mxu0
      %488 = vdwg.mxu0
      %v489 = vadd.f32 %v438, %v484
      %490 = vst.msk [vmem:[#allocation4] sm:$0xff] %vm353, %v489
      %491 = vst.msk [vmem:[#allocation2] sm:$0xff] %vm430, %v412
      %v492 = vld [vmem:[%s294] sm:$0xf]
      %v493 = vld [vmem:[%s303] sm:$0xf]
      %v494 = vld [vmem:[%s303 + $0x4] sm:$0xf]
      %v495 = vld [vmem:[%s313] sm:$0xf]
      %v496 = vld [vmem:[%s313 + $0x4] sm:$0xf]
      %v498 = vunpack.c.l.b16 %v492
      %v499 = vpack.c.b16 %v498, %v498
      %500 = vrot.lane.b32.xlu0 %v499, 112
      %v501 = vpop.permute.xlu0 %500
      %v504 = vunpack.c.l.b16 %v493
      %v505 = vunpack.c.l.b16 %v494
      %v506 = vpack.c.b16 %v505, %v504
      %507 = vrot.lane.b32.xlu0 %v506, 112
      %v508 = vpop.permute.xlu0 %507
      %v510 = vsel %vm353, %v501, 0
      %v513 = vsel %vm353, %v508, 0
      %515 = vmatprep.subr.bf16.mxu0 0
      %516 = vmatpush1.bf16.xpose.msra.mxu0 0
      %517 = vmatprep.subr.bf16.mxu0 0
      %518 = vmatpush1.bf16.xpose.msra.mxu0 0
      %519 = vmatprep.subr.bf16.mxu0 0
      %520 = vmatpush1.bf16.xpose.msra.mxu0 0
      %521 = vmatprep.subr.bf16.mxu0 0
      %522 = vmatpush1.bf16.xpose.msra.mxu0 0
      %523 = vmatprep.subr.bf16.mxu0 0
      %524 = vmatpush1.bf16.xpose.msra.mxu0 0
      %525 = vmatprep.subr.bf16.mxu0 0
      %526 = vmatpush1.bf16.xpose.msra.mxu0 0
      %527 = vmatprep.subr.bf16.mxu0 0
      %528 = vmatpush1.bf16.xpose.msra.mxu0 0
      %529 = vmatprep.subr.bf16.mxu0 0
      %530 = vmatpush1.bf16.xpose.msra.mxu0 %v513
      %531 = vmatprep.subr.bf16.mxu0 0
      %532 = vmatpush2.bf16.xpose.msra.mxu0 0
      %533 = vmatprep.subr.bf16.mxu0 0
      %534 = vmatpush2.bf16.xpose.msra.mxu0 0
      %535 = vmatprep.subr.bf16.mxu0 0
      %536 = vmatpush2.bf16.xpose.msra.mxu0 0
      %537 = vmatprep.subr.bf16.mxu0 0
      %538 = vmatpush2.bf16.xpose.msra.mxu0 0
      %539 = vmatprep.subr.bf16.mxu0 0
      %540 = vmatpush2.bf16.xpose.msra.mxu0 0
      %541 = vmatprep.subr.bf16.mxu0 0
      %542 = vmatpush2.bf16.xpose.msra.mxu0 0
      %543 = vmatprep.subr.bf16.mxu0 0
      %544 = vmatpush2.bf16.xpose.msra.mxu0 0
      %545 = vmatprep.subr.bf16.mxu0 0
      %546 = vmatpush2.bf16.xpose.msra.mxu0 0
      %547 = vmatprep.mubr.bf16.mxu0 0
      %548 = vmatmul.mubr.bf16.gmra.mxu0 %v510
      %v549 = vpop.f32.mrf.mxu0
      %v550 = vadd.f32 0.0, %v549
      %v551 = vpop.f32.mrf.mxu0
      %v552 = vpop.f32.mrf.mxu0
      %v553 = vpop.f32.mrf.mxu0
      %554 = vdwg.mxu0
      %v555 = vmul.f32 %v550, 0.25
      %v556 = vsel %vm406, %v555, -1e+09
      %s557 = scalar_lea.vmem [#allocation2], 8
      %v558 = vld [vmem:[%s557] sm:$0xff]
      %v559 = vsel %vm353, %v556, -inf
      %560 = vmax.xlane.f32.xlu0 %v559
      %v561 = vpop.xlane.xlu0 %560
      %v562 = vmax.f32 %v558, %v561
      %v563 = vsub.f32 %v558, %v562
      %v564 = vmul.f32 %v563, 1.442695
      %v565 = vpow.pop %v564
      %567 = vset.pattern.permute.xlu0 0
      %568 = vperm.xlu0 %567, %v562
      %v569 = vpop.permute.xlu0 %568
      %v571 = vsub.f32 %v556, %v569
      %v572 = vmul.f32 %v571, 1.442695
      %v573 = vpow.pop %v572
      %s574 = scalar_lea.vmem [#allocation3], 8
      %v575 = vld [vmem:[%s574] sm:$0xff]
      %v576 = vmul.f32 %v565, %v575
      %v577 = vsel %vm353, %v573, 0.0
      %578 = vadd.xlane.f32.xlu0 %v577
      %v579 = vpop.xlane.xlu0 %578
      %v580 = vadd.f32 %v576, %v579
      %581 = vst.msk [vmem:[%s574] sm:$0xff] %vm430, %v580
      %s582 = scalar_lea.vmem [#allocation4], 8
      %v583 = vld [vmem:[%s582] sm:$0xff]
      %585 = vset.pattern.permute.xlu0 0
      %586 = vperm.xlu0 %585, %v565
      %v587 = vpop.permute.xlu0 %586
      %v589 = vmul.f32 %v587, %v583
      %v590 = vpack.c.bf16 %v573, %v573
      %v593 = vunpack.c.l.b16 %v495
      %v594 = vunpack.c.l.b16 %v496
      %v595 = vpack.c.b16 %v594, %v593
      %596 = vrot.lane.b32.xlu0 %v595, 112
      %v597 = vpop.permute.xlu0 %596
      %v600 = vsel %vm353, %v590, 0
      %602 = vmatprep.subr.bf16.mxu0 0
      %603 = vmatpush1.bf16.msra.mxu0 0
      %604 = vmatprep.subr.bf16.mxu0 0
      %605 = vmatpush1.bf16.msra.mxu0 0
      %606 = vmatprep.subr.bf16.mxu0 0
      %607 = vmatpush1.bf16.msra.mxu0 0
      %608 = vmatprep.subr.bf16.mxu0 0
      %609 = vmatpush1.bf16.msra.mxu0 0
      %610 = vmatprep.subr.bf16.mxu0 0
      %611 = vmatpush1.bf16.msra.mxu0 0
      %612 = vmatprep.subr.bf16.mxu0 0
      %613 = vmatpush1.bf16.msra.mxu0 0
      %614 = vmatprep.subr.bf16.mxu0 0
      %615 = vmatpush1.bf16.msra.mxu0 0
      %616 = vmatprep.subr.bf16.mxu0 0
      %617 = vmatpush1.bf16.msra.mxu0 %v597
      %618 = vmatprep.subr.bf16.mxu0 0
      %619 = vmatpush2.bf16.msra.mxu0 0
      %620 = vmatprep.subr.bf16.mxu0 0
      %621 = vmatpush2.bf16.msra.mxu0 0
      %622 = vmatprep.subr.bf16.mxu0 0
      %623 = vmatpush2.bf16.msra.mxu0 0
      %624 = vmatprep.subr.bf16.mxu0 0
      %625 = vmatpush2.bf16.msra.mxu0 0
      %626 = vmatprep.subr.bf16.mxu0 0
      %627 = vmatpush2.bf16.msra.mxu0 0
      %628 = vmatprep.subr.bf16.mxu0 0
      %629 = vmatpush2.bf16.msra.mxu0 0
      %630 = vmatprep.subr.bf16.mxu0 0
      %631 = vmatpush2.bf16.msra.mxu0 0
      %632 = vmatprep.subr.bf16.mxu0 0
      %633 = vmatpush2.bf16.msra.mxu0 0
      %634 = vmatprep.mubr.bf16.mxu0 0
      %635 = vmatmul.mubr.bf16.gmra.mxu0 %v600
      %v636 = vpop.f32.mrf.mxu0
      %v637 = vadd.f32 0.0, %v636
      %v638 = vpop.f32.mrf.mxu0
      %v639 = vpop.f32.mrf.mxu0
      %v640 = vpop.f32.mrf.mxu0
      %641 = vdwg.mxu0
      %v642 = vadd.f32 %v589, %v637
      %643 = vst.msk [vmem:[%s582] sm:$0xff] %vm353, %v642
      %644 = vst.msk [vmem:[%s557] sm:$0xff] %vm430, %v562
      // Predicated region
      $region41: #{decoder_layer.13} parent=35 // pred_check
        %p645 = pneg %p329
      $region42: #{decoder_layer.13} parent=35 // pred_check_branch
        %647 = sbr.rel (%p645) target = $region44
      $region43: #{decoder_layer.13} parent=35 // pred_region
        %v648 = vld [vmem:[#allocation3] sm:$0xff]
        %v649 = vrcp.pop %v648
        %v650 = vld [vmem:[#allocation4] sm:$0xff]
        %652 = vset.pattern.permute.xlu0 0
        %653 = vperm.xlu0 %652, %v649
        %v654 = vpop.permute.xlu0 %653
        %v656 = vmul.f32 %v650, %v654
        %v657 = vpack.c.bf16 %v656, %v656
        %vm658 = vcmask 125952
        %659 = vst.msk [vmem:[%s327] sm:$0xf] %vm658, %v657
        %v660 = vld [vmem:[%s574] sm:$0xff]
        %v661 = vrcp.pop %v660
        %v662 = vld [vmem:[%s582] sm:$0xff]
        %664 = vset.pattern.permute.xlu0 0
        %665 = vperm.xlu0 %664, %v661
        %v666 = vpop.permute.xlu0 %665
        %v668 = vmul.f32 %v662, %v666
        %v669 = vpack.c.bf16 %v668, %v668
        %v671 = vunpack.c.l.b16 %v669
        %v672 = vpack.c.b16 %v671, %v671
        %673 = vrot.lane.b32.xlu0 %v672, 16
        %v674 = vpop.permute.xlu0 %673
        %vm676 = vcmask 257152
        %677 = vst.msk [vmem:[%s327] sm:$0xf] %vm676, %v674
      $region44: #{decoder_layer.13} parent=35 // pred_fallthru
        _
      %p678 = scmp.lt.s32.totalorder %s20, 1
      %s679 = scalar_select %p678, %s20, 1
      %p680 = scmp.lt.s32.totalorder %s21, 0
      %s681 = scalar_select %p680, %s21, 0
      %s682 = sadd.s32 %s681, %s679
      %s683 = smul.addr %s682, 4
      %s684 = scalar_lea.vmem %s4, %s683
      // Predicated region
      $region45: #{decoder_layer.13} parent=35 // pred_check
        %p685 = pneg %p166
      $region46: #{decoder_layer.13} parent=35 // pred_check_branch
        %687 = sbr.rel (%p685) target = $region48
      $region47: #{decoder_layer.13} parent=35 // pred_region
        _
      $region48: #{decoder_layer.13} parent=35 // pred_fallthru
        _
    $region36: #{decoder_layer.13} parent=5 // pred_fallthru
      _
    %p688 = scmp.le.s32.totalorder 2, %s10
    // Predicated region
    $region49: #{decoder_layer.13} parent=5 // pred_check
      %p689 = pneg %p688
    $region50: #{decoder_layer.13} parent=5 // pred_check_branch
      %691 = sbr.rel (%p689) target = $region52
    $region51: #{decoder_layer.13} parent=5 // pred_region
      %s692 = ssub.s32 %s10, 2
      // Predicated region
      $region53: #{decoder_layer.13} parent=51 // pred_check
        %p693 = pneg %p172
      $region54: #{decoder_layer.13} parent=51 // pred_check_branch
        %695 = sbr.rel (%p693) target = $region56
      $region55: #{decoder_layer.13} parent=51 // pred_region
        %p696 = scmp.lt.s32.totalorder %s23, 1
        %s697 = scalar_select %p696, %s23, 1
        %p698 = scmp.lt.s32.totalorder %s24, 0
        %s699 = scalar_select %p698, %s24, 0
        %s700 = sadd.s32 %s699, %s697
        %s701 = smul.addr %s700, 4
        %s702 = scalar_lea.vmem %s4, %s701
      $region56: #{decoder_layer.13} parent=51 // pred_fallthru
        _
    $region52: #{decoder_layer.13} parent=5 // pred_fallthru
      _
  $region6: #{decoder_layer.13} parent=0 // loop_footer
    %s14 = sadd.s32 1, %s10
  $region7: #{decoder_layer.13} parent=0 // loop_footer_branch
    %9 = sbr.rel target = $region3
  $region8: #{decoder_layer.13} parent=0 // loop_exit
    _

</llo_original>
